<compile_context>
chip_gen: v5e
topology: v5e:2x2
jax: 0.10.0
libtpu: 0.0.40
codegen_flags: <defaults>
</compile_context>

<pallas_src>
import functools
import numpy as np
import jax
import jax.numpy as jnp
from jax.experimental import pallas as pl
from jax.experimental.pallas import tpu as pltpu


# ----------------------------- host-side helpers -----------------------------
def _round_up(x, mult):
    return -(-x // mult) * mult


def _interp_matrix(out_size, in_size):
    # bilinear, align_corners=True (matches nn.Upsample(scale_factor=2, ...))
    m = np.zeros((out_size, in_size), np.float32)
    if in_size == 1 or out_size == 1:
        m[:, 0] = 1.0
        return m
    scale = (in_size - 1) / (out_size - 1)
    for o in range(out_size):
        src = o * scale
        i0 = min(int(np.floor(src)), in_size - 1)
        i1 = min(i0 + 1, in_size - 1)
        f = src - i0
        m[o, i0] += 1.0 - f
        m[o, i1] += f
    return m


def _interp_taps(out_size, in_size):
    # per-output-row (i0, i1, w0, w1) for the separable height pass
    if in_size == 1 or out_size == 1:
        return tuple((0, 0, 1.0, 0.0) for _ in range(out_size))
    scale = (in_size - 1) / (out_size - 1)
    taps = []
    for o in range(out_size):
        src = o * scale
        i0 = min(int(np.floor(src)), in_size - 1)
        i1 = min(i0 + 1, in_size - 1)
        f = float(src - i0)
        taps.append((i0, i1, 1.0 - f, f))
    return tuple(taps)


def _group_taps_by_dw(ksize, dilation):
    # dict dw -> [(dh, flat tap index kh*ksize+kw), ...], sorted by dw
    c = ksize // 2
    groups = {}
    for kh in range(ksize):
        for kw in range(ksize):
            dh = dilation * (kh - c)
            dw = dilation * (kw - c)
            groups.setdefault(dw, []).append((dh, kh * ksize + kw))
    return tuple((dw, tuple(g)) for dw, g in sorted(groups.items()))


# --------------------------- fused DGIA kernel -------------------------------
def _dgia_kernel(lid_ref, lk_ref, g_ref, mwT_ref,
                 w5_ref, b5_ref, w7_ref, b7_ref,
                 w1_ref, b1_ref, w2_ref, b2_ref,
                 w3_ref, scale_ref, shift_ref,
                 o_ref, pad5_ref, pad7_ref, pad3_ref,
                 *, H, W, Cid, Ck, Cg, Cout, M5, M7, M3,
                 taps5, taps7, h_taps, mxu_dtype):
    HW = H * W
    Cl = 3 * Cid
    cpg = Cl // 2
    f32 = jnp.float32

    # Column (w) coordinate of each flattened spatial position; used to mask
    # taps that would otherwise wrap across image rows in the flat layout.
    wcol = jax.lax.broadcasted_iota(jnp.int32, (1, HW), 1) % W

    def dw_mask(dw):
        return (wcol + dw >= 0) & (wcol + dw < W)

    def zero_margins(ref, C, M):
        # Margins are zeroed every step (cheap) so the kernel is megacore-safe
        # regardless of how the parallel batch grid is split across cores.
        ref[:, :M] = jnp.zeros((C, M), f32)
        ref[:, M + HW:] = jnp.zeros((C, M), f32)

    def depthwise(pad_ref, x, wts, bias, taps_by_dw, M):
        # x: (C, HW); wts: (C, ksize*ksize); taps grouped by dw so the wrap
        # mask is applied once per dw group (not once per tap).
        C = x.shape[0]
        zero_margins(pad_ref, C, M)
        pad_ref[:, M:M + HW] = x
        acc = None
        for dw, group in taps_by_dw:
            part = None
            for dh, t in group:
                s = M + dh * W + dw                       # static offset
                term = pad_ref[:, s:s + HW] * wts[:, t:t + 1]
                part = term if part is None else part + term
            if dw != 0:
                part = jnp.where(dw_mask(dw), part, 0.0)
            acc = part if acc is None else acc + part
        return acc + bias

    # ------------------------- LKFE (local branch) ---------------------------
    x_id = lid_ref[0]                                     # (Cid, HW)
    x_k = lk_ref[0]                                       # (Ck,  HW)

    attn1 = depthwise(pad5_ref, x_k, w5_ref[...], b5_ref[...], taps5, M5)
    attn2 = depthwise(pad7_ref, attn1, w7_ref[...], b7_ref[...], taps7, M7)

    # conv1 / conv2 (1x1): two small matmuls (no block-diagonal concat copy)
    a1 = jnp.dot(w1_ref[...], attn1.astype(mxu_dtype),
                 preferred_element_type=f32) + b1_ref[...]
    a2 = jnp.dot(w2_ref[...], attn2.astype(mxu_dtype),
                 preferred_element_type=f32) + b2_ref[...]

    cat = jnp.concatenate([x_id, a1, a2], axis=0)         # (Cl, HW)

    # channel_shuffle(groups=2): single sublane permute
    l_shuf = cat.reshape(2, cpg, HW).swapaxes(0, 1).reshape(Cl, HW)

    # --------------------------- global branch -------------------------------
    # g comes in as (Hg, Cg, Wg): width pass is one MXU matmul, height pass is
    # a static 2-tap blend over the leading (non-sublane) axis.
    g3 = g_ref[0]                                         # (Hg, Cg, Wg)
    Hg, Wg = g3.shape[0], g3.shape[2]
    r1 = jnp.dot(g3.reshape(Hg * Cg, Wg), mwT_ref[...],
                 preferred_element_type=f32)              # (Hg*Cg, W)
    r1 = r1.reshape(Hg, Cg, W)

    rows = []
    for (i0, i1, wa, wb) in h_taps:
        r = r1[i0] if wa == 1.0 else r1[i0] * wa          # (Cg, W)
        if wb != 0.0:
            r = r + r1[i1] * wb
        rows.append(r)
    up = jnp.concatenate(rows, axis=1)                    # (Cg, HW) flat

    # 3x3 conv (pad=1, bias=False) as one im2col matmul via padded scratch
    zero_margins(pad3_ref, Cg, M3)
    pad3_ref[:, M3:M3 + HW] = up
    wins = []
    for kh in range(3):
        for kw in range(3):
            dh, dw = kh - 1, kw - 1
            s = M3 + dh * W + dw
            win = pad3_ref[:, s:s + HW]
            if dw != 0:
                win = jnp.where(dw_mask(dw), win, 0.0)
            wins.append(win)
    patches = jnp.concatenate(wins, axis=0).astype(mxu_dtype)   # (9*Cg, HW)
    conv = jnp.dot(w3_ref[...], patches,
                   preferred_element_type=f32)            # (Cout, HW)

    gfeat = conv * scale_ref[...] + shift_ref[...]        # BN (eval affine)
    weight = jnp.mean(gfeat, axis=1, keepdims=True)       # AdaptiveAvgPool2d(1)

    o_ref[0] = l_shuf * weight + gfeat


# ------------------------- host-side parameter prep --------------------------
def prepare_params(params, l_dim, g_dim, out_dim, H, W, Hg, Wg, mxu_bf16=True):
    """Pack weights / interpolation constants once; reuse across calls."""
    Cid, Ck = l_dim // 3, 2 * l_dim // 3
    wdt = jnp.bfloat16 if mxu_bf16 else jnp.float32
    p = params
    prep = {
        'w5': jnp.asarray(p['w5'], jnp.float32).reshape(Ck, 25),
        'b5': jnp.asarray(p['b5'], jnp.float32).reshape(Ck, 1),
        'w7': jnp.asarray(p['w7'], jnp.float32).reshape(Ck, 49),
        'b7': jnp.asarray(p['b7'], jnp.float32).reshape(Ck, 1),
        'w1': jnp.asarray(p['w1'], jnp.float32).reshape(Cid, Ck).astype(wdt),
        'b1': jnp.asarray(p['b1'], jnp.float32).reshape(Cid, 1),
        'w2': jnp.asarray(p['w2'], jnp.float32).reshape(Cid, Ck).astype(wdt),
        'b2': jnp.asarray(p['b2'], jnp.float32).reshape(Cid, 1),
        # torch (Cout, Cg, 3, 3) -> (Cout, 9*Cg), tap-major / channel-minor
        'w3': jnp.transpose(jnp.asarray(p['w3'], jnp.float32), (0, 2, 3, 1))
                 .reshape(out_dim, 9 * g_dim).astype(wdt),
    }
    eps = 1e-5
    inv = (jnp.asarray(p['bn_gamma'], jnp.float32)
           / jnp.sqrt(jnp.asarray(p['bn_var'], jnp.float32) + eps))
    prep['scale'] = inv.reshape(out_dim, 1)
    prep['shift'] = (jnp.asarray(p['bn_beta'], jnp.float32)
                     - jnp.asarray(p['bn_mean'], jnp.float32) * inv
                     ).reshape(out_dim, 1)
    # separable bilinear x2 (align_corners=True): width interp matrix (tiny);
    # height pass is a static 2-tap blend inside the kernel.
    prep['mwT'] = jnp.asarray(_interp_matrix(W, Wg).T)          # (Wg, W)
    prep['h_taps'] = _interp_taps(H, Hg)
    prep['mxu_dtype'] = wdt
    return prep


# ------------------------------ DGIA wrapper ---------------------------------
def dgia_forward(l_nchw, g_nchw, prep):
    B, Cl, H, W = l_nchw.shape
    Bg, Cg, Hg, Wg = g_nchw.shape
    assert Bg == B and Cl % 3 == 0 and Cl % 2 == 0
    assert H == 2 * Hg and W == 2 * Wg, "DGIA upsamples g by exactly 2x"
    Cid, Ck = Cl // 3, 2 * Cl // 3
    Cout = Cl                       # `l * weight + g` requires out_dim == l_dim
    assert prep['w3'].shape == (Cout, 9 * Cg)
    HW = H * W

    # NCHW -> flat lanes; channel split + (Hg, Cg) swap done here (free / tiny
    # XLA ops) so the kernel never slices or indexes sublanes at odd offsets.
    l_flat = l_nchw.reshape(B, Cl, HW).astype(jnp.float32)
    l_id = l_flat[:, :Cid]
    l_k = l_flat[:, Cid:]
    g_perm = jnp.transpose(g_nchw.astype(jnp.float32), (0, 2, 1, 3))  # (B,Hg,Cg,Wg)

    # zero-margin widths (128-aligned so the interior store stays lane-aligned)
    M5 = _round_up(2 * W + 2, 128)
    M7 = _round_up(9 * W + 9, 128)
    M3 = _round_up(W + 1, 128)

    kernel = functools.partial(
        _dgia_kernel, H=H, W=W, Cid=Cid, Ck=Ck, Cg=Cg, Cout=Cout,
        M5=M5, M7=M7, M3=M3,
        taps5=_group_taps_by_dw(5, 1), taps7=_group_taps_by_dw(7, 3),
        h_taps=prep['h_taps'], mxu_dtype=prep['mxu_dtype'])

    # explicit VMEM budget: double-buffered blocks + scratch + temp headroom
    blk_bytes = 4 * (Cid * HW + Ck * HW + Cg * Hg * Wg + Cout * HW)
    scratch_bytes = 4 * (Ck * (HW + 2 * M5) + Ck * (HW + 2 * M7)
                         + Cg * (HW + 2 * M3))
    tmp_bytes = 4 * 16 * max(Ck, Cout, 9 * Cg) * HW
    vmem_limit = int(min(48 * 1024 * 1024,
                         max(16 * 1024 * 1024,
                             2 * blk_bytes + scratch_bytes + tmp_bytes)))

    out = pl.pallas_call(
        kernel,
        out_shape=jax.ShapeDtypeStruct((B, Cout, HW), jnp.float32),
        grid_spec=pltpu.PrefetchScalarGridSpec(
            num_scalar_prefetch=0,
            grid=(B,),
            in_specs=[
                pl.BlockSpec((1, Cid, HW), lambda b: (b, 0, 0)),
                pl.BlockSpec((1, Ck, HW), lambda b: (b, 0, 0)),
                pl.BlockSpec((1, Hg, Cg, Wg), lambda b: (b, 0, 0, 0)),
                pl.BlockSpec((Wg, W), lambda b: (0, 0)),
                pl.BlockSpec((Ck, 25), lambda b: (0, 0)),
                pl.BlockSpec((Ck, 1), lambda b: (0, 0)),
                pl.BlockSpec((Ck, 49), lambda b: (0, 0)),
                pl.BlockSpec((Ck, 1), lambda b: (0, 0)),
                pl.BlockSpec((Cid, Ck), lambda b: (0, 0)),
                pl.BlockSpec((Cid, 1), lambda b: (0, 0)),
                pl.BlockSpec((Cid, Ck), lambda b: (0, 0)),
                pl.BlockSpec((Cid, 1), lambda b: (0, 0)),
                pl.BlockSpec((Cout, 9 * Cg), lambda b: (0, 0)),
                pl.BlockSpec((Cout, 1), lambda b: (0, 0)),
                pl.BlockSpec((Cout, 1), lambda b: (0, 0)),
            ],
            out_specs=pl.BlockSpec((1, Cout, HW), lambda b: (b, 0, 0)),
            scratch_shapes=[
                pltpu.VMEM((Ck, HW + 2 * M5), jnp.float32),   # 5x5 pad buffer
                pltpu.VMEM((Ck, HW + 2 * M7), jnp.float32),   # 7x7(d3) pad buffer
                pltpu.VMEM((Cg, HW + 2 * M3), jnp.float32),   # 3x3 pad buffer
            ],
        ),
        compiler_params=pltpu.CompilerParams(
            dimension_semantics=("parallel",),
            vmem_limit_bytes=vmem_limit),
    )(l_id, l_k, g_perm, prep['mwT'],
      prep['w5'], prep['b5'], prep['w7'], prep['b7'],
      prep['w1'], prep['b1'], prep['w2'], prep['b2'],
      prep['w3'], prep['scale'], prep['shift'])

    return out.reshape(B, Cout, H, W)   # NCHW out, free reshape


# ----------------------------- parameter init --------------------------------
def init_params(key, l_dim, g_dim, out_dim):
    Cid, Ck = l_dim // 3, 2 * l_dim // 3
    ks = jax.random.split(key, 12)
    return {
        # LKFE.conv0 (depthwise 5x5), conv_spatial (depthwise 7x7 d=3)
        'w5': jax.random.normal(ks[0], (Ck, 5, 5), jnp.float32) * 0.1,
        'b5': jax.random.normal(ks[1], (Ck,), jnp.float32) * 0.1,
        'w7': jax.random.normal(ks[2], (Ck, 7, 7), jnp.float32) * 0.1,
        'b7': jax.random.normal(ks[3], (Ck,), jnp.float32) * 0.1,
        # LKFE.conv1 / conv2 (1x1)
        'w1': jax.random.normal(ks[4], (Cid, Ck), jnp.float32) * 0.1,
        'b1': jax.random.normal(ks[5], (Cid,), jnp.float32) * 0.1,
        'w2': jax.random.normal(ks[6], (Cid, Ck), jnp.float32) * 0.1,
        'b2': jax.random.normal(ks[7], (Cid,), jnp.float32) * 0.1,
        # DGIA.conv3x3 (BasicConv2d: conv no-bias + BN, eval-mode stats)
        'w3': jax.random.normal(ks[8], (out_dim, g_dim, 3, 3), jnp.float32) * 0.1,
        'bn_gamma': 1.0 + 0.1 * jax.random.normal(ks[9], (out_dim,), jnp.float32),
        'bn_beta': 0.1 * jax.random.normal(ks[10], (out_dim,), jnp.float32),
        'bn_mean': 0.1 * jax.random.normal(ks[11], (out_dim,), jnp.float32),
        'bn_var': 0.9 * jnp.ones((out_dim,), jnp.float32),
    }


if __name__ == "__main__":
    key = jax.random.PRNGKey(0)
    kl, kg, kp = jax.random.split(key, 3)

    B, l_dim, g_dim, H, W = 2, 12, 8, 16, 16
    out_dim = l_dim                            # DGIA requires out_dim == l_dim
    l = jax.random.normal(kl, (B, l_dim, H, W), jnp.float32)           # local
    g = jax.random.normal(kg, (B, g_dim, H // 2, W // 2), jnp.float32) # global

    params = init_params(kp, l_dim, g_dim, out_dim)
    prep = prepare_params(params, l_dim, g_dim, out_dim,
                          H, W, H // 2, W // 2, mxu_bf16=True)

    out = dgia_forward(l, g, prep)
    out = jax.block_until_ready(out)
    assert out.shape == (B, out_dim, H, W)
    assert bool(jnp.all(jnp.isfinite(out)))
    print("KERNEL_OK")
</pallas_src>

<mosaic_0001>
module attributes {stable_mosaic.version = 11 : i64} {
  func.func @_dgia_kernel(%arg0: i32, %arg1: memref<1x4x256xf32, #tpu.memory_space<vmem>>, %arg2: memref<1x8x256xf32, #tpu.memory_space<vmem>>, %arg3: memref<1x8x8x8xf32, #tpu.memory_space<vmem>>, %arg4: memref<8x16xf32, #tpu.memory_space<vmem>>, %arg5: memref<8x25xf32, #tpu.memory_space<vmem>>, %arg6: memref<8x1xf32, #tpu.memory_space<vmem>>, %arg7: memref<8x49xf32, #tpu.memory_space<vmem>>, %arg8: memref<8x1xf32, #tpu.memory_space<vmem>>, %arg9: memref<4x8xbf16, #tpu.memory_space<vmem>>, %arg10: memref<4x1xf32, #tpu.memory_space<vmem>>, %arg11: memref<4x8xbf16, #tpu.memory_space<vmem>>, %arg12: memref<4x1xf32, #tpu.memory_space<vmem>>, %arg13: memref<12x72xbf16, #tpu.memory_space<vmem>>, %arg14: memref<12x1xf32, #tpu.memory_space<vmem>>, %arg15: memref<12x1xf32, #tpu.memory_space<vmem>>, %arg16: memref<1x12x256xf32, #tpu.memory_space<vmem>>, %arg17: memref<8x512xf32, #tpu.memory_space<vmem>>, %arg18: memref<8x768xf32, #tpu.memory_space<vmem>>, %arg19: memref<8x512xf32, #tpu.memory_space<vmem>>) attributes {dimension_semantics = [#tpu.dimension_semantics<parallel>], iteration_bounds = array<i64: 2>, scalar_prefetch = 0 : i64, scratch_operands = 3 : i64, tpu.core_type = #tpu.core_type<tc>, window_params = [{transform_indices = @transform_0, window_bounds = array<i64: 1, 4, 256>}, {transform_indices = @transform_1, window_bounds = array<i64: 1, 8, 256>}, {transform_indices = @transform_2, window_bounds = array<i64: 1, 8, 8, 8>}, {pipeline_mode = #tpu.pipeline_mode<synchronous>, transform_indices = @transform_3, window_bounds = array<i64: 8, 16>}, {pipeline_mode = #tpu.pipeline_mode<synchronous>, transform_indices = @transform_4, window_bounds = array<i64: 8, 25>}, {pipeline_mode = #tpu.pipeline_mode<synchronous>, transform_indices = @transform_5, window_bounds = array<i64: 8, 1>}, {pipeline_mode = #tpu.pipeline_mode<synchronous>, transform_indices = @transform_6, window_bounds = array<i64: 8, 49>}, {pipeline_mode = #tpu.pipeline_mode<synchronous>, transform_indices = @transform_7, window_bounds = array<i64: 8, 1>}, {pipeline_mode = #tpu.pipeline_mode<synchronous>, transform_indices = @transform_8, window_bounds = array<i64: 4, 8>}, {pipeline_mode = #tpu.pipeline_mode<synchronous>, transform_indices = @transform_9, window_bounds = array<i64: 4, 1>}, {pipeline_mode = #tpu.pipeline_mode<synchronous>, transform_indices = @transform_10, window_bounds = array<i64: 4, 8>}, {pipeline_mode = #tpu.pipeline_mode<synchronous>, transform_indices = @transform_11, window_bounds = array<i64: 4, 1>}, {pipeline_mode = #tpu.pipeline_mode<synchronous>, transform_indices = @transform_12, window_bounds = array<i64: 12, 72>}, {pipeline_mode = #tpu.pipeline_mode<synchronous>, transform_indices = @transform_13, window_bounds = array<i64: 12, 1>}, {pipeline_mode = #tpu.pipeline_mode<synchronous>, transform_indices = @transform_14, window_bounds = array<i64: 12, 1>}, {transform_indices = @transform_15, window_bounds = array<i64: 1, 12, 256>}]} {
    %0 = tpu.iota {dimensions = array<i32: 1>} : vector<1x256xi32>
    %c16_i32 = arith.constant 16 : i32
    %c0_i32 = arith.constant 0 : i32
    %1 = arith.cmpi eq, %c16_i32, %c0_i32 : i32
    %c1_i32 = arith.constant 1 : i32
    %2 = arith.select %1, %c1_i32, %c16_i32 : i32
    %3 = vector.broadcast %2 : i32 to vector<1x256xi32>
    %4 = arith.remsi %0, %3 : vector<1x256xi32>
    %c0_i32_0 = arith.constant 0 : i32
    %5 = vector.broadcast %c0_i32_0 : i32 to vector<1x256xi32>
    %6 = arith.cmpi ne, %4, %5 : vector<1x256xi32>
    %c0_i32_1 = arith.constant 0 : i32
    %7 = vector.broadcast %c0_i32_1 : i32 to vector<1x256xi32>
    %8 = arith.cmpi slt, %4, %7 : vector<1x256xi32>
    %c0_i32_2 = arith.constant 0 : i32
    %9 = arith.cmpi slt, %2, %c0_i32_2 : i32
    %10 = vector.broadcast %9 : i1 to vector<1x256xi1>
    %11 = vector.broadcast %10 : vector<1x256xi1> to vector<1x256xi1>
    %12 = arith.xori %8, %11 : vector<1x256xi1>
    %13 = arith.andi %12, %6 : vector<1x256xi1>
    %14 = vector.broadcast %2 : i32 to vector<1x256xi32>
    %15 = arith.addi %4, %14 : vector<1x256xi32>
    %16 = arith.select %13, %15, %4 : vector<1x256xi1>, vector<1x256xi32>
    %c0 = arith.constant 0 : index
    %c0_3 = arith.constant 0 : index
    %c0_4 = arith.constant 0 : index
    %17 = vector.load %arg1[%c0, %c0_3, %c0_4] : memref<1x4x256xf32, #tpu.memory_space<vmem>>, vector<1x4x256xf32>
    %18 = vector.shape_cast %17 : vector<1x4x256xf32> to vector<4x256xf32>
    %c0_5 = arith.constant 0 : index
    %c0_6 = arith.constant 0 : index
    %c0_7 = arith.constant 0 : index
    %19 = vector.load %arg2[%c0_5, %c0_6, %c0_7] : memref<1x8x256xf32, #tpu.memory_space<vmem>>, vector<1x8x256xf32>
    %20 = vector.shape_cast %19 : vector<1x8x256xf32> to vector<8x256xf32>
    %c0_8 = arith.constant 0 : index
    %c0_9 = arith.constant 0 : index
    %21 = vector.load %arg5[%c0_8, %c0_9] : memref<8x25xf32, #tpu.memory_space<vmem>>, vector<8x25xf32>
    %c0_10 = arith.constant 0 : index
    %c0_11 = arith.constant 0 : index
    %22 = vector.load %arg6[%c0_10, %c0_11] : memref<8x1xf32, #tpu.memory_space<vmem>>, vector<8x1xf32>
    %cst = arith.constant 0.000000e+00 : f32
    %23 = vector.broadcast %cst : f32 to vector<8x128xf32>
    %c0_12 = arith.constant 0 : index
    %c0_13 = arith.constant 0 : index
    %24 = vector.load %arg17[%c0_12, %c0_13] : memref<8x512xf32, #tpu.memory_space<vmem>>, vector<8x128xf32>
    tpu.vector_store %arg17[%c0_12, %c0_13], %23 {strides = array<i32>} : memref<8x512xf32, #tpu.memory_space<vmem>>, vector<8x128xf32>,
    %cst_14 = arith.constant 0.000000e+00 : f32
    %25 = vector.broadcast %cst_14 : f32 to vector<8x128xf32>
    %c0_15 = arith.constant 0 : index
    %c384 = arith.constant 384 : index
    %26 = vector.load %arg17[%c0_15, %c384] : memref<8x512xf32, #tpu.memory_space<vmem>>, vector<8x128xf32>
    tpu.vector_store %arg17[%c0_15, %c384], %25 {strides = array<i32>} : memref<8x512xf32, #tpu.memory_space<vmem>>, vector<8x128xf32>,
    %c0_16 = arith.constant 0 : index
    %c128 = arith.constant 128 : index
    %27 = vector.load %arg17[%c0_16, %c128] : memref<8x512xf32, #tpu.memory_space<vmem>>, vector<8x256xf32>
    tpu.vector_store %arg17[%c0_16, %c128], %20 {strides = array<i32>} : memref<8x512xf32, #tpu.memory_space<vmem>>, vector<8x256xf32>,
    %c0_17 = arith.constant 0 : index
    %c94 = arith.constant 94 : index
    %28 = vector.load %arg17[%c0_17, %c94] : memref<8x512xf32, #tpu.memory_space<vmem>>, vector<8x256xf32>
    %29 = vector.extract_strided_slice %21 {offsets = [0, 0], sizes = [8, 1], strides = [1, 1]} : vector<8x25xf32> to vector<8x1xf32>
    %30 = vector.broadcast %29 : vector<8x1xf32> to vector<8x256xf32>
    %31 = arith.mulf %28, %30 : vector<8x256xf32>
    %c0_18 = arith.constant 0 : index
    %c110 = arith.constant 110 : index
    %32 = vector.load %arg17[%c0_18, %c110] : memref<8x512xf32, #tpu.memory_space<vmem>>, vector<8x256xf32>
    %33 = vector.extract_strided_slice %21 {offsets = [0, 5], sizes = [8, 1], strides = [1, 1]} : vector<8x25xf32> to vector<8x1xf32>
    %34 = vector.broadcast %33 : vector<8x1xf32> to vector<8x256xf32>
    %35 = arith.mulf %32, %34 : vector<8x256xf32>
    %36 = arith.addf %31, %35 : vector<8x256xf32>
    %c0_19 = arith.constant 0 : index
    %c126 = arith.constant 126 : index
    %37 = vector.load %arg17[%c0_19, %c126] : memref<8x512xf32, #tpu.memory_space<vmem>>, vector<8x256xf32>
    %38 = vector.extract_strided_slice %21 {offsets = [0, 10], sizes = [8, 1], strides = [1, 1]} : vector<8x25xf32> to vector<8x1xf32>
    %39 = vector.broadcast %38 : vector<8x1xf32> to vector<8x256xf32>
    %40 = arith.mulf %37, %39 : vector<8x256xf32>
    %41 = arith.addf %36, %40 : vector<8x256xf32>
    %c0_20 = arith.constant 0 : index
    %c142 = arith.constant 142 : index
    %42 = vector.load %arg17[%c0_20, %c142] : memref<8x512xf32, #tpu.memory_space<vmem>>, vector<8x256xf32>
    %43 = vector.extract_strided_slice %21 {offsets = [0, 15], sizes = [8, 1], strides = [1, 1]} : vector<8x25xf32> to vector<8x1xf32>
    %44 = vector.broadcast %43 : vector<8x1xf32> to vector<8x256xf32>
    %45 = arith.mulf %42, %44 : vector<8x256xf32>
    %46 = arith.addf %41, %45 : vector<8x256xf32>
    %c0_21 = arith.constant 0 : index
    %c158 = arith.constant 158 : index
    %47 = vector.load %arg17[%c0_21, %c158] : memref<8x512xf32, #tpu.memory_space<vmem>>, vector<8x256xf32>
    %48 = vector.extract_strided_slice %21 {offsets = [0, 20], sizes = [8, 1], strides = [1, 1]} : vector<8x25xf32> to vector<8x1xf32>
    %49 = vector.broadcast %48 : vector<8x1xf32> to vector<8x256xf32>
    %50 = arith.mulf %47, %49 : vector<8x256xf32>
    %51 = arith.addf %46, %50 : vector<8x256xf32>
    %c-2_i32 = arith.constant -2 : i32
    %52 = vector.broadcast %c-2_i32 : i32 to vector<1x256xi32>
    %53 = arith.addi %16, %52 : vector<1x256xi32>
    %c0_i32_22 = arith.constant 0 : i32
    %54 = vector.broadcast %c0_i32_22 : i32 to vector<1x256xi32>
    %55 = arith.cmpi sge, %53, %54 : vector<1x256xi32>
    %c-2_i32_23 = arith.constant -2 : i32
    %56 = vector.broadcast %c-2_i32_23 : i32 to vector<1x256xi32>
    %57 = arith.addi %16, %56 : vector<1x256xi32>
    %c16_i32_24 = arith.constant 16 : i32
    %58 = vector.broadcast %c16_i32_24 : i32 to vector<1x256xi32>
    %59 = arith.cmpi slt, %57, %58 : vector<1x256xi32>
    %60 = arith.andi %55, %59 : vector<1x256xi1>
    %cst_25 = arith.constant 0.000000e+00 : f32
    %61 = vector.shape_cast %60 : vector<1x256xi1> to vector<1x256xi1>
    %62 = vector.broadcast %61 : vector<1x256xi1> to vector<8x256xi1>
    %63 = vector.broadcast %cst_25 : f32 to vector<8x256xf32>
    %64 = arith.select %62, %51, %63 : vector<8x256xi1>, vector<8x256xf32>
    %c0_26 = arith.constant 0 : index
    %c95 = arith.constant 95 : index
    %65 = vector.load %arg17[%c0_26, %c95] : memref<8x512xf32, #tpu.memory_space<vmem>>, vector<8x256xf32>
    %66 = vector.extract_strided_slice %21 {offsets = [0, 1], sizes = [8, 1], strides = [1, 1]} : vector<8x25xf32> to vector<8x1xf32>
    %67 = vector.broadcast %66 : vector<8x1xf32> to vector<8x256xf32>
    %68 = arith.mulf %65, %67 : vector<8x256xf32>
    %c0_27 = arith.constant 0 : index
    %c111 = arith.constant 111 : index
    %69 = vector.load %arg17[%c0_27, %c111] : memref<8x512xf32, #tpu.memory_space<vmem>>, vector<8x256xf32>
    %70 = vector.extract_strided_slice %21 {offsets = [0, 6], sizes = [8, 1], strides = [1, 1]} : vector<8x25xf32> to vector<8x1xf32>
    %71 = vector.broadcast %70 : vector<8x1xf32> to vector<8x256xf32>
    %72 = arith.mulf %69, %71 : vector<8x256xf32>
    %73 = arith.addf %68, %72 : vector<8x256xf32>
    %c0_28 = arith.constant 0 : index
    %c127 = arith.constant 127 : index
    %74 = vector.load %arg17[%c0_28, %c127] : memref<8x512xf32, #tpu.memory_space<vmem>>, vector<8x256xf32>
    %75 = vector.extract_strided_slice %21 {offsets = [0, 11], sizes = [8, 1], strides = [1, 1]} : vector<8x25xf32> to vector<8x1xf32>
    %76 = vector.broadcast %75 : vector<8x1xf32> to vector<8x256xf32>
    %77 = arith.mulf %74, %76 : vector<8x256xf32>
    %78 = arith.addf %73, %77 : vector<8x256xf32>
    %c0_29 = arith.constant 0 : index
    %c143 = arith.constant 143 : index
    %79 = vector.load %arg17[%c0_29, %c143] : memref<8x512xf32, #tpu.memory_space<vmem>>, vector<8x256xf32>
    %80 = vector.extract_strided_slice %21 {offsets = [0, 16], sizes = [8, 1], strides = [1, 1]} : vector<8x25xf32> to vector<8x1xf32>
    %81 = vector.broadcast %80 : vector<8x1xf32> to vector<8x256xf32>
    %82 = arith.mulf %79, %81 : vector<8x256xf32>
    %83 = arith.addf %78, %82 : vector<8x256xf32>
    %c0_30 = arith.constant 0 : index
    %c159 = arith.constant 159 : index
    %84 = vector.load %arg17[%c0_30, %c159] : memref<8x512xf32, #tpu.memory_space<vmem>>, vector<8x256xf32>
    %85 = vector.extract_strided_slice %21 {offsets = [0, 21], sizes = [8, 1], strides = [1, 1]} : vector<8x25xf32> to vector<8x1xf32>
    %86 = vector.broadcast %85 : vector<8x1xf32> to vector<8x256xf32>
    %87 = arith.mulf %84, %86 : vector<8x256xf32>
    %88 = arith.addf %83, %87 : vector<8x256xf32>
    %c-1_i32 = arith.constant -1 : i32
    %89 = vector.broadcast %c-1_i32 : i32 to vector<1x256xi32>
    %90 = arith.addi %16, %89 : vector<1x256xi32>
    %c0_i32_31 = arith.constant 0 : i32
    %91 = vector.broadcast %c0_i32_31 : i32 to vector<1x256xi32>
    %92 = arith.cmpi sge, %90, %91 : vector<1x256xi32>
    %c-1_i32_32 = arith.constant -1 : i32
    %93 = vector.broadcast %c-1_i32_32 : i32 to vector<1x256xi32>
    %94 = arith.addi %16, %93 : vector<1x256xi32>
    %c16_i32_33 = arith.constant 16 : i32
    %95 = vector.broadcast %c16_i32_33 : i32 to vector<1x256xi32>
    %96 = arith.cmpi slt, %94, %95 : vector<1x256xi32>
    %97 = arith.andi %92, %96 : vector<1x256xi1>
    %cst_34 = arith.constant 0.000000e+00 : f32
    %98 = vector.shape_cast %97 : vector<1x256xi1> to vector<1x256xi1>
    %99 = vector.broadcast %98 : vector<1x256xi1> to vector<8x256xi1>
    %100 = vector.broadcast %cst_34 : f32 to vector<8x256xf32>
    %101 = arith.select %99, %88, %100 : vector<8x256xi1>, vector<8x256xf32>
    %102 = arith.addf %64, %101 : vector<8x256xf32>
    %c0_35 = arith.constant 0 : index
    %c96 = arith.constant 96 : index
    %103 = vector.load %arg17[%c0_35, %c96] : memref<8x512xf32, #tpu.memory_space<vmem>>, vector<8x256xf32>
    %104 = vector.extract_strided_slice %21 {offsets = [0, 2], sizes = [8, 1], strides = [1, 1]} : vector<8x25xf32> to vector<8x1xf32>
    %105 = vector.broadcast %104 : vector<8x1xf32> to vector<8x256xf32>
    %106 = arith.mulf %103, %105 : vector<8x256xf32>
    %c0_36 = arith.constant 0 : index
    %c112 = arith.constant 112 : index
    %107 = vector.load %arg17[%c0_36, %c112] : memref<8x512xf32, #tpu.memory_space<vmem>>, vector<8x256xf32>
    %108 = vector.extract_strided_slice %21 {offsets = [0, 7], sizes = [8, 1], strides = [1, 1]} : vector<8x25xf32> to vector<8x1xf32>
    %109 = vector.broadcast %108 : vector<8x1xf32> to vector<8x256xf32>
    %110 = arith.mulf %107, %109 : vector<8x256xf32>
    %111 = arith.addf %106, %110 : vector<8x256xf32>
    %c0_37 = arith.constant 0 : index
    %c128_38 = arith.constant 128 : index
    %112 = vector.load %arg17[%c0_37, %c128_38] : memref<8x512xf32, #tpu.memory_space<vmem>>, vector<8x256xf32>
    %113 = vector.extract_strided_slice %21 {offsets = [0, 12], sizes = [8, 1], strides = [1, 1]} : vector<8x25xf32> to vector<8x1xf32>
    %114 = vector.broadcast %113 : vector<8x1xf32> to vector<8x256xf32>
    %115 = arith.mulf %112, %114 : vector<8x256xf32>
    %116 = arith.addf %111, %115 : vector<8x256xf32>
    %c0_39 = arith.constant 0 : index
    %c144 = arith.constant 144 : index
    %117 = vector.load %arg17[%c0_39, %c144] : memref<8x512xf32, #tpu.memory_space<vmem>>, vector<8x256xf32>
    %118 = vector.extract_strided_slice %21 {offsets = [0, 17], sizes = [8, 1], strides = [1, 1]} : vector<8x25xf32> to vector<8x1xf32>
    %119 = vector.broadcast %118 : vector<8x1xf32> to vector<8x256xf32>
    %120 = arith.mulf %117, %119 : vector<8x256xf32>
    %121 = arith.addf %116, %120 : vector<8x256xf32>
    %c0_40 = arith.constant 0 : index
    %c160 = arith.constant 160 : index
    %122 = vector.load %arg17[%c0_40, %c160] : memref<8x512xf32, #tpu.memory_space<vmem>>, vector<8x256xf32>
    %123 = vector.extract_strided_slice %21 {offsets = [0, 22], sizes = [8, 1], strides = [1, 1]} : vector<8x25xf32> to vector<8x1xf32>
    %124 = vector.broadcast %123 : vector<8x1xf32> to vector<8x256xf32>
    %125 = arith.mulf %122, %124 : vector<8x256xf32>
    %126 = arith.addf %121, %125 : vector<8x256xf32>
    %127 = arith.addf %102, %126 : vector<8x256xf32>
    %c0_41 = arith.constant 0 : index
    %c97 = arith.constant 97 : index
    %128 = vector.load %arg17[%c0_41, %c97] : memref<8x512xf32, #tpu.memory_space<vmem>>, vector<8x256xf32>
    %129 = vector.extract_strided_slice %21 {offsets = [0, 3], sizes = [8, 1], strides = [1, 1]} : vector<8x25xf32> to vector<8x1xf32>
    %130 = vector.broadcast %129 : vector<8x1xf32> to vector<8x256xf32>
    %131 = arith.mulf %128, %130 : vector<8x256xf32>
    %c0_42 = arith.constant 0 : index
    %c113 = arith.constant 113 : index
    %132 = vector.load %arg17[%c0_42, %c113] : memref<8x512xf32, #tpu.memory_space<vmem>>, vector<8x256xf32>
    %133 = vector.extract_strided_slice %21 {offsets = [0, 8], sizes = [8, 1], strides = [1, 1]} : vector<8x25xf32> to vector<8x1xf32>
    %134 = vector.broadcast %133 : vector<8x1xf32> to vector<8x256xf32>
    %135 = arith.mulf %132, %134 : vector<8x256xf32>
    %136 = arith.addf %131, %135 : vector<8x256xf32>
    %c0_43 = arith.constant 0 : index
    %c129 = arith.constant 129 : index
    %137 = vector.load %arg17[%c0_43, %c129] : memref<8x512xf32, #tpu.memory_space<vmem>>, vector<8x256xf32>
    %138 = vector.extract_strided_slice %21 {offsets = [0, 13], sizes = [8, 1], strides = [1, 1]} : vector<8x25xf32> to vector<8x1xf32>
    %139 = vector.broadcast %138 : vector<8x1xf32> to vector<8x256xf32>
    %140 = arith.mulf %137, %139 : vector<8x256xf32>
    %141 = arith.addf %136, %140 : vector<8x256xf32>
    %c0_44 = arith.constant 0 : index
    %c145 = arith.constant 145 : index
    %142 = vector.load %arg17[%c0_44, %c145] : memref<8x512xf32, #tpu.memory_space<vmem>>, vector<8x256xf32>
    %143 = vector.extract_strided_slice %21 {offsets = [0, 18], sizes = [8, 1], strides = [1, 1]} : vector<8x25xf32> to vector<8x1xf32>
    %144 = vector.broadcast %143 : vector<8x1xf32> to vector<8x256xf32>
    %145 = arith.mulf %142, %144 : vector<8x256xf32>
    %146 = arith.addf %141, %145 : vector<8x256xf32>
    %c0_45 = arith.constant 0 : index
    %c161 = arith.constant 161 : index
    %147 = vector.load %arg17[%c0_45, %c161] : memref<8x512xf32, #tpu.memory_space<vmem>>, vector<8x256xf32>
    %148 = vector.extract_strided_slice %21 {offsets = [0, 23], sizes = [8, 1], strides = [1, 1]} : vector<8x25xf32> to vector<8x1xf32>
    %149 = vector.broadcast %148 : vector<8x1xf32> to vector<8x256xf32>
    %150 = arith.mulf %147, %149 : vector<8x256xf32>
    %151 = arith.addf %146, %150 : vector<8x256xf32>
    %c1_i32_46 = arith.constant 1 : i32
    %152 = vector.broadcast %c1_i32_46 : i32 to vector<1x256xi32>
    %153 = arith.addi %16, %152 : vector<1x256xi32>
    %c0_i32_47 = arith.constant 0 : i32
    %154 = vector.broadcast %c0_i32_47 : i32 to vector<1x256xi32>
    %155 = arith.cmpi sge, %153, %154 : vector<1x256xi32>
    %c1_i32_48 = arith.constant 1 : i32
    %156 = vector.broadcast %c1_i32_48 : i32 to vector<1x256xi32>
    %157 = arith.addi %16, %156 : vector<1x256xi32>
    %c16_i32_49 = arith.constant 16 : i32
    %158 = vector.broadcast %c16_i32_49 : i32 to vector<1x256xi32>
    %159 = arith.cmpi slt, %157, %158 : vector<1x256xi32>
    %160 = arith.andi %155, %159 : vector<1x256xi1>
    %cst_50 = arith.constant 0.000000e+00 : f32
    %161 = vector.shape_cast %160 : vector<1x256xi1> to vector<1x256xi1>
    %162 = vector.broadcast %161 : vector<1x256xi1> to vector<8x256xi1>
    %163 = vector.broadcast %cst_50 : f32 to vector<8x256xf32>
    %164 = arith.select %162, %151, %163 : vector<8x256xi1>, vector<8x256xf32>
    %165 = arith.addf %127, %164 : vector<8x256xf32>
    %c0_51 = arith.constant 0 : index
    %c98 = arith.constant 98 : index
    %166 = vector.load %arg17[%c0_51, %c98] : memref<8x512xf32, #tpu.memory_space<vmem>>, vector<8x256xf32>
    %167 = vector.extract_strided_slice %21 {offsets = [0, 4], sizes = [8, 1], strides = [1, 1]} : vector<8x25xf32> to vector<8x1xf32>
    %168 = vector.broadcast %167 : vector<8x1xf32> to vector<8x256xf32>
    %169 = arith.mulf %166, %168 : vector<8x256xf32>
    %c0_52 = arith.constant 0 : index
    %c114 = arith.constant 114 : index
    %170 = vector.load %arg17[%c0_52, %c114] : memref<8x512xf32, #tpu.memory_space<vmem>>, vector<8x256xf32>
    %171 = vector.extract_strided_slice %21 {offsets = [0, 9], sizes = [8, 1], strides = [1, 1]} : vector<8x25xf32> to vector<8x1xf32>
    %172 = vector.broadcast %171 : vector<8x1xf32> to vector<8x256xf32>
    %173 = arith.mulf %170, %172 : vector<8x256xf32>
    %174 = arith.addf %169, %173 : vector<8x256xf32>
    %c0_53 = arith.constant 0 : index
    %c130 = arith.constant 130 : index
    %175 = vector.load %arg17[%c0_53, %c130] : memref<8x512xf32, #tpu.memory_space<vmem>>, vector<8x256xf32>
    %176 = vector.extract_strided_slice %21 {offsets = [0, 14], sizes = [8, 1], strides = [1, 1]} : vector<8x25xf32> to vector<8x1xf32>
    %177 = vector.broadcast %176 : vector<8x1xf32> to vector<8x256xf32>
    %178 = arith.mulf %175, %177 : vector<8x256xf32>
    %179 = arith.addf %174, %178 : vector<8x256xf32>
    %c0_54 = arith.constant 0 : index
    %c146 = arith.constant 146 : index
    %180 = vector.load %arg17[%c0_54, %c146] : memref<8x512xf32, #tpu.memory_space<vmem>>, vector<8x256xf32>
    %181 = vector.extract_strided_slice %21 {offsets = [0, 19], sizes = [8, 1], strides = [1, 1]} : vector<8x25xf32> to vector<8x1xf32>
    %182 = vector.broadcast %181 : vector<8x1xf32> to vector<8x256xf32>
    %183 = arith.mulf %180, %182 : vector<8x256xf32>
    %184 = arith.addf %179, %183 : vector<8x256xf32>
    %c0_55 = arith.constant 0 : index
    %c162 = arith.constant 162 : index
    %185 = vector.load %arg17[%c0_55, %c162] : memref<8x512xf32, #tpu.memory_space<vmem>>, vector<8x256xf32>
    %186 = vector.extract_strided_slice %21 {offsets = [0, 24], sizes = [8, 1], strides = [1, 1]} : vector<8x25xf32> to vector<8x1xf32>
    %187 = vector.broadcast %186 : vector<8x1xf32> to vector<8x256xf32>
    %188 = arith.mulf %185, %187 : vector<8x256xf32>
    %189 = arith.addf %184, %188 : vector<8x256xf32>
    %c2_i32 = arith.constant 2 : i32
    %190 = vector.broadcast %c2_i32 : i32 to vector<1x256xi32>
    %191 = arith.addi %16, %190 : vector<1x256xi32>
    %c0_i32_56 = arith.constant 0 : i32
    %192 = vector.broadcast %c0_i32_56 : i32 to vector<1x256xi32>
    %193 = arith.cmpi sge, %191, %192 : vector<1x256xi32>
    %c2_i32_57 = arith.constant 2 : i32
    %194 = vector.broadcast %c2_i32_57 : i32 to vector<1x256xi32>
    %195 = arith.addi %16, %194 : vector<1x256xi32>
    %c16_i32_58 = arith.constant 16 : i32
    %196 = vector.broadcast %c16_i32_58 : i32 to vector<1x256xi32>
    %197 = arith.cmpi slt, %195, %196 : vector<1x256xi32>
    %198 = arith.andi %193, %197 : vector<1x256xi1>
    %cst_59 = arith.constant 0.000000e+00 : f32
    %199 = vector.shape_cast %198 : vector<1x256xi1> to vector<1x256xi1>
    %200 = vector.broadcast %199 : vector<1x256xi1> to vector<8x256xi1>
    %201 = vector.broadcast %cst_59 : f32 to vector<8x256xf32>
    %202 = arith.select %200, %189, %201 : vector<8x256xi1>, vector<8x256xf32>
    %203 = arith.addf %165, %202 : vector<8x256xf32>
    %204 = vector.broadcast %22 : vector<8x1xf32> to vector<8x256xf32>
    %205 = arith.addf %203, %204 : vector<8x256xf32>
    %c0_60 = arith.constant 0 : index
    %c0_61 = arith.constant 0 : index
    %206 = vector.load %arg7[%c0_60, %c0_61] : memref<8x49xf32, #tpu.memory_space<vmem>>, vector<8x49xf32>
    %c0_62 = arith.constant 0 : index
    %c0_63 = arith.constant 0 : index
    %207 = vector.load %arg8[%c0_62, %c0_63] : memref<8x1xf32, #tpu.memory_space<vmem>>, vector<8x1xf32>
    %cst_64 = arith.constant 0.000000e+00 : f32
    %208 = vector.broadcast %cst_64 : f32 to vector<8x256xf32>
    %c0_65 = arith.constant 0 : index
    %c0_66 = arith.constant 0 : index
    %209 = vector.load %arg18[%c0_65, %c0_66] : memref<8x768xf32, #tpu.memory_space<vmem>>, vector<8x256xf32>
    tpu.vector_store %arg18[%c0_65, %c0_66], %208 {strides = array<i32>} : memref<8x768xf32, #tpu.memory_space<vmem>>, vector<8x256xf32>,
    %cst_67 = arith.constant 0.000000e+00 : f32
    %210 = vector.broadcast %cst_67 : f32 to vector<8x256xf32>
    %c0_68 = arith.constant 0 : index
    %c512 = arith.constant 512 : index
    %211 = vector.load %arg18[%c0_68, %c512] : memref<8x768xf32, #tpu.memory_space<vmem>>, vector<8x256xf32>
    tpu.vector_store %arg18[%c0_68, %c512], %210 {strides = array<i32>} : memref<8x768xf32, #tpu.memory_space<vmem>>, vector<8x256xf32>,
    %c0_69 = arith.constant 0 : index
    %c256 = arith.constant 256 : index
    %212 = vector.load %arg18[%c0_69, %c256] : memref<8x768xf32, #tpu.memory_space<vmem>>, vector<8x256xf32>
    tpu.vector_store %arg18[%c0_69, %c256], %205 {strides = array<i32>} : memref<8x768xf32, #tpu.memory_space<vmem>>, vector<8x256xf32>,
    %c0_70 = arith.constant 0 : index
    %c103 = arith.constant 103 : index
    %213 = vector.load %arg18[%c0_70, %c103] : memref<8x768xf32, #tpu.memory_space<vmem>>, vector<8x256xf32>
    %214 = vector.extract_strided_slice %206 {offsets = [0, 0], sizes = [8, 1], strides = [1, 1]} : vector<8x49xf32> to vector<8x1xf32>
    %215 = vector.broadcast %214 : vector<8x1xf32> to vector<8x256xf32>
    %216 = arith.mulf %213, %215 : vector<8x256xf32>
    %c0_71 = arith.constant 0 : index
    %c151 = arith.constant 151 : index
    %217 = vector.load %arg18[%c0_71, %c151] : memref<8x768xf32, #tpu.memory_space<vmem>>, vector<8x256xf32>
    %218 = vector.extract_strided_slice %206 {offsets = [0, 7], sizes = [8, 1], strides = [1, 1]} : vector<8x49xf32> to vector<8x1xf32>
    %219 = vector.broadcast %218 : vector<8x1xf32> to vector<8x256xf32>
    %220 = arith.mulf %217, %219 : vector<8x256xf32>
    %221 = arith.addf %216, %220 : vector<8x256xf32>
    %c0_72 = arith.constant 0 : index
    %c199 = arith.constant 199 : index
    %222 = vector.load %arg18[%c0_72, %c199] : memref<8x768xf32, #tpu.memory_space<vmem>>, vector<8x256xf32>
    %223 = vector.extract_strided_slice %206 {offsets = [0, 14], sizes = [8, 1], strides = [1, 1]} : vector<8x49xf32> to vector<8x1xf32>
    %224 = vector.broadcast %223 : vector<8x1xf32> to vector<8x256xf32>
    %225 = arith.mulf %222, %224 : vector<8x256xf32>
    %226 = arith.addf %221, %225 : vector<8x256xf32>
    %c0_73 = arith.constant 0 : index
    %c247 = arith.constant 247 : index
    %227 = vector.load %arg18[%c0_73, %c247] : memref<8x768xf32, #tpu.memory_space<vmem>>, vector<8x256xf32>
    %228 = vector.extract_strided_slice %206 {offsets = [0, 21], sizes = [8, 1], strides = [1, 1]} : vector<8x49xf32> to vector<8x1xf32>
    %229 = vector.broadcast %228 : vector<8x1xf32> to vector<8x256xf32>
    %230 = arith.mulf %227, %229 : vector<8x256xf32>
    %231 = arith.addf %226, %230 : vector<8x256xf32>
    %c0_74 = arith.constant 0 : index
    %c295 = arith.constant 295 : index
    %232 = vector.load %arg18[%c0_74, %c295] : memref<8x768xf32, #tpu.memory_space<vmem>>, vector<8x256xf32>
    %233 = vector.extract_strided_slice %206 {offsets = [0, 28], sizes = [8, 1], strides = [1, 1]} : vector<8x49xf32> to vector<8x1xf32>
    %234 = vector.broadcast %233 : vector<8x1xf32> to vector<8x256xf32>
    %235 = arith.mulf %232, %234 : vector<8x256xf32>
    %236 = arith.addf %231, %235 : vector<8x256xf32>
    %c0_75 = arith.constant 0 : index
    %c343 = arith.constant 343 : index
    %237 = vector.load %arg18[%c0_75, %c343] : memref<8x768xf32, #tpu.memory_space<vmem>>, vector<8x256xf32>
    %238 = vector.extract_strided_slice %206 {offsets = [0, 35], sizes = [8, 1], strides = [1, 1]} : vector<8x49xf32> to vector<8x1xf32>
    %239 = vector.broadcast %238 : vector<8x1xf32> to vector<8x256xf32>
    %240 = arith.mulf %237, %239 : vector<8x256xf32>
    %241 = arith.addf %236, %240 : vector<8x256xf32>
    %c0_76 = arith.constant 0 : index
    %c391 = arith.constant 391 : index
    %242 = vector.load %arg18[%c0_76, %c391] : memref<8x768xf32, #tpu.memory_space<vmem>>, vector<8x256xf32>
    %243 = vector.extract_strided_slice %206 {offsets = [0, 42], sizes = [8, 1], strides = [1, 1]} : vector<8x49xf32> to vector<8x1xf32>
    %244 = vector.broadcast %243 : vector<8x1xf32> to vector<8x256xf32>
    %245 = arith.mulf %242, %244 : vector<8x256xf32>
    %246 = arith.addf %241, %245 : vector<8x256xf32>
    %c-9_i32 = arith.constant -9 : i32
    %247 = vector.broadcast %c-9_i32 : i32 to vector<1x256xi32>
    %248 = arith.addi %16, %247 : vector<1x256xi32>
    %c0_i32_77 = arith.constant 0 : i32
    %249 = vector.broadcast %c0_i32_77 : i32 to vector<1x256xi32>
    %250 = arith.cmpi sge, %248, %249 : vector<1x256xi32>
    %c-9_i32_78 = arith.constant -9 : i32
    %251 = vector.broadcast %c-9_i32_78 : i32 to vector<1x256xi32>
    %252 = arith.addi %16, %251 : vector<1x256xi32>
    %c16_i32_79 = arith.constant 16 : i32
    %253 = vector.broadcast %c16_i32_79 : i32 to vector<1x256xi32>
    %254 = arith.cmpi slt, %252, %253 : vector<1x256xi32>
    %255 = arith.andi %250, %254 : vector<1x256xi1>
    %cst_80 = arith.constant 0.000000e+00 : f32
    %256 = vector.shape_cast %255 : vector<1x256xi1> to vector<1x256xi1>
    %257 = vector.broadcast %256 : vector<1x256xi1> to vector<8x256xi1>
    %258 = vector.broadcast %cst_80 : f32 to vector<8x256xf32>
    %259 = arith.select %257, %246, %258 : vector<8x256xi1>, vector<8x256xf32>
    %c0_81 = arith.constant 0 : index
    %c106 = arith.constant 106 : index
    %260 = vector.load %arg18[%c0_81, %c106] : memref<8x768xf32, #tpu.memory_space<vmem>>, vector<8x256xf32>
    %261 = vector.extract_strided_slice %206 {offsets = [0, 1], sizes = [8, 1], strides = [1, 1]} : vector<8x49xf32> to vector<8x1xf32>
    %262 = vector.broadcast %261 : vector<8x1xf32> to vector<8x256xf32>
    %263 = arith.mulf %260, %262 : vector<8x256xf32>
    %c0_82 = arith.constant 0 : index
    %c154 = arith.constant 154 : index
    %264 = vector.load %arg18[%c0_82, %c154] : memref<8x768xf32, #tpu.memory_space<vmem>>, vector<8x256xf32>
    %265 = vector.extract_strided_slice %206 {offsets = [0, 8], sizes = [8, 1], strides = [1, 1]} : vector<8x49xf32> to vector<8x1xf32>
    %266 = vector.broadcast %265 : vector<8x1xf32> to vector<8x256xf32>
    %267 = arith.mulf %264, %266 : vector<8x256xf32>
    %268 = arith.addf %263, %267 : vector<8x256xf32>
    %c0_83 = arith.constant 0 : index
    %c202 = arith.constant 202 : index
    %269 = vector.load %arg18[%c0_83, %c202] : memref<8x768xf32, #tpu.memory_space<vmem>>, vector<8x256xf32>
    %270 = vector.extract_strided_slice %206 {offsets = [0, 15], sizes = [8, 1], strides = [1, 1]} : vector<8x49xf32> to vector<8x1xf32>
    %271 = vector.broadcast %270 : vector<8x1xf32> to vector<8x256xf32>
    %272 = arith.mulf %269, %271 : vector<8x256xf32>
    %273 = arith.addf %268, %272 : vector<8x256xf32>
    %c0_84 = arith.constant 0 : index
    %c250 = arith.constant 250 : index
    %274 = vector.load %arg18[%c0_84, %c250] : memref<8x768xf32, #tpu.memory_space<vmem>>, vector<8x256xf32>
    %275 = vector.extract_strided_slice %206 {offsets = [0, 22], sizes = [8, 1], strides = [1, 1]} : vector<8x49xf32> to vector<8x1xf32>
    %276 = vector.broadcast %275 : vector<8x1xf32> to vector<8x256xf32>
    %277 = arith.mulf %274, %276 : vector<8x256xf32>
    %278 = arith.addf %273, %277 : vector<8x256xf32>
    %c0_85 = arith.constant 0 : index
    %c298 = arith.constant 298 : index
    %279 = vector.load %arg18[%c0_85, %c298] : memref<8x768xf32, #tpu.memory_space<vmem>>, vector<8x256xf32>
    %280 = vector.extract_strided_slice %206 {offsets = [0, 29], sizes = [8, 1], strides = [1, 1]} : vector<8x49xf32> to vector<8x1xf32>
    %281 = vector.broadcast %280 : vector<8x1xf32> to vector<8x256xf32>
    %282 = arith.mulf %279, %281 : vector<8x256xf32>
    %283 = arith.addf %278, %282 : vector<8x256xf32>
    %c0_86 = arith.constant 0 : index
    %c346 = arith.constant 346 : index
    %284 = vector.load %arg18[%c0_86, %c346] : memref<8x768xf32, #tpu.memory_space<vmem>>, vector<8x256xf32>
    %285 = vector.extract_strided_slice %206 {offsets = [0, 36], sizes = [8, 1], strides = [1, 1]} : vector<8x49xf32> to vector<8x1xf32>
    %286 = vector.broadcast %285 : vector<8x1xf32> to vector<8x256xf32>
    %287 = arith.mulf %284, %286 : vector<8x256xf32>
    %288 = arith.addf %283, %287 : vector<8x256xf32>
    %c0_87 = arith.constant 0 : index
    %c394 = arith.constant 394 : index
    %289 = vector.load %arg18[%c0_87, %c394] : memref<8x768xf32, #tpu.memory_space<vmem>>, vector<8x256xf32>
    %290 = vector.extract_strided_slice %206 {offsets = [0, 43], sizes = [8, 1], strides = [1, 1]} : vector<8x49xf32> to vector<8x1xf32>
    %291 = vector.broadcast %290 : vector<8x1xf32> to vector<8x256xf32>
    %292 = arith.mulf %289, %291 : vector<8x256xf32>
    %293 = arith.addf %288, %292 : vector<8x256xf32>
    %c-6_i32 = arith.constant -6 : i32
    %294 = vector.broadcast %c-6_i32 : i32 to vector<1x256xi32>
    %295 = arith.addi %16, %294 : vector<1x256xi32>
    %c0_i32_88 = arith.constant 0 : i32
    %296 = vector.broadcast %c0_i32_88 : i32 to vector<1x256xi32>
    %297 = arith.cmpi sge, %295, %296 : vector<1x256xi32>
    %c-6_i32_89 = arith.constant -6 : i32
    %298 = vector.broadcast %c-6_i32_89 : i32 to vector<1x256xi32>
    %299 = arith.addi %16, %298 : vector<1x256xi32>
    %c16_i32_90 = arith.constant 16 : i32
    %300 = vector.broadcast %c16_i32_90 : i32 to vector<1x256xi32>
    %301 = arith.cmpi slt, %299, %300 : vector<1x256xi32>
    %302 = arith.andi %297, %301 : vector<1x256xi1>
    %cst_91 = arith.constant 0.000000e+00 : f32
    %303 = vector.shape_cast %302 : vector<1x256xi1> to vector<1x256xi1>
    %304 = vector.broadcast %303 : vector<1x256xi1> to vector<8x256xi1>
    %305 = vector.broadcast %cst_91 : f32 to vector<8x256xf32>
    %306 = arith.select %304, %293, %305 : vector<8x256xi1>, vector<8x256xf32>
    %307 = arith.addf %259, %306 : vector<8x256xf32>
    %c0_92 = arith.constant 0 : index
    %c109 = arith.constant 109 : index
    %308 = vector.load %arg18[%c0_92, %c109] : memref<8x768xf32, #tpu.memory_space<vmem>>, vector<8x256xf32>
    %309 = vector.extract_strided_slice %206 {offsets = [0, 2], sizes = [8, 1], strides = [1, 1]} : vector<8x49xf32> to vector<8x1xf32>
    %310 = vector.broadcast %309 : vector<8x1xf32> to vector<8x256xf32>
    %311 = arith.mulf %308, %310 : vector<8x256xf32>
    %c0_93 = arith.constant 0 : index
    %c157 = arith.constant 157 : index
    %312 = vector.load %arg18[%c0_93, %c157] : memref<8x768xf32, #tpu.memory_space<vmem>>, vector<8x256xf32>
    %313 = vector.extract_strided_slice %206 {offsets = [0, 9], sizes = [8, 1], strides = [1, 1]} : vector<8x49xf32> to vector<8x1xf32>
    %314 = vector.broadcast %313 : vector<8x1xf32> to vector<8x256xf32>
    %315 = arith.mulf %312, %314 : vector<8x256xf32>
    %316 = arith.addf %311, %315 : vector<8x256xf32>
    %c0_94 = arith.constant 0 : index
    %c205 = arith.constant 205 : index
    %317 = vector.load %arg18[%c0_94, %c205] : memref<8x768xf32, #tpu.memory_space<vmem>>, vector<8x256xf32>
    %318 = vector.extract_strided_slice %206 {offsets = [0, 16], sizes = [8, 1], strides = [1, 1]} : vector<8x49xf32> to vector<8x1xf32>
    %319 = vector.broadcast %318 : vector<8x1xf32> to vector<8x256xf32>
    %320 = arith.mulf %317, %319 : vector<8x256xf32>
    %321 = arith.addf %316, %320 : vector<8x256xf32>
    %c0_95 = arith.constant 0 : index
    %c253 = arith.constant 253 : index
    %322 = vector.load %arg18[%c0_95, %c253] : memref<8x768xf32, #tpu.memory_space<vmem>>, vector<8x256xf32>
    %323 = vector.extract_strided_slice %206 {offsets = [0, 23], sizes = [8, 1], strides = [1, 1]} : vector<8x49xf32> to vector<8x1xf32>
    %324 = vector.broadcast %323 : vector<8x1xf32> to vector<8x256xf32>
    %325 = arith.mulf %322, %324 : vector<8x256xf32>
    %326 = arith.addf %321, %325 : vector<8x256xf32>
    %c0_96 = arith.constant 0 : index
    %c301 = arith.constant 301 : index
    %327 = vector.load %arg18[%c0_96, %c301] : memref<8x768xf32, #tpu.memory_space<vmem>>, vector<8x256xf32>
    %328 = vector.extract_strided_slice %206 {offsets = [0, 30], sizes = [8, 1], strides = [1, 1]} : vector<8x49xf32> to vector<8x1xf32>
    %329 = vector.broadcast %328 : vector<8x1xf32> to vector<8x256xf32>
    %330 = arith.mulf %327, %329 : vector<8x256xf32>
    %331 = arith.addf %326, %330 : vector<8x256xf32>
    %c0_97 = arith.constant 0 : index
    %c349 = arith.constant 349 : index
    %332 = vector.load %arg18[%c0_97, %c349] : memref<8x768xf32, #tpu.memory_space<vmem>>, vector<8x256xf32>
    %333 = vector.extract_strided_slice %206 {offsets = [0, 37], sizes = [8, 1], strides = [1, 1]} : vector<8x49xf32> to vector<8x1xf32>
    %334 = vector.broadcast %333 : vector<8x1xf32> to vector<8x256xf32>
    %335 = arith.mulf %332, %334 : vector<8x256xf32>
    %336 = arith.addf %331, %335 : vector<8x256xf32>
    %c0_98 = arith.constant 0 : index
    %c397 = arith.constant 397 : index
    %337 = vector.load %arg18[%c0_98, %c397] : memref<8x768xf32, #tpu.memory_space<vmem>>, vector<8x256xf32>
    %338 = vector.extract_strided_slice %206 {offsets = [0, 44], sizes = [8, 1], strides = [1, 1]} : vector<8x49xf32> to vector<8x1xf32>
    %339 = vector.broadcast %338 : vector<8x1xf32> to vector<8x256xf32>
    %340 = arith.mulf %337, %339 : vector<8x256xf32>
    %341 = arith.addf %336, %340 : vector<8x256xf32>
    %c-3_i32 = arith.constant -3 : i32
    %342 = vector.broadcast %c-3_i32 : i32 to vector<1x256xi32>
    %343 = arith.addi %16, %342 : vector<1x256xi32>
    %c0_i32_99 = arith.constant 0 : i32
    %344 = vector.broadcast %c0_i32_99 : i32 to vector<1x256xi32>
    %345 = arith.cmpi sge, %343, %344 : vector<1x256xi32>
    %c-3_i32_100 = arith.constant -3 : i32
    %346 = vector.broadcast %c-3_i32_100 : i32 to vector<1x256xi32>
    %347 = arith.addi %16, %346 : vector<1x256xi32>
    %c16_i32_101 = arith.constant 16 : i32
    %348 = vector.broadcast %c16_i32_101 : i32 to vector<1x256xi32>
    %349 = arith.cmpi slt, %347, %348 : vector<1x256xi32>
    %350 = arith.andi %345, %349 : vector<1x256xi1>
    %cst_102 = arith.constant 0.000000e+00 : f32
    %351 = vector.shape_cast %350 : vector<1x256xi1> to vector<1x256xi1>
    %352 = vector.broadcast %351 : vector<1x256xi1> to vector<8x256xi1>
    %353 = vector.broadcast %cst_102 : f32 to vector<8x256xf32>
    %354 = arith.select %352, %341, %353 : vector<8x256xi1>, vector<8x256xf32>
    %355 = arith.addf %307, %354 : vector<8x256xf32>
    %c0_103 = arith.constant 0 : index
    %c112_104 = arith.constant 112 : index
    %356 = vector.load %arg18[%c0_103, %c112_104] : memref<8x768xf32, #tpu.memory_space<vmem>>, vector<8x256xf32>
    %357 = vector.extract_strided_slice %206 {offsets = [0, 3], sizes = [8, 1], strides = [1, 1]} : vector<8x49xf32> to vector<8x1xf32>
    %358 = vector.broadcast %357 : vector<8x1xf32> to vector<8x256xf32>
    %359 = arith.mulf %356, %358 : vector<8x256xf32>
    %c0_105 = arith.constant 0 : index
    %c160_106 = arith.constant 160 : index
    %360 = vector.load %arg18[%c0_105, %c160_106] : memref<8x768xf32, #tpu.memory_space<vmem>>, vector<8x256xf32>
    %361 = vector.extract_strided_slice %206 {offsets = [0, 10], sizes = [8, 1], strides = [1, 1]} : vector<8x49xf32> to vector<8x1xf32>
    %362 = vector.broadcast %361 : vector<8x1xf32> to vector<8x256xf32>
    %363 = arith.mulf %360, %362 : vector<8x256xf32>
    %364 = arith.addf %359, %363 : vector<8x256xf32>
    %c0_107 = arith.constant 0 : index
    %c208 = arith.constant 208 : index
    %365 = vector.load %arg18[%c0_107, %c208] : memref<8x768xf32, #tpu.memory_space<vmem>>, vector<8x256xf32>
    %366 = vector.extract_strided_slice %206 {offsets = [0, 17], sizes = [8, 1], strides = [1, 1]} : vector<8x49xf32> to vector<8x1xf32>
    %367 = vector.broadcast %366 : vector<8x1xf32> to vector<8x256xf32>
    %368 = arith.mulf %365, %367 : vector<8x256xf32>
    %369 = arith.addf %364, %368 : vector<8x256xf32>
    %c0_108 = arith.constant 0 : index
    %c256_109 = arith.constant 256 : index
    %370 = vector.load %arg18[%c0_108, %c256_109] : memref<8x768xf32, #tpu.memory_space<vmem>>, vector<8x256xf32>
    %371 = vector.extract_strided_slice %206 {offsets = [0, 24], sizes = [8, 1], strides = [1, 1]} : vector<8x49xf32> to vector<8x1xf32>
    %372 = vector.broadcast %371 : vector<8x1xf32> to vector<8x256xf32>
    %373 = arith.mulf %370, %372 : vector<8x256xf32>
    %374 = arith.addf %369, %373 : vector<8x256xf32>
    %c0_110 = arith.constant 0 : index
    %c304 = arith.constant 304 : index
    %375 = vector.load %arg18[%c0_110, %c304] : memref<8x768xf32, #tpu.memory_space<vmem>>, vector<8x256xf32>
    %376 = vector.extract_strided_slice %206 {offsets = [0, 31], sizes = [8, 1], strides = [1, 1]} : vector<8x49xf32> to vector<8x1xf32>
    %377 = vector.broadcast %376 : vector<8x1xf32> to vector<8x256xf32>
    %378 = arith.mulf %375, %377 : vector<8x256xf32>
    %379 = arith.addf %374, %378 : vector<8x256xf32>
    %c0_111 = arith.constant 0 : index
    %c352 = arith.constant 352 : index
    %380 = vector.load %arg18[%c0_111, %c352] : memref<8x768xf32, #tpu.memory_space<vmem>>, vector<8x256xf32>
    %381 = vector.extract_strided_slice %206 {offsets = [0, 38], sizes = [8, 1], strides = [1, 1]} : vector<8x49xf32> to vector<8x1xf32>
    %382 = vector.broadcast %381 : vector<8x1xf32> to vector<8x256xf32>
    %383 = arith.mulf %380, %382 : vector<8x256xf32>
    %384 = arith.addf %379, %383 : vector<8x256xf32>
    %c0_112 = arith.constant 0 : index
    %c400 = arith.constant 400 : index
    %385 = vector.load %arg18[%c0_112, %c400] : memref<8x768xf32, #tpu.memory_space<vmem>>, vector<8x256xf32>
    %386 = vector.extract_strided_slice %206 {offsets = [0, 45], sizes = [8, 1], strides = [1, 1]} : vector<8x49xf32> to vector<8x1xf32>
    %387 = vector.broadcast %386 : vector<8x1xf32> to vector<8x256xf32>
    %388 = arith.mulf %385, %387 : vector<8x256xf32>
    %389 = arith.addf %384, %388 : vector<8x256xf32>
    %390 = arith.addf %355, %389 : vector<8x256xf32>
    %c0_113 = arith.constant 0 : index
    %c115 = arith.constant 115 : index
    %391 = vector.load %arg18[%c0_113, %c115] : memref<8x768xf32, #tpu.memory_space<vmem>>, vector<8x256xf32>
    %392 = vector.extract_strided_slice %206 {offsets = [0, 4], sizes = [8, 1], strides = [1, 1]} : vector<8x49xf32> to vector<8x1xf32>
    %393 = vector.broadcast %392 : vector<8x1xf32> to vector<8x256xf32>
    %394 = arith.mulf %391, %393 : vector<8x256xf32>
    %c0_114 = arith.constant 0 : index
    %c163 = arith.constant 163 : index
    %395 = vector.load %arg18[%c0_114, %c163] : memref<8x768xf32, #tpu.memory_space<vmem>>, vector<8x256xf32>
    %396 = vector.extract_strided_slice %206 {offsets = [0, 11], sizes = [8, 1], strides = [1, 1]} : vector<8x49xf32> to vector<8x1xf32>
    %397 = vector.broadcast %396 : vector<8x1xf32> to vector<8x256xf32>
    %398 = arith.mulf %395, %397 : vector<8x256xf32>
    %399 = arith.addf %394, %398 : vector<8x256xf32>
    %c0_115 = arith.constant 0 : index
    %c211 = arith.constant 211 : index
    %400 = vector.load %arg18[%c0_115, %c211] : memref<8x768xf32, #tpu.memory_space<vmem>>, vector<8x256xf32>
    %401 = vector.extract_strided_slice %206 {offsets = [0, 18], sizes = [8, 1], strides = [1, 1]} : vector<8x49xf32> to vector<8x1xf32>
    %402 = vector.broadcast %401 : vector<8x1xf32> to vector<8x256xf32>
    %403 = arith.mulf %400, %402 : vector<8x256xf32>
    %404 = arith.addf %399, %403 : vector<8x256xf32>
    %c0_116 = arith.constant 0 : index
    %c259 = arith.constant 259 : index
    %405 = vector.load %arg18[%c0_116, %c259] : memref<8x768xf32, #tpu.memory_space<vmem>>, vector<8x256xf32>
    %406 = vector.extract_strided_slice %206 {offsets = [0, 25], sizes = [8, 1], strides = [1, 1]} : vector<8x49xf32> to vector<8x1xf32>
    %407 = vector.broadcast %406 : vector<8x1xf32> to vector<8x256xf32>
    %408 = arith.mulf %405, %407 : vector<8x256xf32>
    %409 = arith.addf %404, %408 : vector<8x256xf32>
    %c0_117 = arith.constant 0 : index
    %c307 = arith.constant 307 : index
    %410 = vector.load %arg18[%c0_117, %c307] : memref<8x768xf32, #tpu.memory_space<vmem>>, vector<8x256xf32>
    %411 = vector.extract_strided_slice %206 {offsets = [0, 32], sizes = [8, 1], strides = [1, 1]} : vector<8x49xf32> to vector<8x1xf32>
    %412 = vector.broadcast %411 : vector<8x1xf32> to vector<8x256xf32>
    %413 = arith.mulf %410, %412 : vector<8x256xf32>
    %414 = arith.addf %409, %413 : vector<8x256xf32>
    %c0_118 = arith.constant 0 : index
    %c355 = arith.constant 355 : index
    %415 = vector.load %arg18[%c0_118, %c355] : memref<8x768xf32, #tpu.memory_space<vmem>>, vector<8x256xf32>
    %416 = vector.extract_strided_slice %206 {offsets = [0, 39], sizes = [8, 1], strides = [1, 1]} : vector<8x49xf32> to vector<8x1xf32>
    %417 = vector.broadcast %416 : vector<8x1xf32> to vector<8x256xf32>
    %418 = arith.mulf %415, %417 : vector<8x256xf32>
    %419 = arith.addf %414, %418 : vector<8x256xf32>
    %c0_119 = arith.constant 0 : index
    %c403 = arith.constant 403 : index
    %420 = vector.load %arg18[%c0_119, %c403] : memref<8x768xf32, #tpu.memory_space<vmem>>, vector<8x256xf32>
    %421 = vector.extract_strided_slice %206 {offsets = [0, 46], sizes = [8, 1], strides = [1, 1]} : vector<8x49xf32> to vector<8x1xf32>
    %422 = vector.broadcast %421 : vector<8x1xf32> to vector<8x256xf32>
    %423 = arith.mulf %420, %422 : vector<8x256xf32>
    %424 = arith.addf %419, %423 : vector<8x256xf32>
    %c3_i32 = arith.constant 3 : i32
    %425 = vector.broadcast %c3_i32 : i32 to vector<1x256xi32>
    %426 = arith.addi %16, %425 : vector<1x256xi32>
    %c0_i32_120 = arith.constant 0 : i32
    %427 = vector.broadcast %c0_i32_120 : i32 to vector<1x256xi32>
    %428 = arith.cmpi sge, %426, %427 : vector<1x256xi32>
    %c3_i32_121 = arith.constant 3 : i32
    %429 = vector.broadcast %c3_i32_121 : i32 to vector<1x256xi32>
    %430 = arith.addi %16, %429 : vector<1x256xi32>
    %c16_i32_122 = arith.constant 16 : i32
    %431 = vector.broadcast %c16_i32_122 : i32 to vector<1x256xi32>
    %432 = arith.cmpi slt, %430, %431 : vector<1x256xi32>
    %433 = arith.andi %428, %432 : vector<1x256xi1>
    %cst_123 = arith.constant 0.000000e+00 : f32
    %434 = vector.shape_cast %433 : vector<1x256xi1> to vector<1x256xi1>
    %435 = vector.broadcast %434 : vector<1x256xi1> to vector<8x256xi1>
    %436 = vector.broadcast %cst_123 : f32 to vector<8x256xf32>
    %437 = arith.select %435, %424, %436 : vector<8x256xi1>, vector<8x256xf32>
    %438 = arith.addf %390, %437 : vector<8x256xf32>
    %c0_124 = arith.constant 0 : index
    %c118 = arith.constant 118 : index
    %439 = vector.load %arg18[%c0_124, %c118] : memref<8x768xf32, #tpu.memory_space<vmem>>, vector<8x256xf32>
    %440 = vector.extract_strided_slice %206 {offsets = [0, 5], sizes = [8, 1], strides = [1, 1]} : vector<8x49xf32> to vector<8x1xf32>
    %441 = vector.broadcast %440 : vector<8x1xf32> to vector<8x256xf32>
    %442 = arith.mulf %439, %441 : vector<8x256xf32>
    %c0_125 = arith.constant 0 : index
    %c166 = arith.constant 166 : index
    %443 = vector.load %arg18[%c0_125, %c166] : memref<8x768xf32, #tpu.memory_space<vmem>>, vector<8x256xf32>
    %444 = vector.extract_strided_slice %206 {offsets = [0, 12], sizes = [8, 1], strides = [1, 1]} : vector<8x49xf32> to vector<8x1xf32>
    %445 = vector.broadcast %444 : vector<8x1xf32> to vector<8x256xf32>
    %446 = arith.mulf %443, %445 : vector<8x256xf32>
    %447 = arith.addf %442, %446 : vector<8x256xf32>
    %c0_126 = arith.constant 0 : index
    %c214 = arith.constant 214 : index
    %448 = vector.load %arg18[%c0_126, %c214] : memref<8x768xf32, #tpu.memory_space<vmem>>, vector<8x256xf32>
    %449 = vector.extract_strided_slice %206 {offsets = [0, 19], sizes = [8, 1], strides = [1, 1]} : vector<8x49xf32> to vector<8x1xf32>
    %450 = vector.broadcast %449 : vector<8x1xf32> to vector<8x256xf32>
    %451 = arith.mulf %448, %450 : vector<8x256xf32>
    %452 = arith.addf %447, %451 : vector<8x256xf32>
    %c0_127 = arith.constant 0 : index
    %c262 = arith.constant 262 : index
    %453 = vector.load %arg18[%c0_127, %c262] : memref<8x768xf32, #tpu.memory_space<vmem>>, vector<8x256xf32>
    %454 = vector.extract_strided_slice %206 {offsets = [0, 26], sizes = [8, 1], strides = [1, 1]} : vector<8x49xf32> to vector<8x1xf32>
    %455 = vector.broadcast %454 : vector<8x1xf32> to vector<8x256xf32>
    %456 = arith.mulf %453, %455 : vector<8x256xf32>
    %457 = arith.addf %452, %456 : vector<8x256xf32>
    %c0_128 = arith.constant 0 : index
    %c310 = arith.constant 310 : index
    %458 = vector.load %arg18[%c0_128, %c310] : memref<8x768xf32, #tpu.memory_space<vmem>>, vector<8x256xf32>
    %459 = vector.extract_strided_slice %206 {offsets = [0, 33], sizes = [8, 1], strides = [1, 1]} : vector<8x49xf32> to vector<8x1xf32>
    %460 = vector.broadcast %459 : vector<8x1xf32> to vector<8x256xf32>
    %461 = arith.mulf %458, %460 : vector<8x256xf32>
    %462 = arith.addf %457, %461 : vector<8x256xf32>
    %c0_129 = arith.constant 0 : index
    %c358 = arith.constant 358 : index
    %463 = vector.load %arg18[%c0_129, %c358] : memref<8x768xf32, #tpu.memory_space<vmem>>, vector<8x256xf32>
    %464 = vector.extract_strided_slice %206 {offsets = [0, 40], sizes = [8, 1], strides = [1, 1]} : vector<8x49xf32> to vector<8x1xf32>
    %465 = vector.broadcast %464 : vector<8x1xf32> to vector<8x256xf32>
    %466 = arith.mulf %463, %465 : vector<8x256xf32>
    %467 = arith.addf %462, %466 : vector<8x256xf32>
    %c0_130 = arith.constant 0 : index
    %c406 = arith.constant 406 : index
    %468 = vector.load %arg18[%c0_130, %c406] : memref<8x768xf32, #tpu.memory_space<vmem>>, vector<8x256xf32>
    %469 = vector.extract_strided_slice %206 {offsets = [0, 47], sizes = [8, 1], strides = [1, 1]} : vector<8x49xf32> to vector<8x1xf32>
    %470 = vector.broadcast %469 : vector<8x1xf32> to vector<8x256xf32>
    %471 = arith.mulf %468, %470 : vector<8x256xf32>
    %472 = arith.addf %467, %471 : vector<8x256xf32>
    %c6_i32 = arith.constant 6 : i32
    %473 = vector.broadcast %c6_i32 : i32 to vector<1x256xi32>
    %474 = arith.addi %16, %473 : vector<1x256xi32>
    %c0_i32_131 = arith.constant 0 : i32
    %475 = vector.broadcast %c0_i32_131 : i32 to vector<1x256xi32>
    %476 = arith.cmpi sge, %474, %475 : vector<1x256xi32>
    %c6_i32_132 = arith.constant 6 : i32
    %477 = vector.broadcast %c6_i32_132 : i32 to vector<1x256xi32>
    %478 = arith.addi %16, %477 : vector<1x256xi32>
    %c16_i32_133 = arith.constant 16 : i32
    %479 = vector.broadcast %c16_i32_133 : i32 to vector<1x256xi32>
    %480 = arith.cmpi slt, %478, %479 : vector<1x256xi32>
    %481 = arith.andi %476, %480 : vector<1x256xi1>
    %cst_134 = arith.constant 0.000000e+00 : f32
    %482 = vector.shape_cast %481 : vector<1x256xi1> to vector<1x256xi1>
    %483 = vector.broadcast %482 : vector<1x256xi1> to vector<8x256xi1>
    %484 = vector.broadcast %cst_134 : f32 to vector<8x256xf32>
    %485 = arith.select %483, %472, %484 : vector<8x256xi1>, vector<8x256xf32>
    %486 = arith.addf %438, %485 : vector<8x256xf32>
    %c0_135 = arith.constant 0 : index
    %c121 = arith.constant 121 : index
    %487 = vector.load %arg18[%c0_135, %c121] : memref<8x768xf32, #tpu.memory_space<vmem>>, vector<8x256xf32>
    %488 = vector.extract_strided_slice %206 {offsets = [0, 6], sizes = [8, 1], strides = [1, 1]} : vector<8x49xf32> to vector<8x1xf32>
    %489 = vector.broadcast %488 : vector<8x1xf32> to vector<8x256xf32>
    %490 = arith.mulf %487, %489 : vector<8x256xf32>
    %c0_136 = arith.constant 0 : index
    %c169 = arith.constant 169 : index
    %491 = vector.load %arg18[%c0_136, %c169] : memref<8x768xf32, #tpu.memory_space<vmem>>, vector<8x256xf32>
    %492 = vector.extract_strided_slice %206 {offsets = [0, 13], sizes = [8, 1], strides = [1, 1]} : vector<8x49xf32> to vector<8x1xf32>
    %493 = vector.broadcast %492 : vector<8x1xf32> to vector<8x256xf32>
    %494 = arith.mulf %491, %493 : vector<8x256xf32>
    %495 = arith.addf %490, %494 : vector<8x256xf32>
    %c0_137 = arith.constant 0 : index
    %c217 = arith.constant 217 : index
    %496 = vector.load %arg18[%c0_137, %c217] : memref<8x768xf32, #tpu.memory_space<vmem>>, vector<8x256xf32>
    %497 = vector.extract_strided_slice %206 {offsets = [0, 20], sizes = [8, 1], strides = [1, 1]} : vector<8x49xf32> to vector<8x1xf32>
    %498 = vector.broadcast %497 : vector<8x1xf32> to vector<8x256xf32>
    %499 = arith.mulf %496, %498 : vector<8x256xf32>
    %500 = arith.addf %495, %499 : vector<8x256xf32>
    %c0_138 = arith.constant 0 : index
    %c265 = arith.constant 265 : index
    %501 = vector.load %arg18[%c0_138, %c265] : memref<8x768xf32, #tpu.memory_space<vmem>>, vector<8x256xf32>
    %502 = vector.extract_strided_slice %206 {offsets = [0, 27], sizes = [8, 1], strides = [1, 1]} : vector<8x49xf32> to vector<8x1xf32>
    %503 = vector.broadcast %502 : vector<8x1xf32> to vector<8x256xf32>
    %504 = arith.mulf %501, %503 : vector<8x256xf32>
    %505 = arith.addf %500, %504 : vector<8x256xf32>
    %c0_139 = arith.constant 0 : index
    %c313 = arith.constant 313 : index
    %506 = vector.load %arg18[%c0_139, %c313] : memref<8x768xf32, #tpu.memory_space<vmem>>, vector<8x256xf32>
    %507 = vector.extract_strided_slice %206 {offsets = [0, 34], sizes = [8, 1], strides = [1, 1]} : vector<8x49xf32> to vector<8x1xf32>
    %508 = vector.broadcast %507 : vector<8x1xf32> to vector<8x256xf32>
    %509 = arith.mulf %506, %508 : vector<8x256xf32>
    %510 = arith.addf %505, %509 : vector<8x256xf32>
    %c0_140 = arith.constant 0 : index
    %c361 = arith.constant 361 : index
    %511 = vector.load %arg18[%c0_140, %c361] : memref<8x768xf32, #tpu.memory_space<vmem>>, vector<8x256xf32>
    %512 = vector.extract_strided_slice %206 {offsets = [0, 41], sizes = [8, 1], strides = [1, 1]} : vector<8x49xf32> to vector<8x1xf32>
    %513 = vector.broadcast %512 : vector<8x1xf32> to vector<8x256xf32>
    %514 = arith.mulf %511, %513 : vector<8x256xf32>
    %515 = arith.addf %510, %514 : vector<8x256xf32>
    %c0_141 = arith.constant 0 : index
    %c409 = arith.constant 409 : index
    %516 = vector.load %arg18[%c0_141, %c409] : memref<8x768xf32, #tpu.memory_space<vmem>>, vector<8x256xf32>
    %517 = vector.extract_strided_slice %206 {offsets = [0, 48], sizes = [8, 1], strides = [1, 1]} : vector<8x49xf32> to vector<8x1xf32>
    %518 = vector.broadcast %517 : vector<8x1xf32> to vector<8x256xf32>
    %519 = arith.mulf %516, %518 : vector<8x256xf32>
    %520 = arith.addf %515, %519 : vector<8x256xf32>
    %c9_i32 = arith.constant 9 : i32
    %521 = vector.broadcast %c9_i32 : i32 to vector<1x256xi32>
    %522 = arith.addi %16, %521 : vector<1x256xi32>
    %c0_i32_142 = arith.constant 0 : i32
    %523 = vector.broadcast %c0_i32_142 : i32 to vector<1x256xi32>
    %524 = arith.cmpi sge, %522, %523 : vector<1x256xi32>
    %c9_i32_143 = arith.constant 9 : i32
    %525 = vector.broadcast %c9_i32_143 : i32 to vector<1x256xi32>
    %526 = arith.addi %16, %525 : vector<1x256xi32>
    %c16_i32_144 = arith.constant 16 : i32
    %527 = vector.broadcast %c16_i32_144 : i32 to vector<1x256xi32>
    %528 = arith.cmpi slt, %526, %527 : vector<1x256xi32>
    %529 = arith.andi %524, %528 : vector<1x256xi1>
    %cst_145 = arith.constant 0.000000e+00 : f32
    %530 = vector.shape_cast %529 : vector<1x256xi1> to vector<1x256xi1>
    %531 = vector.broadcast %530 : vector<1x256xi1> to vector<8x256xi1>
    %532 = vector.broadcast %cst_145 : f32 to vector<8x256xf32>
    %533 = arith.select %531, %520, %532 : vector<8x256xi1>, vector<8x256xf32>
    %534 = arith.addf %486, %533 : vector<8x256xf32>
    %535 = vector.broadcast %207 : vector<8x1xf32> to vector<8x256xf32>
    %536 = arith.addf %534, %535 : vector<8x256xf32>
    %c0_146 = arith.constant 0 : index
    %c0_147 = arith.constant 0 : index
    %537 = vector.load %arg9[%c0_146, %c0_147] : memref<4x8xbf16, #tpu.memory_space<vmem>>, vector<4x8xbf16>
    %538 = arith.truncf %205 : vector<8x256xf32> to vector<8x256xbf16>
    %cst_148 = arith.constant dense<0.000000e+00> : vector<4x256xf32>
    %539 = tpu.matmul %537, %538, %cst_148 {dimension_numbers = #tpu.dot_dimension_numbers<[1], [0], [0], [1], [0, 0, 1, 1], [], []>} : vector<4x8xbf16>, vector<8x256xbf16>, vector<4x256xf32> -> vector<4x256xf32>
    %c0_149 = arith.constant 0 : index
    %c0_150 = arith.constant 0 : index
    %540 = vector.load %arg10[%c0_149, %c0_150] : memref<4x1xf32, #tpu.memory_space<vmem>>, vector<4x1xf32>
    %541 = vector.broadcast %540 : vector<4x1xf32> to vector<4x256xf32>
    %542 = arith.addf %539, %541 : vector<4x256xf32>
    %c0_151 = arith.constant 0 : index
    %c0_152 = arith.constant 0 : index
    %543 = vector.load %arg11[%c0_151, %c0_152] : memref<4x8xbf16, #tpu.memory_space<vmem>>, vector<4x8xbf16>
    %544 = arith.truncf %536 : vector<8x256xf32> to vector<8x256xbf16>
    %cst_153 = arith.constant dense<0.000000e+00> : vector<4x256xf32>
    %545 = tpu.matmul %543, %544, %cst_153 {dimension_numbers = #tpu.dot_dimension_numbers<[1], [0], [0], [1], [0, 0, 1, 1], [], []>} : vector<4x8xbf16>, vector<8x256xbf16>, vector<4x256xf32> -> vector<4x256xf32>
    %c0_154 = arith.constant 0 : index
    %c0_155 = arith.constant 0 : index
    %546 = vector.load %arg12[%c0_154, %c0_155] : memref<4x1xf32, #tpu.memory_space<vmem>>, vector<4x1xf32>
    %547 = vector.broadcast %546 : vector<4x1xf32> to vector<4x256xf32>
    %548 = arith.addf %545, %547 : vector<4x256xf32>
    %549 = tpu.concatenate %18, %542, %548 in 0 : vector<4x256xf32>, vector<4x256xf32>, vector<4x256xf32> -> vector<12x256xf32>
    %550 = vector.shape_cast %549 : vector<12x256xf32> to vector<2x6x256xf32>
    %551 = tpu.transpose %550, [1, 0, 2] : vector<2x6x256xf32> -> vector<6x2x256xf32>
    %552 = vector.shape_cast %551 : vector<6x2x256xf32> to vector<12x256xf32>
    %c0_156 = arith.constant 0 : index
    %c0_157 = arith.constant 0 : index
    %c0_158 = arith.constant 0 : index
    %c0_159 = arith.constant 0 : index
    %553 = vector.load %arg3[%c0_156, %c0_157, %c0_158, %c0_159] : memref<1x8x8x8xf32, #tpu.memory_space<vmem>>, vector<1x8x8x8xf32>
    %554 = vector.shape_cast %553 : vector<1x8x8x8xf32> to vector<8x8x8xf32>
    %555 = vector.shape_cast %554 : vector<8x8x8xf32> to vector<64x8xf32>
    %c0_160 = arith.constant 0 : index
    %c0_161 = arith.constant 0 : index
    %556 = vector.load %arg4[%c0_160, %c0_161] : memref<8x16xf32, #tpu.memory_space<vmem>>, vector<8x16xf32>
    %cst_162 = arith.constant dense<0.000000e+00> : vector<64x16xf32>
    %557 = tpu.matmul %555, %556, %cst_162 {dimension_numbers = #tpu.dot_dimension_numbers<[1], [0], [0], [1], [0, 0, 1, 1], [], []>} : vector<64x8xf32>, vector<8x16xf32>, vector<64x16xf32> -> vector<64x16xf32>
    %558 = vector.shape_cast %557 : vector<64x16xf32> to vector<8x8x16xf32>
    %559 = vector.extract_strided_slice %558 {offsets = [0, 0, 0], sizes = [1, 8, 16], strides = [1, 1, 1]} : vector<8x8x16xf32> to vector<1x8x16xf32>
    %560 = vector.shape_cast %559 : vector<1x8x16xf32> to vector<8x16xf32>
    %561 = vector.extract_strided_slice %558 {offsets = [0, 0, 0], sizes = [1, 8, 16], strides = [1, 1, 1]} : vector<8x8x16xf32> to vector<1x8x16xf32>
    %562 = vector.shape_cast %561 : vector<1x8x16xf32> to vector<8x16xf32>
    %cst_163 = arith.constant 0.533333361 : f32
    %563 = vector.broadcast %cst_163 : f32 to vector<8x16xf32>
    %564 = arith.mulf %562, %563 : vector<8x16xf32>
    %565 = vector.extract_strided_slice %558 {offsets = [1, 0, 0], sizes = [1, 8, 16], strides = [1, 1, 1]} : vector<8x8x16xf32> to vector<1x8x16xf32>
    %566 = vector.shape_cast %565 : vector<1x8x16xf32> to vector<8x16xf32>
    %cst_164 = arith.constant 0.466666669 : f32
    %567 = vector.broadcast %cst_164 : f32 to vector<8x16xf32>
    %568 = arith.mulf %566, %567 : vector<8x16xf32>
    %569 = arith.addf %564, %568 : vector<8x16xf32>
    %570 = vector.extract_strided_slice %558 {offsets = [0, 0, 0], sizes = [1, 8, 16], strides = [1, 1, 1]} : vector<8x8x16xf32> to vector<1x8x16xf32>
    %571 = vector.shape_cast %570 : vector<1x8x16xf32> to vector<8x16xf32>
    %cst_165 = arith.constant 0.0666666701 : f32
    %572 = vector.broadcast %cst_165 : f32 to vector<8x16xf32>
    %573 = arith.mulf %571, %572 : vector<8x16xf32>
    %574 = vector.extract_strided_slice %558 {offsets = [1, 0, 0], sizes = [1, 8, 16], strides = [1, 1, 1]} : vector<8x8x16xf32> to vector<1x8x16xf32>
    %575 = vector.shape_cast %574 : vector<1x8x16xf32> to vector<8x16xf32>
    %cst_166 = arith.constant 0.933333337 : f32
    %576 = vector.broadcast %cst_166 : f32 to vector<8x16xf32>
    %577 = arith.mulf %575, %576 : vector<8x16xf32>
    %578 = arith.addf %573, %577 : vector<8x16xf32>
    %579 = vector.extract_strided_slice %558 {offsets = [1, 0, 0], sizes = [1, 8, 16], strides = [1, 1, 1]} : vector<8x8x16xf32> to vector<1x8x16xf32>
    %580 = vector.shape_cast %579 : vector<1x8x16xf32> to vector<8x16xf32>
    %cst_167 = arith.constant 6.000000e-01 : f32
    %581 = vector.broadcast %cst_167 : f32 to vector<8x16xf32>
    %582 = arith.mulf %580, %581 : vector<8x16xf32>
    %583 = vector.extract_strided_slice %558 {offsets = [2, 0, 0], sizes = [1, 8, 16], strides = [1, 1, 1]} : vector<8x8x16xf32> to vector<1x8x16xf32>
    %584 = vector.shape_cast %583 : vector<1x8x16xf32> to vector<8x16xf32>
    %cst_168 = arith.constant 4.000000e-01 : f32
    %585 = vector.broadcast %cst_168 : f32 to vector<8x16xf32>
    %586 = arith.mulf %584, %585 : vector<8x16xf32>
    %587 = arith.addf %582, %586 : vector<8x16xf32>
    %588 = vector.extract_strided_slice %558 {offsets = [1, 0, 0], sizes = [1, 8, 16], strides = [1, 1, 1]} : vector<8x8x16xf32> to vector<1x8x16xf32>
    %589 = vector.shape_cast %588 : vector<1x8x16xf32> to vector<8x16xf32>
    %cst_169 = arith.constant 0.13333334 : f32
    %590 = vector.broadcast %cst_169 : f32 to vector<8x16xf32>
    %591 = arith.mulf %589, %590 : vector<8x16xf32>
    %592 = vector.extract_strided_slice %558 {offsets = [2, 0, 0], sizes = [1, 8, 16], strides = [1, 1, 1]} : vector<8x8x16xf32> to vector<1x8x16xf32>
    %593 = vector.shape_cast %592 : vector<1x8x16xf32> to vector<8x16xf32>
    %cst_170 = arith.constant 0.866666674 : f32
    %594 = vector.broadcast %cst_170 : f32 to vector<8x16xf32>
    %595 = arith.mulf %593, %594 : vector<8x16xf32>
    %596 = arith.addf %591, %595 : vector<8x16xf32>
    %597 = vector.extract_strided_slice %558 {offsets = [2, 0, 0], sizes = [1, 8, 16], strides = [1, 1, 1]} : vector<8x8x16xf32> to vector<1x8x16xf32>
    %598 = vector.shape_cast %597 : vector<1x8x16xf32> to vector<8x16xf32>
    %cst_171 = arith.constant 0.666666686 : f32
    %599 = vector.broadcast %cst_171 : f32 to vector<8x16xf32>
    %600 = arith.mulf %598, %599 : vector<8x16xf32>
    %601 = vector.extract_strided_slice %558 {offsets = [3, 0, 0], sizes = [1, 8, 16], strides = [1, 1, 1]} : vector<8x8x16xf32> to vector<1x8x16xf32>
    %602 = vector.shape_cast %601 : vector<1x8x16xf32> to vector<8x16xf32>
    %cst_172 = arith.constant 0.333333343 : f32
    %603 = vector.broadcast %cst_172 : f32 to vector<8x16xf32>
    %604 = arith.mulf %602, %603 : vector<8x16xf32>
    %605 = arith.addf %600, %604 : vector<8x16xf32>
    %606 = vector.extract_strided_slice %558 {offsets = [2, 0, 0], sizes = [1, 8, 16], strides = [1, 1, 1]} : vector<8x8x16xf32> to vector<1x8x16xf32>
    %607 = vector.shape_cast %606 : vector<1x8x16xf32> to vector<8x16xf32>
    %cst_173 = arith.constant 2.000000e-01 : f32
    %608 = vector.broadcast %cst_173 : f32 to vector<8x16xf32>
    %609 = arith.mulf %607, %608 : vector<8x16xf32>
    %610 = vector.extract_strided_slice %558 {offsets = [3, 0, 0], sizes = [1, 8, 16], strides = [1, 1, 1]} : vector<8x8x16xf32> to vector<1x8x16xf32>
    %611 = vector.shape_cast %610 : vector<1x8x16xf32> to vector<8x16xf32>
    %cst_174 = arith.constant 8.000000e-01 : f32
    %612 = vector.broadcast %cst_174 : f32 to vector<8x16xf32>
    %613 = arith.mulf %611, %612 : vector<8x16xf32>
    %614 = arith.addf %609, %613 : vector<8x16xf32>
    %615 = vector.extract_strided_slice %558 {offsets = [3, 0, 0], sizes = [1, 8, 16], strides = [1, 1, 1]} : vector<8x8x16xf32> to vector<1x8x16xf32>
    %616 = vector.shape_cast %615 : vector<1x8x16xf32> to vector<8x16xf32>
    %cst_175 = arith.constant 0.733333349 : f32
    %617 = vector.broadcast %cst_175 : f32 to vector<8x16xf32>
    %618 = arith.mulf %616, %617 : vector<8x16xf32>
    %619 = vector.extract_strided_slice %558 {offsets = [4, 0, 0], sizes = [1, 8, 16], strides = [1, 1, 1]} : vector<8x8x16xf32> to vector<1x8x16xf32>
    %620 = vector.shape_cast %619 : vector<1x8x16xf32> to vector<8x16xf32>
    %cst_176 = arith.constant 0.266666681 : f32
    %621 = vector.broadcast %cst_176 : f32 to vector<8x16xf32>
    %622 = arith.mulf %620, %621 : vector<8x16xf32>
    %623 = arith.addf %618, %622 : vector<8x16xf32>
    %624 = vector.extract_strided_slice %558 {offsets = [3, 0, 0], sizes = [1, 8, 16], strides = [1, 1, 1]} : vector<8x8x16xf32> to vector<1x8x16xf32>
    %625 = vector.shape_cast %624 : vector<1x8x16xf32> to vector<8x16xf32>
    %cst_177 = arith.constant 0.266666681 : f32
    %626 = vector.broadcast %cst_177 : f32 to vector<8x16xf32>
    %627 = arith.mulf %625, %626 : vector<8x16xf32>
    %628 = vector.extract_strided_slice %558 {offsets = [4, 0, 0], sizes = [1, 8, 16], strides = [1, 1, 1]} : vector<8x8x16xf32> to vector<1x8x16xf32>
    %629 = vector.shape_cast %628 : vector<1x8x16xf32> to vector<8x16xf32>
    %cst_178 = arith.constant 0.733333349 : f32
    %630 = vector.broadcast %cst_178 : f32 to vector<8x16xf32>
    %631 = arith.mulf %629, %630 : vector<8x16xf32>
    %632 = arith.addf %627, %631 : vector<8x16xf32>
    %633 = vector.extract_strided_slice %558 {offsets = [4, 0, 0], sizes = [1, 8, 16], strides = [1, 1, 1]} : vector<8x8x16xf32> to vector<1x8x16xf32>
    %634 = vector.shape_cast %633 : vector<1x8x16xf32> to vector<8x16xf32>
    %cst_179 = arith.constant 8.000000e-01 : f32
    %635 = vector.broadcast %cst_179 : f32 to vector<8x16xf32>
    %636 = arith.mulf %634, %635 : vector<8x16xf32>
    %637 = vector.extract_strided_slice %558 {offsets = [5, 0, 0], sizes = [1, 8, 16], strides = [1, 1, 1]} : vector<8x8x16xf32> to vector<1x8x16xf32>
    %638 = vector.shape_cast %637 : vector<1x8x16xf32> to vector<8x16xf32>
    %cst_180 = arith.constant 2.000000e-01 : f32
    %639 = vector.broadcast %cst_180 : f32 to vector<8x16xf32>
    %640 = arith.mulf %638, %639 : vector<8x16xf32>
    %641 = arith.addf %636, %640 : vector<8x16xf32>
    %642 = vector.extract_strided_slice %558 {offsets = [4, 0, 0], sizes = [1, 8, 16], strides = [1, 1, 1]} : vector<8x8x16xf32> to vector<1x8x16xf32>
    %643 = vector.shape_cast %642 : vector<1x8x16xf32> to vector<8x16xf32>
    %cst_181 = arith.constant 0.333333343 : f32
    %644 = vector.broadcast %cst_181 : f32 to vector<8x16xf32>
    %645 = arith.mulf %643, %644 : vector<8x16xf32>
    %646 = vector.extract_strided_slice %558 {offsets = [5, 0, 0], sizes = [1, 8, 16], strides = [1, 1, 1]} : vector<8x8x16xf32> to vector<1x8x16xf32>
    %647 = vector.shape_cast %646 : vector<1x8x16xf32> to vector<8x16xf32>
    %cst_182 = arith.constant 0.666666686 : f32
    %648 = vector.broadcast %cst_182 : f32 to vector<8x16xf32>
    %649 = arith.mulf %647, %648 : vector<8x16xf32>
    %650 = arith.addf %645, %649 : vector<8x16xf32>
    %651 = vector.extract_strided_slice %558 {offsets = [5, 0, 0], sizes = [1, 8, 16], strides = [1, 1, 1]} : vector<8x8x16xf32> to vector<1x8x16xf32>
    %652 = vector.shape_cast %651 : vector<1x8x16xf32> to vector<8x16xf32>
    %cst_183 = arith.constant 0.866666674 : f32
    %653 = vector.broadcast %cst_183 : f32 to vector<8x16xf32>
    %654 = arith.mulf %652, %653 : vector<8x16xf32>
    %655 = vector.extract_strided_slice %558 {offsets = [6, 0, 0], sizes = [1, 8, 16], strides = [1, 1, 1]} : vector<8x8x16xf32> to vector<1x8x16xf32>
    %656 = vector.shape_cast %655 : vector<1x8x16xf32> to vector<8x16xf32>
    %cst_184 = arith.constant 0.13333334 : f32
    %657 = vector.broadcast %cst_184 : f32 to vector<8x16xf32>
    %658 = arith.mulf %656, %657 : vector<8x16xf32>
    %659 = arith.addf %654, %658 : vector<8x16xf32>
    %660 = vector.extract_strided_slice %558 {offsets = [5, 0, 0], sizes = [1, 8, 16], strides = [1, 1, 1]} : vector<8x8x16xf32> to vector<1x8x16xf32>
    %661 = vector.shape_cast %660 : vector<1x8x16xf32> to vector<8x16xf32>
    %cst_185 = arith.constant 4.000000e-01 : f32
    %662 = vector.broadcast %cst_185 : f32 to vector<8x16xf32>
    %663 = arith.mulf %661, %662 : vector<8x16xf32>
    %664 = vector.extract_strided_slice %558 {offsets = [6, 0, 0], sizes = [1, 8, 16], strides = [1, 1, 1]} : vector<8x8x16xf32> to vector<1x8x16xf32>
    %665 = vector.shape_cast %664 : vector<1x8x16xf32> to vector<8x16xf32>
    %cst_186 = arith.constant 6.000000e-01 : f32
    %666 = vector.broadcast %cst_186 : f32 to vector<8x16xf32>
    %667 = arith.mulf %665, %666 : vector<8x16xf32>
    %668 = arith.addf %663, %667 : vector<8x16xf32>
    %669 = vector.extract_strided_slice %558 {offsets = [6, 0, 0], sizes = [1, 8, 16], strides = [1, 1, 1]} : vector<8x8x16xf32> to vector<1x8x16xf32>
    %670 = vector.shape_cast %669 : vector<1x8x16xf32> to vector<8x16xf32>
    %cst_187 = arith.constant 0.933333337 : f32
    %671 = vector.broadcast %cst_187 : f32 to vector<8x16xf32>
    %672 = arith.mulf %670, %671 : vector<8x16xf32>
    %673 = vector.extract_strided_slice %558 {offsets = [7, 0, 0], sizes = [1, 8, 16], strides = [1, 1, 1]} : vector<8x8x16xf32> to vector<1x8x16xf32>
    %674 = vector.shape_cast %673 : vector<1x8x16xf32> to vector<8x16xf32>
    %cst_188 = arith.constant 0.0666666701 : f32
    %675 = vector.broadcast %cst_188 : f32 to vector<8x16xf32>
    %676 = arith.mulf %674, %675 : vector<8x16xf32>
    %677 = arith.addf %672, %676 : vector<8x16xf32>
    %678 = vector.extract_strided_slice %558 {offsets = [6, 0, 0], sizes = [1, 8, 16], strides = [1, 1, 1]} : vector<8x8x16xf32> to vector<1x8x16xf32>
    %679 = vector.shape_cast %678 : vector<1x8x16xf32> to vector<8x16xf32>
    %cst_189 = arith.constant 0.466666669 : f32
    %680 = vector.broadcast %cst_189 : f32 to vector<8x16xf32>
    %681 = arith.mulf %679, %680 : vector<8x16xf32>
    %682 = vector.extract_strided_slice %558 {offsets = [7, 0, 0], sizes = [1, 8, 16], strides = [1, 1, 1]} : vector<8x8x16xf32> to vector<1x8x16xf32>
    %683 = vector.shape_cast %682 : vector<1x8x16xf32> to vector<8x16xf32>
    %cst_190 = arith.constant 0.533333361 : f32
    %684 = vector.broadcast %cst_190 : f32 to vector<8x16xf32>
    %685 = arith.mulf %683, %684 : vector<8x16xf32>
    %686 = arith.addf %681, %685 : vector<8x16xf32>
    %687 = vector.extract_strided_slice %558 {offsets = [7, 0, 0], sizes = [1, 8, 16], strides = [1, 1, 1]} : vector<8x8x16xf32> to vector<1x8x16xf32>
    %688 = vector.shape_cast %687 : vector<1x8x16xf32> to vector<8x16xf32>
    %689 = tpu.concatenate %560, %569, %578, %587, %596, %605, %614, %623, %632, %641, %650, %659, %668, %677, %686, %688 in 1 : vector<8x16xf32>, vector<8x16xf32>, vector<8x16xf32>, vector<8x16xf32>, vector<8x16xf32>, vector<8x16xf32>, vector<8x16xf32>, vector<8x16xf32>, vector<8x16xf32>, vector<8x16xf32>, vector<8x16xf32>, vector<8x16xf32>, vector<8x16xf32>, vector<8x16xf32>, vector<8x16xf32>, vector<8x16xf32> -> vector<8x256xf32>
    %cst_191 = arith.constant 0.000000e+00 : f32
    %690 = vector.broadcast %cst_191 : f32 to vector<8x128xf32>
    %c0_192 = arith.constant 0 : index
    %c0_193 = arith.constant 0 : index
    %691 = vector.load %arg19[%c0_192, %c0_193] : memref<8x512xf32, #tpu.memory_space<vmem>>, vector<8x128xf32>
    tpu.vector_store %arg19[%c0_192, %c0_193], %690 {strides = array<i32>} : memref<8x512xf32, #tpu.memory_space<vmem>>, vector<8x128xf32>,
    %cst_194 = arith.constant 0.000000e+00 : f32
    %692 = vector.broadcast %cst_194 : f32 to vector<8x128xf32>
    %c0_195 = arith.constant 0 : index
    %c384_196 = arith.constant 384 : index
    %693 = vector.load %arg19[%c0_195, %c384_196] : memref<8x512xf32, #tpu.memory_space<vmem>>, vector<8x128xf32>
    tpu.vector_store %arg19[%c0_195, %c384_196], %692 {strides = array<i32>} : memref<8x512xf32, #tpu.memory_space<vmem>>, vector<8x128xf32>,
    %c0_197 = arith.constant 0 : index
    %c128_198 = arith.constant 128 : index
    %694 = vector.load %arg19[%c0_197, %c128_198] : memref<8x512xf32, #tpu.memory_space<vmem>>, vector<8x256xf32>
    tpu.vector_store %arg19[%c0_197, %c128_198], %689 {strides = array<i32>} : memref<8x512xf32, #tpu.memory_space<vmem>>, vector<8x256xf32>,
    %c0_199 = arith.constant 0 : index
    %c111_200 = arith.constant 111 : index
    %695 = vector.load %arg19[%c0_199, %c111_200] : memref<8x512xf32, #tpu.memory_space<vmem>>, vector<8x256xf32>
    %c-1_i32_201 = arith.constant -1 : i32
    %696 = vector.broadcast %c-1_i32_201 : i32 to vector<1x256xi32>
    %697 = arith.addi %16, %696 : vector<1x256xi32>
    %c0_i32_202 = arith.constant 0 : i32
    %698 = vector.broadcast %c0_i32_202 : i32 to vector<1x256xi32>
    %699 = arith.cmpi sge, %697, %698 : vector<1x256xi32>
    %c-1_i32_203 = arith.constant -1 : i32
    %700 = vector.broadcast %c-1_i32_203 : i32 to vector<1x256xi32>
    %701 = arith.addi %16, %700 : vector<1x256xi32>
    %c16_i32_204 = arith.constant 16 : i32
    %702 = vector.broadcast %c16_i32_204 : i32 to vector<1x256xi32>
    %703 = arith.cmpi slt, %701, %702 : vector<1x256xi32>
    %704 = arith.andi %699, %703 : vector<1x256xi1>
    %cst_205 = arith.constant 0.000000e+00 : f32
    %705 = vector.shape_cast %704 : vector<1x256xi1> to vector<1x256xi1>
    %706 = vector.broadcast %705 : vector<1x256xi1> to vector<8x256xi1>
    %707 = vector.broadcast %cst_205 : f32 to vector<8x256xf32>
    %708 = arith.select %706, %695, %707 : vector<8x256xi1>, vector<8x256xf32>
    %c0_206 = arith.constant 0 : index
    %c112_207 = arith.constant 112 : index
    %709 = vector.load %arg19[%c0_206, %c112_207] : memref<8x512xf32, #tpu.memory_space<vmem>>, vector<8x256xf32>
    %c0_208 = arith.constant 0 : index
    %c113_209 = arith.constant 113 : index
    %710 = vector.load %arg19[%c0_208, %c113_209] : memref<8x512xf32, #tpu.memory_space<vmem>>, vector<8x256xf32>
    %c1_i32_210 = arith.constant 1 : i32
    %711 = vector.broadcast %c1_i32_210 : i32 to vector<1x256xi32>
    %712 = arith.addi %16, %711 : vector<1x256xi32>
    %c0_i32_211 = arith.constant 0 : i32
    %713 = vector.broadcast %c0_i32_211 : i32 to vector<1x256xi32>
    %714 = arith.cmpi sge, %712, %713 : vector<1x256xi32>
    %c1_i32_212 = arith.constant 1 : i32
    %715 = vector.broadcast %c1_i32_212 : i32 to vector<1x256xi32>
    %716 = arith.addi %16, %715 : vector<1x256xi32>
    %c16_i32_213 = arith.constant 16 : i32
    %717 = vector.broadcast %c16_i32_213 : i32 to vector<1x256xi32>
    %718 = arith.cmpi slt, %716, %717 : vector<1x256xi32>
    %719 = arith.andi %714, %718 : vector<1x256xi1>
    %cst_214 = arith.constant 0.000000e+00 : f32
    %720 = vector.shape_cast %719 : vector<1x256xi1> to vector<1x256xi1>
    %721 = vector.broadcast %720 : vector<1x256xi1> to vector<8x256xi1>
    %722 = vector.broadcast %cst_214 : f32 to vector<8x256xf32>
    %723 = arith.select %721, %710, %722 : vector<8x256xi1>, vector<8x256xf32>
    %c0_215 = arith.constant 0 : index
    %c127_216 = arith.constant 127 : index
    %724 = vector.load %arg19[%c0_215, %c127_216] : memref<8x512xf32, #tpu.memory_space<vmem>>, vector<8x256xf32>
    %c-1_i32_217 = arith.constant -1 : i32
    %725 = vector.broadcast %c-1_i32_217 : i32 to vector<1x256xi32>
    %726 = arith.addi %16, %725 : vector<1x256xi32>
    %c0_i32_218 = arith.constant 0 : i32
    %727 = vector.broadcast %c0_i32_218 : i32 to vector<1x256xi32>
    %728 = arith.cmpi sge, %726, %727 : vector<1x256xi32>
    %c-1_i32_219 = arith.constant -1 : i32
    %729 = vector.broadcast %c-1_i32_219 : i32 to vector<1x256xi32>
    %730 = arith.addi %16, %729 : vector<1x256xi32>
    %c16_i32_220 = arith.constant 16 : i32
    %731 = vector.broadcast %c16_i32_220 : i32 to vector<1x256xi32>
    %732 = arith.cmpi slt, %730, %731 : vector<1x256xi32>
    %733 = arith.andi %728, %732 : vector<1x256xi1>
    %cst_221 = arith.constant 0.000000e+00 : f32
    %734 = vector.shape_cast %733 : vector<1x256xi1> to vector<1x256xi1>
    %735 = vector.broadcast %734 : vector<1x256xi1> to vector<8x256xi1>
    %736 = vector.broadcast %cst_221 : f32 to vector<8x256xf32>
    %737 = arith.select %735, %724, %736 : vector<8x256xi1>, vector<8x256xf32>
    %c0_222 = arith.constant 0 : index
    %c128_223 = arith.constant 128 : index
    %738 = vector.load %arg19[%c0_222, %c128_223] : memref<8x512xf32, #tpu.memory_space<vmem>>, vector<8x256xf32>
    %c0_224 = arith.constant 0 : index
    %c129_225 = arith.constant 129 : index
    %739 = vector.load %arg19[%c0_224, %c129_225] : memref<8x512xf32, #tpu.memory_space<vmem>>, vector<8x256xf32>
    %c1_i32_226 = arith.constant 1 : i32
    %740 = vector.broadcast %c1_i32_226 : i32 to vector<1x256xi32>
    %741 = arith.addi %16, %740 : vector<1x256xi32>
    %c0_i32_227 = arith.constant 0 : i32
    %742 = vector.broadcast %c0_i32_227 : i32 to vector<1x256xi32>
    %743 = arith.cmpi sge, %741, %742 : vector<1x256xi32>
    %c1_i32_228 = arith.constant 1 : i32
    %744 = vector.broadcast %c1_i32_228 : i32 to vector<1x256xi32>
    %745 = arith.addi %16, %744 : vector<1x256xi32>
    %c16_i32_229 = arith.constant 16 : i32
    %746 = vector.broadcast %c16_i32_229 : i32 to vector<1x256xi32>
    %747 = arith.cmpi slt, %745, %746 : vector<1x256xi32>
    %748 = arith.andi %743, %747 : vector<1x256xi1>
    %cst_230 = arith.constant 0.000000e+00 : f32
    %749 = vector.shape_cast %748 : vector<1x256xi1> to vector<1x256xi1>
    %750 = vector.broadcast %749 : vector<1x256xi1> to vector<8x256xi1>
    %751 = vector.broadcast %cst_230 : f32 to vector<8x256xf32>
    %752 = arith.select %750, %739, %751 : vector<8x256xi1>, vector<8x256xf32>
    %c0_231 = arith.constant 0 : index
    %c143_232 = arith.constant 143 : index
    %753 = vector.load %arg19[%c0_231, %c143_232] : memref<8x512xf32, #tpu.memory_space<vmem>>, vector<8x256xf32>
    %c-1_i32_233 = arith.constant -1 : i32
    %754 = vector.broadcast %c-1_i32_233 : i32 to vector<1x256xi32>
    %755 = arith.addi %16, %754 : vector<1x256xi32>
    %c0_i32_234 = arith.constant 0 : i32
    %756 = vector.broadcast %c0_i32_234 : i32 to vector<1x256xi32>
    %757 = arith.cmpi sge, %755, %756 : vector<1x256xi32>
    %c-1_i32_235 = arith.constant -1 : i32
    %758 = vector.broadcast %c-1_i32_235 : i32 to vector<1x256xi32>
    %759 = arith.addi %16, %758 : vector<1x256xi32>
    %c16_i32_236 = arith.constant 16 : i32
    %760 = vector.broadcast %c16_i32_236 : i32 to vector<1x256xi32>
    %761 = arith.cmpi slt, %759, %760 : vector<1x256xi32>
    %762 = arith.andi %757, %761 : vector<1x256xi1>
    %cst_237 = arith.constant 0.000000e+00 : f32
    %763 = vector.shape_cast %762 : vector<1x256xi1> to vector<1x256xi1>
    %764 = vector.broadcast %763 : vector<1x256xi1> to vector<8x256xi1>
    %765 = vector.broadcast %cst_237 : f32 to vector<8x256xf32>
    %766 = arith.select %764, %753, %765 : vector<8x256xi1>, vector<8x256xf32>
    %c0_238 = arith.constant 0 : index
    %c144_239 = arith.constant 144 : index
    %767 = vector.load %arg19[%c0_238, %c144_239] : memref<8x512xf32, #tpu.memory_space<vmem>>, vector<8x256xf32>
    %c0_240 = arith.constant 0 : index
    %c145_241 = arith.constant 145 : index
    %768 = vector.load %arg19[%c0_240, %c145_241] : memref<8x512xf32, #tpu.memory_space<vmem>>, vector<8x256xf32>
    %c1_i32_242 = arith.constant 1 : i32
    %769 = vector.broadcast %c1_i32_242 : i32 to vector<1x256xi32>
    %770 = arith.addi %16, %769 : vector<1x256xi32>
    %c0_i32_243 = arith.constant 0 : i32
    %771 = vector.broadcast %c0_i32_243 : i32 to vector<1x256xi32>
    %772 = arith.cmpi sge, %770, %771 : vector<1x256xi32>
    %c1_i32_244 = arith.constant 1 : i32
    %773 = vector.broadcast %c1_i32_244 : i32 to vector<1x256xi32>
    %774 = arith.addi %16, %773 : vector<1x256xi32>
    %c16_i32_245 = arith.constant 16 : i32
    %775 = vector.broadcast %c16_i32_245 : i32 to vector<1x256xi32>
    %776 = arith.cmpi slt, %774, %775 : vector<1x256xi32>
    %777 = arith.andi %772, %776 : vector<1x256xi1>
    %cst_246 = arith.constant 0.000000e+00 : f32
    %778 = vector.shape_cast %777 : vector<1x256xi1> to vector<1x256xi1>
    %779 = vector.broadcast %778 : vector<1x256xi1> to vector<8x256xi1>
    %780 = vector.broadcast %cst_246 : f32 to vector<8x256xf32>
    %781 = arith.select %779, %768, %780 : vector<8x256xi1>, vector<8x256xf32>
    %782 = tpu.concatenate %708, %709, %723, %737, %738, %752, %766, %767, %781 in 0 : vector<8x256xf32>, vector<8x256xf32>, vector<8x256xf32>, vector<8x256xf32>, vector<8x256xf32>, vector<8x256xf32>, vector<8x256xf32>, vector<8x256xf32>, vector<8x256xf32> -> vector<72x256xf32>
    %783 = arith.truncf %782 : vector<72x256xf32> to vector<72x256xbf16>
    %c0_247 = arith.constant 0 : index
    %c0_248 = arith.constant 0 : index
    %784 = vector.load %arg13[%c0_247, %c0_248] : memref<12x72xbf16, #tpu.memory_space<vmem>>, vector<12x72xbf16>
    %cst_249 = arith.constant dense<0.000000e+00> : vector<12x256xf32>
    %785 = tpu.matmul %784, %783, %cst_249 {dimension_numbers = #tpu.dot_dimension_numbers<[1], [0], [0], [1], [0, 0, 1, 1], [], []>} : vector<12x72xbf16>, vector<72x256xbf16>, vector<12x256xf32> -> vector<12x256xf32>
    %c0_250 = arith.constant 0 : index
    %c0_251 = arith.constant 0 : index
    %786 = vector.load %arg14[%c0_250, %c0_251] : memref<12x1xf32, #tpu.memory_space<vmem>>, vector<12x1xf32>
    %787 = vector.broadcast %786 : vector<12x1xf32> to vector<12x256xf32>
    %788 = arith.mulf %785, %787 : vector<12x256xf32>
    %c0_252 = arith.constant 0 : index
    %c0_253 = arith.constant 0 : index
    %789 = vector.load %arg15[%c0_252, %c0_253] : memref<12x1xf32, #tpu.memory_space<vmem>>, vector<12x1xf32>
    %790 = vector.broadcast %789 : vector<12x1xf32> to vector<12x256xf32>
    %791 = arith.addf %788, %790 : vector<12x256xf32>
    %cst_254 = arith.constant dense<0.000000e+00> : vector<12xf32>
    %792 = vector.multi_reduction <add>, %791, %cst_254 [1] : vector<12x256xf32> to vector<12xf32>
    %793 = vector.shape_cast %792 : vector<12xf32> to vector<12x1xf32>
    %cst_255 = arith.constant 2.560000e+02 : f32
    %794 = vector.broadcast %cst_255 : f32 to vector<12x1xf32>
    %795 = arith.divf %793, %794 : vector<12x1xf32>
    %796 = vector.broadcast %795 : vector<12x1xf32> to vector<12x256xf32>
    %797 = arith.mulf %552, %796 : vector<12x256xf32>
    %798 = arith.addf %797, %791 : vector<12x256xf32>
    %c0_256 = arith.constant 0 : index
    %c0_257 = arith.constant 0 : index
    %c0_258 = arith.constant 0 : index
    %799 = vector.load %arg16[%c0_256, %c0_257, %c0_258] : memref<1x12x256xf32, #tpu.memory_space<vmem>>, vector<1x12x256xf32>
    %800 = vector.shape_cast %799 : vector<1x12x256xf32> to vector<12x256xf32>
    %801 = vector.shape_cast %798 : vector<12x256xf32> to vector<1x12x256xf32>
    tpu.vector_store %arg16[%c0_256, %c0_257, %c0_258], %801 {strides = array<i32>} : memref<1x12x256xf32, #tpu.memory_space<vmem>>, vector<1x12x256xf32>,
    return
  }
  func.func @transform_0(%arg0: i32) -> (i32, i32, i32) {
    %c0_i32 = arith.constant 0 : i32
    %c0_i32_0 = arith.constant 0 : i32
    %c0_i32_1 = arith.constant 0 : i32
    return %arg0, %c0_i32, %c0_i32_0 : i32, i32, i32
  }
  func.func @transform_1(%arg0: i32) -> (i32, i32, i32) {
    %c0_i32 = arith.constant 0 : i32
    %c0_i32_0 = arith.constant 0 : i32
    %c0_i32_1 = arith.constant 0 : i32
    return %arg0, %c0_i32, %c0_i32_0 : i32, i32, i32
  }
  func.func @transform_2(%arg0: i32) -> (i32, i32, i32, i32) {
    %c0_i32 = arith.constant 0 : i32
    %c0_i32_0 = arith.constant 0 : i32
    %c0_i32_1 = arith.constant 0 : i32
    %c0_i32_2 = arith.constant 0 : i32
    return %arg0, %c0_i32, %c0_i32_0, %c0_i32_1 : i32, i32, i32, i32
  }
  func.func @transform_3(%arg0: i32) -> (i32, i32) {
    %c0_i32 = arith.constant 0 : i32
    %c0_i32_0 = arith.constant 0 : i32
    %c0_i32_1 = arith.constant 0 : i32
    return %c0_i32, %c0_i32_0 : i32, i32
  }
  func.func @transform_4(%arg0: i32) -> (i32, i32) {
    %c0_i32 = arith.constant 0 : i32
    %c0_i32_0 = arith.constant 0 : i32
    %c0_i32_1 = arith.constant 0 : i32
    return %c0_i32, %c0_i32_0 : i32, i32
  }
  func.func @transform_5(%arg0: i32) -> (i32, i32) {
    %c0_i32 = arith.constant 0 : i32
    %c0_i32_0 = arith.constant 0 : i32
    %c0_i32_1 = arith.constant 0 : i32
    return %c0_i32, %c0_i32_0 : i32, i32
  }
  func.func @transform_6(%arg0: i32) -> (i32, i32) {
    %c0_i32 = arith.constant 0 : i32
    %c0_i32_0 = arith.constant 0 : i32
    %c0_i32_1 = arith.constant 0 : i32
    return %c0_i32, %c0_i32_0 : i32, i32
  }
  func.func @transform_7(%arg0: i32) -> (i32, i32) {
    %c0_i32 = arith.constant 0 : i32
    %c0_i32_0 = arith.constant 0 : i32
    %c0_i32_1 = arith.constant 0 : i32
    return %c0_i32, %c0_i32_0 : i32, i32
  }
  func.func @transform_8(%arg0: i32) -> (i32, i32) {
    %c0_i32 = arith.constant 0 : i32
    %c0_i32_0 = arith.constant 0 : i32
    %c0_i32_1 = arith.constant 0 : i32
    return %c0_i32, %c0_i32_0 : i32, i32
  }
  func.func @transform_9(%arg0: i32) -> (i32, i32) {
    %c0_i32 = arith.constant 0 : i32
    %c0_i32_0 = arith.constant 0 : i32
    %c0_i32_1 = arith.constant 0 : i32
    return %c0_i32, %c0_i32_0 : i32, i32
  }
  func.func @transform_10(%arg0: i32) -> (i32, i32) {
    %c0_i32 = arith.constant 0 : i32
    %c0_i32_0 = arith.constant 0 : i32
    %c0_i32_1 = arith.constant 0 : i32
    return %c0_i32, %c0_i32_0 : i32, i32
  }
  func.func @transform_11(%arg0: i32) -> (i32, i32) {
    %c0_i32 = arith.constant 0 : i32
    %c0_i32_0 = arith.constant 0 : i32
    %c0_i32_1 = arith.constant 0 : i32
    return %c0_i32, %c0_i32_0 : i32, i32
  }
  func.func @transform_12(%arg0: i32) -> (i32, i32) {
    %c0_i32 = arith.constant 0 : i32
    %c0_i32_0 = arith.constant 0 : i32
    %c0_i32_1 = arith.constant 0 : i32
    return %c0_i32, %c0_i32_0 : i32, i32
  }
  func.func @transform_13(%arg0: i32) -> (i32, i32) {
    %c0_i32 = arith.constant 0 : i32
    %c0_i32_0 = arith.constant 0 : i32
    %c0_i32_1 = arith.constant 0 : i32
    return %c0_i32, %c0_i32_0 : i32, i32
  }
  func.func @transform_14(%arg0: i32) -> (i32, i32) {
    %c0_i32 = arith.constant 0 : i32
    %c0_i32_0 = arith.constant 0 : i32
    %c0_i32_1 = arith.constant 0 : i32
    return %c0_i32, %c0_i32_0 : i32, i32
  }
  func.func @transform_15(%arg0: i32) -> (i32, i32, i32) {
    %c0_i32 = arith.constant 0 : i32
    %c0_i32_0 = arith.constant 0 : i32
    %c0_i32_1 = arith.constant 0 : i32
    return %arg0, %c0_i32, %c0_i32_0 : i32, i32, i32
  }
}

</mosaic_0001>

<llo_original>
// kernel: tpu_custom_call.1
$region0: #{tpu_custom_call.1}
  #allocation0 [shape = 'u32[]', space=smem, size = 0x4, offset = 0x4, fixed_abs, tag = 'smem constant byte address 0x4 - core index']
  #allocation1 [shape = 'u32[72,128]{1,0:T(1,128)}', space=vmem, size = 0x9000, scoped, tag = 'internal scratch']
  #allocation2 [shape = 'f32[8,512]{1,0:T(8,128)}', space=vmem, size = 0x4000, scoped, tag = 'scratch operand']
  #allocation3 [shape = 'f32[8,768]{1,0:T(8,128)}', space=vmem, size = 0x6000, scoped, tag = 'scratch operand']
  #allocation4 [shape = 'f32[8,512]{1,0:T(8,128)}', space=vmem, size = 0x4000, scoped, tag = 'scratch operand']
  %s0 = inlined_call_operand.vmem [shape: f32[2,4,256], index: 0, kind: input, shape index: {}]
  %s1 = inlined_call_operand.vmem [shape: f32[2,8,256], index: 1, kind: input, shape index: {}]
  %s2 = inlined_call_operand.hbm [shape: f32[2,8,8,8], index: 2, kind: input, shape index: {}]
  %s3 = inlined_call_operand.hbm [shape: f32[8,16], index: 3, kind: input, shape index: {}]
  %s4 = inlined_call_operand.hbm [shape: f32[8,25], index: 4, kind: input, shape index: {}]
  %s5 = inlined_call_operand.vmem [shape: f32[8,1], index: 5, kind: input, shape index: {}]
  %s6 = inlined_call_operand.hbm [shape: f32[8,49], index: 6, kind: input, shape index: {}]
  %s7 = inlined_call_operand.vmem [shape: f32[8,1], index: 7, kind: input, shape index: {}]
  %s8 = inlined_call_operand.vmem [shape: bf16[4,8], index: 8, kind: input, shape index: {}]
  %s9 = inlined_call_operand.vmem [shape: f32[4,1], index: 9, kind: input, shape index: {}]
  %s10 = inlined_call_operand.vmem [shape: bf16[4,8], index: 10, kind: input, shape index: {}]
  %s11 = inlined_call_operand.vmem [shape: f32[4,1], index: 11, kind: input, shape index: {}]
  %s12 = inlined_call_operand.vmem [shape: bf16[12,72], index: 12, kind: input, shape index: {}]
  %s13 = inlined_call_operand.vmem [shape: f32[12,1], index: 13, kind: input, shape index: {}]
  %s14 = inlined_call_operand.vmem [shape: f32[12,1], index: 14, kind: input, shape index: {}]
  %s15 = inlined_call_operand.vmem [shape: f32[2,12,256], index: 15, kind: output, shape index: {}]
  %s16 = sld [smem:[#allocation0]]
  $region109: #{tpu_custom_call.1} parent=0
    _
  %s18 = ssub.s32 1, %s16
  %s19 = scalar_select 0, %s18, %s16
  $region1: #{tpu_custom_call.1} parent=0
    #allocation5 [shape = 'u8[65536]{0}', space=vmem, size = 0x10000, scoped, tag = 'input window, operand 2']
    #allocation6 [shape = 's32[2]{0}', space=sflag, size = 0x8, scoped, tag = 'scoped memory for tpu_custom_call.1']
    #allocation7 [shape = 'u8[4096]{0}', space=vmem, size = 0x1000, scoped, tag = 'input window, operand 3, single buffered']
    #allocation8 [shape = 's32[1]{0}', space=sflag, size = 0x4, scoped, tag = 'scoped memory for tpu_custom_call.1']
    #allocation9 [shape = 'u8[4096]{0}', space=vmem, size = 0x1000, scoped, tag = 'input window, operand 4, single buffered']
    #allocation10 [shape = 'u8[4096]{0}', space=vmem, size = 0x1000, scoped, tag = 'input window, operand 6, single buffered']
    #allocation11 [shape = 's32[1]{0}', space=sflag, size = 0x4, scoped, tag = 'scoped memory for tpu_custom_call.1']
    %20 = vsyncpa [#allocation6], 0
    %s21 = scalar_lea.sflag [#allocation6], 1
    %22 = vsyncpa %s21, 0
    %23 = vsyncpa [#allocation8], 0
    %24 = vsyncpa [#allocation11], 0
    loop: start=0, step=1, limit=4
    $region2: #{tpu_custom_call.1} parent=1 // loop_pre_header
      _
    $region3: #{tpu_custom_call.1} parent=1 // loop_header
      %s26 = sphi 0, %s30
      %p27 = scmp.ge.s32.totalorder %s26, 4
      %s36 = sphi 0, %s38
      %s39 = sphi 0, %s36
      %s40 = sphi 0, %s39
      %s56 = sphi 0, %s40
      %s62 = sphi 0, %s64
      %s65 = sphi 0, %s62
      %s66 = sphi 0, %s65
      %s82 = sphi 0, %s66
      %s88 = sphi 0, %s90
      %s91 = sphi 0, %s88
      %s92 = sphi 0, %s91
      %s108 = sphi 0, %s92
      %s112 = sphi 0, %s112
      %s114 = sphi 0, %s112
      %s115 = sphi 0, %s114
      %s129 = sphi 0, %s115
      %s133 = sphi 0, %s133
      %s135 = sphi 0, %s133
      %s136 = sphi 0, %s135
      %s150 = sphi 0, %s136
      %s154 = sphi 0, %s154
      %s156 = sphi 0, %s154
      %s157 = sphi 0, %s156
      %s171 = sphi 0, %s157
      %s175 = sphi 0, %s175
      %s177 = sphi 0, %s175
      %s178 = sphi 0, %s177
      %s192 = sphi 0, %s178
      %s196 = sphi 0, %s196
      %s198 = sphi 0, %s196
      %s199 = sphi 0, %s198
      %s213 = sphi 0, %s199
      %s217 = sphi 0, %s217
      %s219 = sphi 0, %s217
      %s220 = sphi 0, %s219
      %s234 = sphi 0, %s220
      %s238 = sphi 0, %s238
      %s240 = sphi 0, %s238
      %s241 = sphi 0, %s240
      %s255 = sphi 0, %s241
      %s259 = sphi 0, %s259
      %s261 = sphi 0, %s259
      %s262 = sphi 0, %s261
      %s276 = sphi 0, %s262
      %s280 = sphi 0, %s280
      %s282 = sphi 0, %s280
      %s283 = sphi 0, %s282
      %s297 = sphi 0, %s283
      %s301 = sphi 0, %s301
      %s303 = sphi 0, %s301
      %s304 = sphi 0, %s303
      %s318 = sphi 0, %s304
      %s322 = sphi 0, %s322
      %s324 = sphi 0, %s322
      %s325 = sphi 0, %s324
      %s339 = sphi 0, %s325
      %s343 = sphi 0, %s343
      %s345 = sphi 0, %s343
      %s346 = sphi 0, %s345
      %s360 = sphi 0, %s346
      %s366 = sphi 0, %s368
      %s369 = sphi 0, %s366
      %s370 = sphi 0, %s369
      %s386 = sphi 0, %s370
    $region4: #{tpu_custom_call.1} parent=1 // loop_header_branch
      %29 = sbr.rel (%p27) target = $region8
    $region5: #{tpu_custom_call.1} parent=1 // loop_body
      %s31 = ssub.s32 %s26, 1
      %s32 = ssub.s32 %s26, 2
      %s33 = sadd.s32 %s26, 1
      %s34 = ssub.s32 %s26, %s33
      %p35 = scmp.eq.s32.totalorder %s34, 0
      %s37 = sadd.s32 %s36, 1
      %s38 = scalar_select %p35, %s36, %s37
      %p41 = pneg %p35
      %p42 = scmp.eq.s32.totalorder %s26, 1
      %p43 = por %p41, %p42
      %p44 = scmp.ne.s32.totalorder %s36, %s39
      %p45 = scmp.eq.s32.totalorder %s26, 0
      %p46 = por %p44, %p45
      %p47 = scmp.ne.s32.totalorder %s36, %s39
      %p48 = scmp.eq.s32.totalorder %s31, 1
      %p49 = por %p47, %p48
      %p50 = scmp.ne.s32.totalorder %s39, %s40
      %p51 = scmp.eq.s32.totalorder %s31, 0
      %p52 = por %p50, %p51
      %p53 = scmp.ne.s32.totalorder %s39, %s40
      %p54 = scmp.eq.s32.totalorder %s32, 1
      %p55 = por %p53, %p54
      %p57 = scmp.ne.s32.totalorder %s40, %s56
      %p58 = scmp.eq.s32.totalorder %s32, 0
      %p59 = por %p57, %p58
      %s60 = ssub.s32 %s26, %s33
      %p61 = scmp.eq.s32.totalorder %s60, 0
      %s63 = sadd.s32 %s62, 1
      %s64 = scalar_select %p61, %s62, %s63
      %p67 = pneg %p61
      %p68 = scmp.eq.s32.totalorder %s26, 1
      %p69 = por %p67, %p68
      %p70 = scmp.ne.s32.totalorder %s62, %s65
      %p71 = scmp.eq.s32.totalorder %s26, 0
      %p72 = por %p70, %p71
      %p73 = scmp.ne.s32.totalorder %s62, %s65
      %p74 = scmp.eq.s32.totalorder %s31, 1
      %p75 = por %p73, %p74
      %p76 = scmp.ne.s32.totalorder %s65, %s66
      %p77 = scmp.eq.s32.totalorder %s31, 0
      %p78 = por %p76, %p77
      %p79 = scmp.ne.s32.totalorder %s65, %s66
      %p80 = scmp.eq.s32.totalorder %s32, 1
      %p81 = por %p79, %p80
      %p83 = scmp.ne.s32.totalorder %s66, %s82
      %p84 = scmp.eq.s32.totalorder %s32, 0
      %p85 = por %p83, %p84
      %s86 = ssub.s32 %s26, %s33
      %p87 = scmp.eq.s32.totalorder %s86, 0
      %s89 = sadd.s32 %s88, 1
      %s90 = scalar_select %p87, %s88, %s89
      %p93 = pneg %p87
      %p94 = scmp.eq.s32.totalorder %s26, 1
      %p95 = por %p93, %p94
      %p96 = scmp.ne.s32.totalorder %s88, %s91
      %p97 = scmp.eq.s32.totalorder %s26, 0
      %p98 = por %p96, %p97
      %p99 = scmp.ne.s32.totalorder %s88, %s91
      %p100 = scmp.eq.s32.totalorder %s31, 1
      %p101 = por %p99, %p100
      %p102 = scmp.ne.s32.totalorder %s91, %s92
      %p103 = scmp.eq.s32.totalorder %s31, 0
      %p104 = por %p102, %p103
      %p105 = scmp.ne.s32.totalorder %s91, %s92
      %p106 = scmp.eq.s32.totalorder %s32, 1
      %p107 = por %p105, %p106
      %p109 = scmp.ne.s32.totalorder %s92, %s108
      %p110 = scmp.eq.s32.totalorder %s32, 0
      %p111 = por %p109, %p110
      %s113 = sadd.s32 %s112, 1
      %p116 = scmp.eq.s32.totalorder %s26, 1
      %p117 = scmp.ne.s32.totalorder %s112, %s114
      %p118 = scmp.eq.s32.totalorder %s26, 0
      %p119 = por %p117, %p118
      %p120 = scmp.ne.s32.totalorder %s112, %s114
      %p121 = scmp.eq.s32.totalorder %s31, 1
      %p122 = por %p120, %p121
      %p123 = scmp.ne.s32.totalorder %s114, %s115
      %p124 = scmp.eq.s32.totalorder %s31, 0
      %p125 = por %p123, %p124
      %p126 = scmp.ne.s32.totalorder %s114, %s115
      %p127 = scmp.eq.s32.totalorder %s32, 1
      %p128 = por %p126, %p127
      %p130 = scmp.ne.s32.totalorder %s115, %s129
      %p131 = scmp.eq.s32.totalorder %s32, 0
      %p132 = por %p130, %p131
      %s134 = sadd.s32 %s133, 1
      %p137 = scmp.eq.s32.totalorder %s26, 1
      %p138 = scmp.ne.s32.totalorder %s133, %s135
      %p139 = scmp.eq.s32.totalorder %s26, 0
      %p140 = por %p138, %p139
      %p141 = scmp.ne.s32.totalorder %s133, %s135
      %p142 = scmp.eq.s32.totalorder %s31, 1
      %p143 = por %p141, %p142
      %p144 = scmp.ne.s32.totalorder %s135, %s136
      %p145 = scmp.eq.s32.totalorder %s31, 0
      %p146 = por %p144, %p145
      %p147 = scmp.ne.s32.totalorder %s135, %s136
      %p148 = scmp.eq.s32.totalorder %s32, 1
      %p149 = por %p147, %p148
      %p151 = scmp.ne.s32.totalorder %s136, %s150
      %p152 = scmp.eq.s32.totalorder %s32, 0
      %p153 = por %p151, %p152
      %s155 = sadd.s32 %s154, 1
      %p158 = scmp.eq.s32.totalorder %s26, 1
      %p159 = scmp.ne.s32.totalorder %s154, %s156
      %p160 = scmp.eq.s32.totalorder %s26, 0
      %p161 = por %p159, %p160
      %p162 = scmp.ne.s32.totalorder %s154, %s156
      %p163 = scmp.eq.s32.totalorder %s31, 1
      %p164 = por %p162, %p163
      %p165 = scmp.ne.s32.totalorder %s156, %s157
      %p166 = scmp.eq.s32.totalorder %s31, 0
      %p167 = por %p165, %p166
      %p168 = scmp.ne.s32.totalorder %s156, %s157
      %p169 = scmp.eq.s32.totalorder %s32, 1
      %p170 = por %p168, %p169
      %p172 = scmp.ne.s32.totalorder %s157, %s171
      %p173 = scmp.eq.s32.totalorder %s32, 0
      %p174 = por %p172, %p173
      %s176 = sadd.s32 %s175, 1
      %p179 = scmp.eq.s32.totalorder %s26, 1
      %p180 = scmp.ne.s32.totalorder %s175, %s177
      %p181 = scmp.eq.s32.totalorder %s26, 0
      %p182 = por %p180, %p181
      %p183 = scmp.ne.s32.totalorder %s175, %s177
      %p184 = scmp.eq.s32.totalorder %s31, 1
      %p185 = por %p183, %p184
      %p186 = scmp.ne.s32.totalorder %s177, %s178
      %p187 = scmp.eq.s32.totalorder %s31, 0
      %p188 = por %p186, %p187
      %p189 = scmp.ne.s32.totalorder %s177, %s178
      %p190 = scmp.eq.s32.totalorder %s32, 1
      %p191 = por %p189, %p190
      %p193 = scmp.ne.s32.totalorder %s178, %s192
      %p194 = scmp.eq.s32.totalorder %s32, 0
      %p195 = por %p193, %p194
      %s197 = sadd.s32 %s196, 1
      %p200 = scmp.eq.s32.totalorder %s26, 1
      %p201 = scmp.ne.s32.totalorder %s196, %s198
      %p202 = scmp.eq.s32.totalorder %s26, 0
      %p203 = por %p201, %p202
      %p204 = scmp.ne.s32.totalorder %s196, %s198
      %p205 = scmp.eq.s32.totalorder %s31, 1
      %p206 = por %p204, %p205
      %p207 = scmp.ne.s32.totalorder %s198, %s199
      %p208 = scmp.eq.s32.totalorder %s31, 0
      %p209 = por %p207, %p208
      %p210 = scmp.ne.s32.totalorder %s198, %s199
      %p211 = scmp.eq.s32.totalorder %s32, 1
      %p212 = por %p210, %p211
      %p214 = scmp.ne.s32.totalorder %s199, %s213
      %p215 = scmp.eq.s32.totalorder %s32, 0
      %p216 = por %p214, %p215
      %s218 = sadd.s32 %s217, 1
      %p221 = scmp.eq.s32.totalorder %s26, 1
      %p222 = scmp.ne.s32.totalorder %s217, %s219
      %p223 = scmp.eq.s32.totalorder %s26, 0
      %p224 = por %p222, %p223
      %p225 = scmp.ne.s32.totalorder %s217, %s219
      %p226 = scmp.eq.s32.totalorder %s31, 1
      %p227 = por %p225, %p226
      %p228 = scmp.ne.s32.totalorder %s219, %s220
      %p229 = scmp.eq.s32.totalorder %s31, 0
      %p230 = por %p228, %p229
      %p231 = scmp.ne.s32.totalorder %s219, %s220
      %p232 = scmp.eq.s32.totalorder %s32, 1
      %p233 = por %p231, %p232
      %p235 = scmp.ne.s32.totalorder %s220, %s234
      %p236 = scmp.eq.s32.totalorder %s32, 0
      %p237 = por %p235, %p236
      %s239 = sadd.s32 %s238, 1
      %p242 = scmp.eq.s32.totalorder %s26, 1
      %p243 = scmp.ne.s32.totalorder %s238, %s240
      %p244 = scmp.eq.s32.totalorder %s26, 0
      %p245 = por %p243, %p244
      %p246 = scmp.ne.s32.totalorder %s238, %s240
      %p247 = scmp.eq.s32.totalorder %s31, 1
      %p248 = por %p246, %p247
      %p249 = scmp.ne.s32.totalorder %s240, %s241
      %p250 = scmp.eq.s32.totalorder %s31, 0
      %p251 = por %p249, %p250
      %p252 = scmp.ne.s32.totalorder %s240, %s241
      %p253 = scmp.eq.s32.totalorder %s32, 1
      %p254 = por %p252, %p253
      %p256 = scmp.ne.s32.totalorder %s241, %s255
      %p257 = scmp.eq.s32.totalorder %s32, 0
      %p258 = por %p256, %p257
      %s260 = sadd.s32 %s259, 1
      %p263 = scmp.eq.s32.totalorder %s26, 1
      %p264 = scmp.ne.s32.totalorder %s259, %s261
      %p265 = scmp.eq.s32.totalorder %s26, 0
      %p266 = por %p264, %p265
      %p267 = scmp.ne.s32.totalorder %s259, %s261
      %p268 = scmp.eq.s32.totalorder %s31, 1
      %p269 = por %p267, %p268
      %p270 = scmp.ne.s32.totalorder %s261, %s262
      %p271 = scmp.eq.s32.totalorder %s31, 0
      %p272 = por %p270, %p271
      %p273 = scmp.ne.s32.totalorder %s261, %s262
      %p274 = scmp.eq.s32.totalorder %s32, 1
      %p275 = por %p273, %p274
      %p277 = scmp.ne.s32.totalorder %s262, %s276
      %p278 = scmp.eq.s32.totalorder %s32, 0
      %p279 = por %p277, %p278
      %s281 = sadd.s32 %s280, 1
      %p284 = scmp.eq.s32.totalorder %s26, 1
      %p285 = scmp.ne.s32.totalorder %s280, %s282
      %p286 = scmp.eq.s32.totalorder %s26, 0
      %p287 = por %p285, %p286
      %p288 = scmp.ne.s32.totalorder %s280, %s282
      %p289 = scmp.eq.s32.totalorder %s31, 1
      %p290 = por %p288, %p289
      %p291 = scmp.ne.s32.totalorder %s282, %s283
      %p292 = scmp.eq.s32.totalorder %s31, 0
      %p293 = por %p291, %p292
      %p294 = scmp.ne.s32.totalorder %s282, %s283
      %p295 = scmp.eq.s32.totalorder %s32, 1
      %p296 = por %p294, %p295
      %p298 = scmp.ne.s32.totalorder %s283, %s297
      %p299 = scmp.eq.s32.totalorder %s32, 0
      %p300 = por %p298, %p299
      %s302 = sadd.s32 %s301, 1
      %p305 = scmp.eq.s32.totalorder %s26, 1
      %p306 = scmp.ne.s32.totalorder %s301, %s303
      %p307 = scmp.eq.s32.totalorder %s26, 0
      %p308 = por %p306, %p307
      %p309 = scmp.ne.s32.totalorder %s301, %s303
      %p310 = scmp.eq.s32.totalorder %s31, 1
      %p311 = por %p309, %p310
      %p312 = scmp.ne.s32.totalorder %s303, %s304
      %p313 = scmp.eq.s32.totalorder %s31, 0
      %p314 = por %p312, %p313
      %p315 = scmp.ne.s32.totalorder %s303, %s304
      %p316 = scmp.eq.s32.totalorder %s32, 1
      %p317 = por %p315, %p316
      %p319 = scmp.ne.s32.totalorder %s304, %s318
      %p320 = scmp.eq.s32.totalorder %s32, 0
      %p321 = por %p319, %p320
      %s323 = sadd.s32 %s322, 1
      %p326 = scmp.eq.s32.totalorder %s26, 1
      %p327 = scmp.ne.s32.totalorder %s322, %s324
      %p328 = scmp.eq.s32.totalorder %s26, 0
      %p329 = por %p327, %p328
      %p330 = scmp.ne.s32.totalorder %s322, %s324
      %p331 = scmp.eq.s32.totalorder %s31, 1
      %p332 = por %p330, %p331
      %p333 = scmp.ne.s32.totalorder %s324, %s325
      %p334 = scmp.eq.s32.totalorder %s31, 0
      %p335 = por %p333, %p334
      %p336 = scmp.ne.s32.totalorder %s324, %s325
      %p337 = scmp.eq.s32.totalorder %s32, 1
      %p338 = por %p336, %p337
      %p340 = scmp.ne.s32.totalorder %s325, %s339
      %p341 = scmp.eq.s32.totalorder %s32, 0
      %p342 = por %p340, %p341
      %s344 = sadd.s32 %s343, 1
      %p347 = scmp.eq.s32.totalorder %s26, 1
      %p348 = scmp.ne.s32.totalorder %s343, %s345
      %p349 = scmp.eq.s32.totalorder %s26, 0
      %p350 = por %p348, %p349
      %p351 = scmp.ne.s32.totalorder %s343, %s345
      %p352 = scmp.eq.s32.totalorder %s31, 1
      %p353 = por %p351, %p352
      %p354 = scmp.ne.s32.totalorder %s345, %s346
      %p355 = scmp.eq.s32.totalorder %s31, 0
      %p356 = por %p354, %p355
      %p357 = scmp.ne.s32.totalorder %s345, %s346
      %p358 = scmp.eq.s32.totalorder %s32, 1
      %p359 = por %p357, %p358
      %p361 = scmp.ne.s32.totalorder %s346, %s360
      %p362 = scmp.eq.s32.totalorder %s32, 0
      %p363 = por %p361, %p362
      %s364 = ssub.s32 %s26, %s33
      %p365 = scmp.eq.s32.totalorder %s364, 0
      %s367 = sadd.s32 %s366, 1
      %s368 = scalar_select %p365, %s366, %s367
      %p371 = pneg %p365
      %p372 = scmp.eq.s32.totalorder %s26, 1
      %p373 = por %p371, %p372
      %p374 = scmp.ne.s32.totalorder %s366, %s369
      %p375 = scmp.eq.s32.totalorder %s26, 0
      %p376 = por %p374, %p375
      %p377 = scmp.ne.s32.totalorder %s366, %s369
      %p378 = scmp.eq.s32.totalorder %s31, 1
      %p379 = por %p377, %p378
      %p380 = scmp.ne.s32.totalorder %s369, %s370
      %p381 = scmp.eq.s32.totalorder %s31, 0
      %p382 = por %p380, %p381
      %p383 = scmp.ne.s32.totalorder %s369, %s370
      %p384 = scmp.eq.s32.totalorder %s32, 1
      %p385 = por %p383, %p384
      %p387 = scmp.ne.s32.totalorder %s370, %s386
      %p388 = scmp.eq.s32.totalorder %s32, 0
      %p389 = por %p387, %p388
      %p390 = scmp.le.s32.totalorder 1, %s26
      %p391 = scmp.lt.s32.totalorder %s26, 3
      %p392 = pnand %p390, %p391
      %p393 = pneg %p392
      // Predicated region
      $region9: #{tpu_custom_call.1} parent=5 // pred_check
        _
      $region10: #{tpu_custom_call.1} parent=5 // pred_check_branch
        %395 = sbr.rel (%p392) target = $region12
      $region11: #{tpu_custom_call.1} parent=5 // pred_region
        %s396 = ssub.s32 %s26, 1
        // Predicated region
        $region13: #{tpu_custom_call.1} parent=11 // pred_check
          %p397 = pneg %p125
        $region14: #{tpu_custom_call.1} parent=11 // pred_check_branch
          %399 = sbr.rel (%p397) target = $region16
        $region15: #{tpu_custom_call.1} parent=11 // pred_region
          %401 = vsyncadd [#allocation8], 0
          %s403 = sshll.u32 %s3, 4
          %s404 = int_to_ptr.hbm [resolvable:$true] %s403
          %s405 = sshll.u32 [#allocation7], 4
          %s406 = int_to_ptr.vmem [resolvable:$true] %s405
          %408 = dma.hbm_to_vmem [thread:$0]  %s404, 128, %s406, [#allocation8]
        $region16: #{tpu_custom_call.1} parent=11 // pred_fallthru
          _
        // Predicated region
        $region17: #{tpu_custom_call.1} parent=11 // pred_check
          %p409 = pneg %p146
        $region18: #{tpu_custom_call.1} parent=11 // pred_check_branch
          %411 = sbr.rel (%p409) target = $region20
        $region19: #{tpu_custom_call.1} parent=11 // pred_region
          %413 = vsyncadd [#allocation8], 0
          %s415 = sshll.u32 %s4, 4
          %s416 = int_to_ptr.hbm [resolvable:$true] %s415
          %s417 = sshll.u32 [#allocation9], 4
          %s418 = int_to_ptr.vmem [resolvable:$true] %s417
          %420 = dma.hbm_to_vmem [thread:$0]  %s416, 128, %s418, [#allocation8]
        $region20: #{tpu_custom_call.1} parent=11 // pred_fallthru
          _
        // Predicated region
        $region21: #{tpu_custom_call.1} parent=11 // pred_check
          %p421 = pneg %p167
        $region22: #{tpu_custom_call.1} parent=11 // pred_check_branch
          %423 = sbr.rel (%p421) target = $region24
        $region23: #{tpu_custom_call.1} parent=11 // pred_region
          _
        $region24: #{tpu_custom_call.1} parent=11 // pred_fallthru
          _
        // Predicated region
        $region25: #{tpu_custom_call.1} parent=11 // pred_check
          %p424 = pneg %p188
        $region26: #{tpu_custom_call.1} parent=11 // pred_check_branch
          %426 = sbr.rel (%p424) target = $region28
        $region27: #{tpu_custom_call.1} parent=11 // pred_region
          %428 = vsyncadd [#allocation11], 0
          %s430 = sshll.u32 %s6, 4
          %s431 = int_to_ptr.hbm [resolvable:$true] %s430
          %s432 = sshll.u32 [#allocation10], 4
          %s433 = int_to_ptr.vmem [resolvable:$true] %s432
          %435 = dma.hbm_to_vmem [thread:$0]  %s431, 128, %s433, [#allocation11]
        $region28: #{tpu_custom_call.1} parent=11 // pred_fallthru
          _
        // Predicated region
        $region29: #{tpu_custom_call.1} parent=11 // pred_check
          %p436 = pneg %p209
        $region30: #{tpu_custom_call.1} parent=11 // pred_check_branch
          %438 = sbr.rel (%p436) target = $region32
        $region31: #{tpu_custom_call.1} parent=11 // pred_region
          _
        $region32: #{tpu_custom_call.1} parent=11 // pred_fallthru
          _
        // Predicated region
        $region33: #{tpu_custom_call.1} parent=11 // pred_check
          %p439 = pneg %p230
        $region34: #{tpu_custom_call.1} parent=11 // pred_check_branch
          %441 = sbr.rel (%p439) target = $region36
        $region35: #{tpu_custom_call.1} parent=11 // pred_region
          _
        $region36: #{tpu_custom_call.1} parent=11 // pred_fallthru
          _
        // Predicated region
        $region37: #{tpu_custom_call.1} parent=11 // pred_check
          %p442 = pneg %p251
        $region38: #{tpu_custom_call.1} parent=11 // pred_check_branch
          %444 = sbr.rel (%p442) target = $region40
        $region39: #{tpu_custom_call.1} parent=11 // pred_region
          _
        $region40: #{tpu_custom_call.1} parent=11 // pred_fallthru
          _
        // Predicated region
        $region41: #{tpu_custom_call.1} parent=11 // pred_check
          %p445 = pneg %p272
        $region42: #{tpu_custom_call.1} parent=11 // pred_check_branch
          %447 = sbr.rel (%p445) target = $region44
        $region43: #{tpu_custom_call.1} parent=11 // pred_region
          _
        $region44: #{tpu_custom_call.1} parent=11 // pred_fallthru
          _
        // Predicated region
        $region45: #{tpu_custom_call.1} parent=11 // pred_check
          %p448 = pneg %p293
        $region46: #{tpu_custom_call.1} parent=11 // pred_check_branch
          %450 = sbr.rel (%p448) target = $region48
        $region47: #{tpu_custom_call.1} parent=11 // pred_region
          _
        $region48: #{tpu_custom_call.1} parent=11 // pred_fallthru
          _
        // Predicated region
        $region49: #{tpu_custom_call.1} parent=11 // pred_check
          %p451 = pneg %p314
        $region50: #{tpu_custom_call.1} parent=11 // pred_check_branch
          %453 = sbr.rel (%p451) target = $region52
        $region51: #{tpu_custom_call.1} parent=11 // pred_region
          _
        $region52: #{tpu_custom_call.1} parent=11 // pred_fallthru
          _
        // Predicated region
        $region53: #{tpu_custom_call.1} parent=11 // pred_check
          %p454 = pneg %p335
        $region54: #{tpu_custom_call.1} parent=11 // pred_check_branch
          %456 = sbr.rel (%p454) target = $region56
        $region55: #{tpu_custom_call.1} parent=11 // pred_region
          _
        $region56: #{tpu_custom_call.1} parent=11 // pred_fallthru
          _
        // Predicated region
        $region57: #{tpu_custom_call.1} parent=11 // pred_check
          %p457 = pneg %p356
        $region58: #{tpu_custom_call.1} parent=11 // pred_check_branch
          %459 = sbr.rel (%p457) target = $region60
        $region59: #{tpu_custom_call.1} parent=11 // pred_region
          _
        $region60: #{tpu_custom_call.1} parent=11 // pred_fallthru
          _
      $region12: #{tpu_custom_call.1} parent=5 // pred_fallthru
        _
      %p460 = scmp.lt.s32.totalorder %s26, 2
      // Predicated region
      $region61: #{tpu_custom_call.1} parent=5 // pred_check
        %p461 = pneg %p460
      $region62: #{tpu_custom_call.1} parent=5 // pred_check_branch
        %463 = sbr.rel (%p461) target = $region64
      $region63: #{tpu_custom_call.1} parent=5 // pred_region
        // Predicated region
        $region65: #{tpu_custom_call.1} parent=63 // pred_check
          %p464 = pneg %p46
        $region66: #{tpu_custom_call.1} parent=63 // pred_check_branch
          %466 = sbr.rel (%p464) target = $region68
        $region67: #{tpu_custom_call.1} parent=63 // pred_region
          %p467 = scmp.lt.s32.totalorder %s26, 1
          %s468 = scalar_select %p467, %s26, 1
          %s469 = smul.addr %s468, 2
          %s470 = smul.addr %s469, 4
          %s471 = scalar_lea.vmem %s0, %s470
        $region68: #{tpu_custom_call.1} parent=63 // pred_fallthru
          _
        // Predicated region
        $region69: #{tpu_custom_call.1} parent=63 // pred_check
          %p472 = pneg %p72
        $region70: #{tpu_custom_call.1} parent=63 // pred_check_branch
          %474 = sbr.rel (%p472) target = $region72
        $region71: #{tpu_custom_call.1} parent=63 // pred_region
          %p475 = scmp.lt.s32.totalorder %s26, 1
          %s476 = scalar_select %p475, %s26, 1
          %s477 = smul.addr %s476, 2
          %s478 = smul.addr %s477, 8
          %s479 = scalar_lea.vmem %s1, %s478
        $region72: #{tpu_custom_call.1} parent=63 // pred_fallthru
          _
        // Predicated region
        $region73: #{tpu_custom_call.1} parent=63 // pred_check
          %p480 = pneg %p98
        $region74: #{tpu_custom_call.1} parent=63 // pred_check_branch
          %482 = sbr.rel (%p480) target = $region76
        $region75: #{tpu_custom_call.1} parent=63 // pred_region
          %s483 = sand.u32 %s88, 1
          %s484 = scalar_lea.sflag [#allocation6], %s483
          %s485 = sand.u32 %s88, 1
          %s486 = smul.addr %s485, 64
          %s487 = scalar_lea.vmem [#allocation5], %s486
          %489 = vsyncadd %s484, 0
          %s490 = smul.addr %s26, 8
          %s491 = smul.addr %s490, 8
          %s492 = scalar_lea.hbm %s2, %s491
          %s493 = sshll.u32 %s492, 4
          %s494 = int_to_ptr.hbm [resolvable:$true] %s493
          %s495 = sshll.u32 %s487, 4
          %s496 = int_to_ptr.vmem [resolvable:$true] %s495
          %501 = dma.hbm_to_vmem [thread:$0]  %s494, 1024, %s496, %s484, 128, 128, 8
        $region76: #{tpu_custom_call.1} parent=63 // pred_fallthru
          _
      $region64: #{tpu_custom_call.1} parent=5 // pred_fallthru
        _
      %p502 = scmp.le.s32.totalorder 1, %s26
      %p503 = scmp.lt.s32.totalorder %s26, 3
      %p504 = pnand %p502, %p503
      %p505 = pneg %p504
      // Predicated region
      $region77: #{tpu_custom_call.1} parent=5 // pred_check
        _
      $region78: #{tpu_custom_call.1} parent=5 // pred_check_branch
        %507 = sbr.rel (%p504) target = $region80
      $region79: #{tpu_custom_call.1} parent=5 // pred_region
        %s508 = ssub.s32 %s26, 1
        %s509 = sand.u32 %s91, 1
        %s510 = scalar_lea.sflag [#allocation6], %s509
        %s511 = sand.u32 %s91, 1
        %s512 = smul.addr %s511, 64
        %s513 = scalar_lea.vmem [#allocation5], %s512
        // Predicated region
        $region81: #{tpu_custom_call.1} parent=79 // pred_check
          %p514 = pneg %p104
        $region82: #{tpu_custom_call.1} parent=79 // pred_check_branch
          %516 = sbr.rel (%p514) target = $region84
        $region83: #{tpu_custom_call.1} parent=79 // pred_region
          %518 = dma.done %s510, 1024
        $region84: #{tpu_custom_call.1} parent=79 // pred_fallthru
          _
        // Predicated region
        $region85: #{tpu_custom_call.1} parent=79 // pred_check
          %p519 = pneg %p125
        $region86: #{tpu_custom_call.1} parent=79 // pred_check_branch
          %521 = sbr.rel (%p519) target = $region88
        $region87: #{tpu_custom_call.1} parent=79 // pred_region
          %523 = dma.done [#allocation8], 128
        $region88: #{tpu_custom_call.1} parent=79 // pred_fallthru
          _
        // Predicated region
        $region89: #{tpu_custom_call.1} parent=79 // pred_check
          %p524 = pneg %p146
        $region90: #{tpu_custom_call.1} parent=79 // pred_check_branch
          %526 = sbr.rel (%p524) target = $region92
        $region91: #{tpu_custom_call.1} parent=79 // pred_region
          %528 = dma.done [#allocation8], 128
        $region92: #{tpu_custom_call.1} parent=79 // pred_fallthru
          _
        // Predicated region
        $region93: #{tpu_custom_call.1} parent=79 // pred_check
          %p529 = pneg %p188
        $region94: #{tpu_custom_call.1} parent=79 // pred_check_branch
          %531 = sbr.rel (%p529) target = $region96
        $region95: #{tpu_custom_call.1} parent=79 // pred_region
          %533 = dma.done [#allocation11], 128
        $region96: #{tpu_custom_call.1} parent=79 // pred_fallthru
          _
        %p534 = scmp.lt.s32.totalorder %s31, 1
        %s535 = scalar_select %p534, %s31, 1
        %s536 = smul.addr %s535, 2
        %s537 = smul.addr %s536, 4
        %s538 = scalar_lea.vmem %s0, %s537
        %p539 = pneg %p52
        %p540 = pneg %p49
        %p541 = scmp.lt.s32.totalorder %s31, 1
        %s542 = scalar_select %p541, %s31, 1
        %s543 = smul.addr %s542, 2
        %s544 = smul.addr %s543, 8
        %s545 = scalar_lea.vmem %s1, %s544
        %p546 = pneg %p78
        %p547 = pneg %p75
        %s548 = sand.u32 %s91, 1
        %s549 = scalar_lea.sflag [#allocation6], %s548
        %s550 = sand.u32 %s91, 1
        %s551 = smul.addr %s550, 64
        %s552 = scalar_lea.vmem [#allocation5], %s551
        %p553 = pneg %p104
        %p554 = pneg %p101
        %p555 = pneg %p125
        %p556 = pneg %p122
        %p557 = pneg %p146
        %p558 = pneg %p143
        %p559 = pneg %p167
        %p560 = pneg %p164
        %p561 = pneg %p188
        %p562 = pneg %p185
        %p563 = pneg %p209
        %p564 = pneg %p206
        %p565 = pneg %p230
        %p566 = pneg %p227
        %p567 = pneg %p251
        %p568 = pneg %p248
        %p569 = pneg %p272
        %p570 = pneg %p269
        %p571 = pneg %p293
        %p572 = pneg %p290
        %p573 = pneg %p314
        %p574 = pneg %p311
        %p575 = pneg %p335
        %p576 = pneg %p332
        %p577 = pneg %p356
        %p578 = pneg %p353
        %p579 = pneg %p382
        %p580 = pneg %p379
        %p581 = scmp.lt.s32.totalorder %s31, 1
        %s582 = scalar_select %p581, %s31, 1
        %s583 = smul.addr %s582, 4
        %s584 = smul.addr %s583, 8
        %s585 = scalar_lea.vmem %s15, %s584
        %p586 = scmp.lt.s32.totalorder %s31, 1
        %s587 = scalar_select %p586, %s31, 1
        %s588 = smul.addr %s587, 2
        %s589 = smul.addr %s588, 4
        %s590 = scalar_lea.vmem %s0, %s589
        %p591 = scmp.lt.s32.totalorder %s31, 1
        %s592 = scalar_select %p591, %s31, 1
        %s593 = smul.addr %s592, 2
        %s594 = smul.addr %s593, 8
        %s595 = scalar_lea.vmem %s1, %s594
        %p596 = scmp.lt.s32.totalorder %s31, 1
        %s597 = scalar_select %p596, %s31, 1
        %s598 = smul.addr %s597, 4
        %s599 = smul.addr %s598, 8
        %s600 = scalar_lea.vmem %s15, %s599
        %v602 = vlaneseq
        %v603 = vand.u32 %v602, 127
        %v604 = vadd.s32 %v603, 128
        %vm605 = vcmp.lt.s32.totalorder %v603, 0
        %v606 = vsub.s32 0, %v603
        %v607 = vsel %vm605, %v606, %v603
        %v608 = vshrl.u32 %v607, 4
        %v609 = vand.u32 %v607, 15
        %v610 = vsub.s32 0, %v609
        %v611 = vsel %vm605, %v610, %v609
        %vm612 = vcmp.lt.s32.totalorder %v604, 0
        %v613 = vsub.s32 0, %v604
        %v614 = vsel %vm612, %v613, %v604
        %v615 = vshrl.u32 %v614, 4
        %v616 = vand.u32 %v614, 15
        %v617 = vsub.s32 0, %v616
        %v618 = vsel %vm612, %v617, %v616
        %vm619 = vcmp.ne.s32.totalorder %v611, 0
        %vm620 = vcmp.ne.s32.totalorder %v618, 0
        %vm621 = vcmp.lt.s32.totalorder %v611, 0
        %vm622 = vcmp.lt.s32.totalorder %v618, 0
        %vm623 = vmand %vm621, %vm619
        %vm624 = vmand %vm622, %vm620
        %v625 = vadd.s32 %v611, 16
        %v626 = vadd.s32 %v618, 16
        %v627 = vsel %vm623, %v625, %v611
        %v628 = vsel %vm624, %v626, %v618
        %v629 = vld [vmem:[%s590] sm:$0xff]
        %v630 = vld [vmem:[%s595] sm:$0xff]
        %v631 = vld [vmem:[%s595 + $0x8] sm:$0xff]
        %v632 = vld [vmem:[#allocation9] sm:$0xff]
        %v633 = vld [vmem:[%s5] sm:$0xff]
        %634 = vst [vmem:[#allocation2] sm:$0xff] 0.0
        %635 = vst [vmem:[#allocation2 + $0x18] sm:$0xff] 0.0
        %636 = vst [vmem:[#allocation2 + $0x8] sm:$0xff] %v630
        %637 = vst [vmem:[#allocation2 + $0x10] sm:$0xff] %v631
        %v638 = vld [vmem:[#allocation2] sm:$0xff]
        %v639 = vld [vmem:[#allocation2 + $0x8] sm:$0xff]
        %v640 = vld [vmem:[#allocation2 + $0x10] sm:$0xff]
        %642 = vset.pattern.permute.xlu0 0
        %643 = vperm.xlu0 %642, %v632
        %v644 = vpop.permute.xlu0 %643
        %v646 = vmul.f32 %v638, %v644
        %v647 = vmul.f32 %v639, %v644
        %v648 = vmul.f32 %v640, %v644
        %649 = vset.pattern.permute.xlu0 5
        %650 = vperm.xlu0 %649, %v632
        %v651 = vpop.permute.xlu0 %650
        %v653 = vmul.f32 %v638, %v651
        %v654 = vmul.f32 %v639, %v651
        %v655 = vmul.f32 %v640, %v651
        %659 = vrot.lane.b32.xlu0 %v653, 112
        %v660 = vpop.permute.xlu0 %659
        %661 = vrot.lane.b32.xlu0 %v654, 112
        %v662 = vpop.permute.xlu0 %661
        %663 = vrot.lane.b32.xlu0 %v655, 112
        %v664 = vpop.permute.xlu0 %663
        %vm665 = vcmask 916480
        %v666 = vsel %vm665, %v660, %v662
        %v667 = vsel %vm665, %v662, %v664
        %v671 = vadd.f32 %v646, %v666
        %v672 = vadd.f32 %v647, %v667
        %v673 = vadd.f32 %v648, %v664
        %674 = vset.pattern.permute.xlu0 10
        %675 = vperm.xlu0 %674, %v632
        %v676 = vpop.permute.xlu0 %675
        %v678 = vmul.f32 %v638, %v676
        %v679 = vmul.f32 %v639, %v676
        %v680 = vmul.f32 %v640, %v676
        %684 = vrot.lane.b32.xlu0 %v678, 96
        %v685 = vpop.permute.xlu0 %684
        %686 = vrot.lane.b32.xlu0 %v679, 96
        %v687 = vpop.permute.xlu0 %686
        %688 = vrot.lane.b32.xlu0 %v680, 96
        %v689 = vpop.permute.xlu0 %688
        %vm690 = vcmask 785408
        %v691 = vsel %vm690, %v685, %v687
        %v692 = vsel %vm690, %v687, %v689
        %v696 = vadd.f32 %v671, %v691
        %v697 = vadd.f32 %v672, %v692
        %v698 = vadd.f32 %v673, %v689
        %v699 = vld [vmem:[#allocation2 + $0x8] sm:$0xff]
        %v700 = vld [vmem:[#allocation2 + $0x10] sm:$0xff]
        %v701 = vld [vmem:[#allocation2 + $0x18] sm:$0xff]
        %702 = vset.pattern.permute.xlu0 15
        %703 = vperm.xlu0 %702, %v632
        %v704 = vpop.permute.xlu0 %703
        %v706 = vmul.f32 %v699, %v704
        %v707 = vmul.f32 %v700, %v704
        %v708 = vmul.f32 %v701, %v704
        %712 = vrot.lane.b32.xlu0 %v706, 80
        %v713 = vpop.permute.xlu0 %712
        %714 = vrot.lane.b32.xlu0 %v707, 80
        %v715 = vpop.permute.xlu0 %714
        %716 = vrot.lane.b32.xlu0 %v708, 80
        %v717 = vpop.permute.xlu0 %716
        %vm718 = vcmask 654336
        %v719 = vsel %vm718, %v713, %v715
        %v720 = vsel %vm718, %v715, %v717
        %v724 = vadd.f32 %v696, %v713
        %v725 = vadd.f32 %v697, %v719
        %v726 = vadd.f32 %v698, %v720
        %727 = vset.pattern.permute.xlu0 20
        %728 = vperm.xlu0 %727, %v632
        %v729 = vpop.permute.xlu0 %728
        %v731 = vmul.f32 %v699, %v729
        %v732 = vmul.f32 %v700, %v729
        %v733 = vmul.f32 %v701, %v729
        %737 = vrot.lane.b32.xlu0 %v731, 64
        %v738 = vpop.permute.xlu0 %737
        %739 = vrot.lane.b32.xlu0 %v732, 64
        %v740 = vpop.permute.xlu0 %739
        %741 = vrot.lane.b32.xlu0 %v733, 64
        %v742 = vpop.permute.xlu0 %741
        %vm743 = vcmask 523264
        %v744 = vsel %vm743, %v738, %v740
        %v745 = vsel %vm743, %v740, %v742
        %v749 = vadd.f32 %v724, %v738
        %v750 = vadd.f32 %v725, %v744
        %v751 = vadd.f32 %v726, %v745
        %v752 = vadd.s32 %v627, 4294967294
        %v753 = vadd.s32 %v628, 4294967294
        %vm754 = vcmp.ge.s32.totalorder %v752, 0
        %vm755 = vcmp.ge.s32.totalorder %v753, 0
        %vm756 = vcmp.lt.s32.totalorder %v752, 16
        %vm757 = vcmp.lt.s32.totalorder %v753, 16
        %vm758 = vmand %vm754, %vm756
        %vm759 = vmand %vm755, %vm757
        %v760 = vsel %vm758, 1, 0
        %v761 = vsel %vm759, 1, 0
        %vm762 = vcmp.eq.s32.totalorder %v760, 1
        %vm763 = vcmp.eq.s32.totalorder %v761, 1
        %767 = vrot.lane.b32.xlu0 %v749, 34
        %v768 = vpop.permute.xlu0 %767
        %769 = vrot.lane.b32.xlu0 %v750, 34
        %v770 = vpop.permute.xlu0 %769
        %771 = vrot.lane.b32.xlu0 %v751, 34
        %v772 = vpop.permute.xlu0 %771
        %vm773 = vcmask 277504
        %v774 = vsel %vm773, %v768, %v770
        %v775 = vsel %vm773, %v770, %v772
        %v778 = vsel %vm762, %v774, 0.0
        %v779 = vsel %vm763, %v775, 0.0
        %780 = vset.pattern.permute.xlu0 1
        %781 = vperm.xlu0 %780, %v632
        %v782 = vpop.permute.xlu0 %781
        %v784 = vmul.f32 %v638, %v782
        %v785 = vmul.f32 %v639, %v782
        %v786 = vmul.f32 %v640, %v782
        %787 = vset.pattern.permute.xlu0 6
        %788 = vperm.xlu0 %787, %v632
        %v789 = vpop.permute.xlu0 %788
        %v791 = vmul.f32 %v638, %v789
        %v792 = vmul.f32 %v639, %v789
        %v793 = vmul.f32 %v640, %v789
        %797 = vrot.lane.b32.xlu0 %v791, 112
        %v798 = vpop.permute.xlu0 %797
        %799 = vrot.lane.b32.xlu0 %v792, 112
        %v800 = vpop.permute.xlu0 %799
        %801 = vrot.lane.b32.xlu0 %v793, 112
        %v802 = vpop.permute.xlu0 %801
        %v803 = vsel %vm665, %v798, %v800
        %v804 = vsel %vm665, %v800, %v802
        %v808 = vadd.f32 %v784, %v803
        %v809 = vadd.f32 %v785, %v804
        %v810 = vadd.f32 %v786, %v802
        %811 = vset.pattern.permute.xlu0 11
        %812 = vperm.xlu0 %811, %v632
        %v813 = vpop.permute.xlu0 %812
        %v815 = vmul.f32 %v638, %v813
        %v816 = vmul.f32 %v639, %v813
        %v817 = vmul.f32 %v640, %v813
        %821 = vrot.lane.b32.xlu0 %v815, 96
        %v822 = vpop.permute.xlu0 %821
        %823 = vrot.lane.b32.xlu0 %v816, 96
        %v824 = vpop.permute.xlu0 %823
        %825 = vrot.lane.b32.xlu0 %v817, 96
        %v826 = vpop.permute.xlu0 %825
        %v827 = vsel %vm690, %v822, %v824
        %v828 = vsel %vm690, %v824, %v826
        %v832 = vadd.f32 %v808, %v827
        %v833 = vadd.f32 %v809, %v828
        %v834 = vadd.f32 %v810, %v826
        %835 = vset.pattern.permute.xlu0 16
        %836 = vperm.xlu0 %835, %v632
        %v837 = vpop.permute.xlu0 %836
        %v839 = vmul.f32 %v699, %v837
        %v840 = vmul.f32 %v700, %v837
        %v841 = vmul.f32 %v701, %v837
        %845 = vrot.lane.b32.xlu0 %v839, 80
        %v846 = vpop.permute.xlu0 %845
        %847 = vrot.lane.b32.xlu0 %v840, 80
        %v848 = vpop.permute.xlu0 %847
        %849 = vrot.lane.b32.xlu0 %v841, 80
        %v850 = vpop.permute.xlu0 %849
        %v851 = vsel %vm718, %v846, %v848
        %v852 = vsel %vm718, %v848, %v850
        %v856 = vadd.f32 %v832, %v846
        %v857 = vadd.f32 %v833, %v851
        %v858 = vadd.f32 %v834, %v852
        %859 = vset.pattern.permute.xlu0 21
        %860 = vperm.xlu0 %859, %v632
        %v861 = vpop.permute.xlu0 %860
        %v863 = vmul.f32 %v699, %v861
        %v864 = vmul.f32 %v700, %v861
        %v865 = vmul.f32 %v701, %v861
        %869 = vrot.lane.b32.xlu0 %v863, 64
        %v870 = vpop.permute.xlu0 %869
        %871 = vrot.lane.b32.xlu0 %v864, 64
        %v872 = vpop.permute.xlu0 %871
        %873 = vrot.lane.b32.xlu0 %v865, 64
        %v874 = vpop.permute.xlu0 %873
        %v875 = vsel %vm743, %v870, %v872
        %v876 = vsel %vm743, %v872, %v874
        %v880 = vadd.f32 %v856, %v870
        %v881 = vadd.f32 %v857, %v875
        %v882 = vadd.f32 %v858, %v876
        %v883 = vadd.s32 %v627, 4294967295
        %v884 = vadd.s32 %v628, 4294967295
        %vm885 = vcmp.ge.s32.totalorder %v883, 0
        %vm886 = vcmp.ge.s32.totalorder %v884, 0
        %vm887 = vcmp.lt.s32.totalorder %v883, 16
        %vm888 = vcmp.lt.s32.totalorder %v884, 16
        %vm889 = vmand %vm885, %vm887
        %vm890 = vmand %vm886, %vm888
        %v891 = vsel %vm889, 1, 0
        %v892 = vsel %vm890, 1, 0
        %vm893 = vcmp.eq.s32.totalorder %v891, 1
        %vm894 = vcmp.eq.s32.totalorder %v892, 1
        %898 = vrot.lane.b32.xlu0 %v880, 33
        %v899 = vpop.permute.xlu0 %898
        %900 = vrot.lane.b32.xlu0 %v881, 33
        %v901 = vpop.permute.xlu0 %900
        %902 = vrot.lane.b32.xlu0 %v882, 33
        %v903 = vpop.permute.xlu0 %902
        %vm904 = vcmask 269312
        %v905 = vsel %vm904, %v899, %v901
        %v906 = vsel %vm904, %v901, %v903
        %v909 = vsel %vm893, %v905, 0.0
        %v910 = vsel %vm894, %v906, 0.0
        %v911 = vadd.f32 %v778, %v909
        %v912 = vadd.f32 %v779, %v910
        %913 = vset.pattern.permute.xlu0 2
        %914 = vperm.xlu0 %913, %v632
        %v915 = vpop.permute.xlu0 %914
        %v917 = vmul.f32 %v638, %v915
        %v918 = vmul.f32 %v639, %v915
        %v919 = vmul.f32 %v640, %v915
        %920 = vset.pattern.permute.xlu0 7
        %921 = vperm.xlu0 %920, %v632
        %v922 = vpop.permute.xlu0 %921
        %v924 = vmul.f32 %v638, %v922
        %v925 = vmul.f32 %v639, %v922
        %v926 = vmul.f32 %v640, %v922
        %930 = vrot.lane.b32.xlu0 %v924, 112
        %v931 = vpop.permute.xlu0 %930
        %932 = vrot.lane.b32.xlu0 %v925, 112
        %v933 = vpop.permute.xlu0 %932
        %934 = vrot.lane.b32.xlu0 %v926, 112
        %v935 = vpop.permute.xlu0 %934
        %v936 = vsel %vm665, %v931, %v933
        %v937 = vsel %vm665, %v933, %v935
        %v941 = vadd.f32 %v917, %v936
        %v942 = vadd.f32 %v918, %v937
        %v943 = vadd.f32 %v919, %v935
        %944 = vset.pattern.permute.xlu0 12
        %945 = vperm.xlu0 %944, %v632
        %v946 = vpop.permute.xlu0 %945
        %v948 = vmul.f32 %v639, %v946
        %v949 = vmul.f32 %v640, %v946
        %952 = vrot.lane.b32.xlu0 %v948, 96
        %v953 = vpop.permute.xlu0 %952
        %954 = vrot.lane.b32.xlu0 %v949, 96
        %v955 = vpop.permute.xlu0 %954
        %v956 = vsel %vm690, %v953, %v955
        %v960 = vadd.f32 %v941, %v953
        %v961 = vadd.f32 %v942, %v956
        %v962 = vadd.f32 %v943, %v955
        %963 = vset.pattern.permute.xlu0 17
        %964 = vperm.xlu0 %963, %v632
        %v965 = vpop.permute.xlu0 %964
        %v967 = vmul.f32 %v699, %v965
        %v968 = vmul.f32 %v700, %v965
        %v969 = vmul.f32 %v701, %v965
        %973 = vrot.lane.b32.xlu0 %v967, 80
        %v974 = vpop.permute.xlu0 %973
        %975 = vrot.lane.b32.xlu0 %v968, 80
        %v976 = vpop.permute.xlu0 %975
        %977 = vrot.lane.b32.xlu0 %v969, 80
        %v978 = vpop.permute.xlu0 %977
        %v979 = vsel %vm718, %v974, %v976
        %v980 = vsel %vm718, %v976, %v978
        %v984 = vadd.f32 %v960, %v974
        %v985 = vadd.f32 %v961, %v979
        %v986 = vadd.f32 %v962, %v980
        %987 = vset.pattern.permute.xlu0 22
        %988 = vperm.xlu0 %987, %v632
        %v989 = vpop.permute.xlu0 %988
        %v991 = vmul.f32 %v699, %v989
        %v992 = vmul.f32 %v700, %v989
        %v993 = vmul.f32 %v701, %v989
        %997 = vrot.lane.b32.xlu0 %v991, 64
        %v998 = vpop.permute.xlu0 %997
        %999 = vrot.lane.b32.xlu0 %v992, 64
        %v1000 = vpop.permute.xlu0 %999
        %1001 = vrot.lane.b32.xlu0 %v993, 64
        %v1002 = vpop.permute.xlu0 %1001
        %v1003 = vsel %vm743, %v998, %v1000
        %v1004 = vsel %vm743, %v1000, %v1002
        %v1008 = vadd.f32 %v984, %v998
        %v1009 = vadd.f32 %v985, %v1003
        %v1010 = vadd.f32 %v986, %v1004
        %1014 = vrot.lane.b32.xlu0 %v1008, 32
        %v1015 = vpop.permute.xlu0 %1014
        %1016 = vrot.lane.b32.xlu0 %v1009, 32
        %v1017 = vpop.permute.xlu0 %1016
        %1018 = vrot.lane.b32.xlu0 %v1010, 32
        %v1019 = vpop.permute.xlu0 %1018
        %vm1020 = vcmask 261120
        %v1021 = vsel %vm1020, %v1015, %v1017
        %v1022 = vsel %vm1020, %v1017, %v1019
        %v1025 = vadd.f32 %v911, %v1021
        %v1026 = vadd.f32 %v912, %v1022
        %1027 = vset.pattern.permute.xlu0 3
        %1028 = vperm.xlu0 %1027, %v632
        %v1029 = vpop.permute.xlu0 %1028
        %v1031 = vmul.f32 %v638, %v1029
        %v1032 = vmul.f32 %v639, %v1029
        %v1033 = vmul.f32 %v640, %v1029
        %1034 = vset.pattern.permute.xlu0 8
        %1035 = vperm.xlu0 %1034, %v632
        %v1036 = vpop.permute.xlu0 %1035
        %v1038 = vmul.f32 %v638, %v1036
        %v1039 = vmul.f32 %v639, %v1036
        %v1040 = vmul.f32 %v640, %v1036
        %1044 = vrot.lane.b32.xlu0 %v1038, 112
        %v1045 = vpop.permute.xlu0 %1044
        %1046 = vrot.lane.b32.xlu0 %v1039, 112
        %v1047 = vpop.permute.xlu0 %1046
        %1048 = vrot.lane.b32.xlu0 %v1040, 112
        %v1049 = vpop.permute.xlu0 %1048
        %v1050 = vsel %vm665, %v1045, %v1047
        %v1051 = vsel %vm665, %v1047, %v1049
        %v1055 = vadd.f32 %v1031, %v1050
        %v1056 = vadd.f32 %v1032, %v1051
        %v1057 = vadd.f32 %v1033, %v1049
        %1058 = vset.pattern.permute.xlu0 13
        %1059 = vperm.xlu0 %1058, %v632
        %v1060 = vpop.permute.xlu0 %1059
        %v1062 = vmul.f32 %v699, %v1060
        %v1063 = vmul.f32 %v700, %v1060
        %v1064 = vmul.f32 %v701, %v1060
        %1068 = vrot.lane.b32.xlu0 %v1062, 96
        %v1069 = vpop.permute.xlu0 %1068
        %1070 = vrot.lane.b32.xlu0 %v1063, 96
        %v1071 = vpop.permute.xlu0 %1070
        %1072 = vrot.lane.b32.xlu0 %v1064, 96
        %v1073 = vpop.permute.xlu0 %1072
        %v1074 = vsel %vm690, %v1069, %v1071
        %v1075 = vsel %vm690, %v1071, %v1073
        %v1079 = vadd.f32 %v1055, %v1069
        %v1080 = vadd.f32 %v1056, %v1074
        %v1081 = vadd.f32 %v1057, %v1075
        %1082 = vset.pattern.permute.xlu0 18
        %1083 = vperm.xlu0 %1082, %v632
        %v1084 = vpop.permute.xlu0 %1083
        %v1086 = vmul.f32 %v699, %v1084
        %v1087 = vmul.f32 %v700, %v1084
        %v1088 = vmul.f32 %v701, %v1084
        %1092 = vrot.lane.b32.xlu0 %v1086, 80
        %v1093 = vpop.permute.xlu0 %1092
        %1094 = vrot.lane.b32.xlu0 %v1087, 80
        %v1095 = vpop.permute.xlu0 %1094
        %1096 = vrot.lane.b32.xlu0 %v1088, 80
        %v1097 = vpop.permute.xlu0 %1096
        %v1098 = vsel %vm718, %v1093, %v1095
        %v1099 = vsel %vm718, %v1095, %v1097
        %v1103 = vadd.f32 %v1079, %v1093
        %v1104 = vadd.f32 %v1080, %v1098
        %v1105 = vadd.f32 %v1081, %v1099
        %1106 = vset.pattern.permute.xlu0 23
        %1107 = vperm.xlu0 %1106, %v632
        %v1108 = vpop.permute.xlu0 %1107
        %v1110 = vmul.f32 %v699, %v1108
        %v1111 = vmul.f32 %v700, %v1108
        %v1112 = vmul.f32 %v701, %v1108
        %1116 = vrot.lane.b32.xlu0 %v1110, 64
        %v1117 = vpop.permute.xlu0 %1116
        %1118 = vrot.lane.b32.xlu0 %v1111, 64
        %v1119 = vpop.permute.xlu0 %1118
        %1120 = vrot.lane.b32.xlu0 %v1112, 64
        %v1121 = vpop.permute.xlu0 %1120
        %v1122 = vsel %vm743, %v1117, %v1119
        %v1123 = vsel %vm743, %v1119, %v1121
        %v1127 = vadd.f32 %v1103, %v1117
        %v1128 = vadd.f32 %v1104, %v1122
        %v1129 = vadd.f32 %v1105, %v1123
        %v1130 = vadd.s32 %v627, 1
        %v1131 = vadd.s32 %v628, 1
        %vm1132 = vcmp.ge.s32.totalorder %v1130, 0
        %vm1133 = vcmp.ge.s32.totalorder %v1131, 0
        %vm1134 = vcmp.lt.s32.totalorder %v1130, 16
        %vm1135 = vcmp.lt.s32.totalorder %v1131, 16
        %vm1136 = vmand %vm1132, %vm1134
        %vm1137 = vmand %vm1133, %vm1135
        %v1138 = vsel %vm1136, 1, 0
        %v1139 = vsel %vm1137, 1, 0
        %vm1140 = vcmp.eq.s32.totalorder %v1138, 1
        %vm1141 = vcmp.eq.s32.totalorder %v1139, 1
        %1145 = vrot.lane.b32.xlu0 %v1127, 31
        %v1146 = vpop.permute.xlu0 %1145
        %1147 = vrot.lane.b32.xlu0 %v1128, 31
        %v1148 = vpop.permute.xlu0 %1147
        %1149 = vrot.lane.b32.xlu0 %v1129, 31
        %v1150 = vpop.permute.xlu0 %1149
        %vm1151 = vcmask 252928
        %v1152 = vsel %vm1151, %v1146, %v1148
        %v1153 = vsel %vm1151, %v1148, %v1150
        %v1156 = vsel %vm1140, %v1152, 0.0
        %v1157 = vsel %vm1141, %v1153, 0.0
        %v1158 = vadd.f32 %v1025, %v1156
        %v1159 = vadd.f32 %v1026, %v1157
        %1160 = vset.pattern.permute.xlu0 4
        %1161 = vperm.xlu0 %1160, %v632
        %v1162 = vpop.permute.xlu0 %1161
        %v1164 = vmul.f32 %v638, %v1162
        %v1165 = vmul.f32 %v639, %v1162
        %v1166 = vmul.f32 %v640, %v1162
        %1167 = vset.pattern.permute.xlu0 9
        %1168 = vperm.xlu0 %1167, %v632
        %v1169 = vpop.permute.xlu0 %1168
        %v1171 = vmul.f32 %v638, %v1169
        %v1172 = vmul.f32 %v639, %v1169
        %v1173 = vmul.f32 %v640, %v1169
        %1177 = vrot.lane.b32.xlu0 %v1171, 112
        %v1178 = vpop.permute.xlu0 %1177
        %1179 = vrot.lane.b32.xlu0 %v1172, 112
        %v1180 = vpop.permute.xlu0 %1179
        %1181 = vrot.lane.b32.xlu0 %v1173, 112
        %v1182 = vpop.permute.xlu0 %1181
        %v1183 = vsel %vm665, %v1178, %v1180
        %v1184 = vsel %vm665, %v1180, %v1182
        %v1188 = vadd.f32 %v1164, %v1183
        %v1189 = vadd.f32 %v1165, %v1184
        %v1190 = vadd.f32 %v1166, %v1182
        %1191 = vset.pattern.permute.xlu0 14
        %1192 = vperm.xlu0 %1191, %v632
        %v1193 = vpop.permute.xlu0 %1192
        %v1195 = vmul.f32 %v699, %v1193
        %v1196 = vmul.f32 %v700, %v1193
        %v1197 = vmul.f32 %v701, %v1193
        %1201 = vrot.lane.b32.xlu0 %v1195, 96
        %v1202 = vpop.permute.xlu0 %1201
        %1203 = vrot.lane.b32.xlu0 %v1196, 96
        %v1204 = vpop.permute.xlu0 %1203
        %1205 = vrot.lane.b32.xlu0 %v1197, 96
        %v1206 = vpop.permute.xlu0 %1205
        %v1207 = vsel %vm690, %v1202, %v1204
        %v1208 = vsel %vm690, %v1204, %v1206
        %v1212 = vadd.f32 %v1188, %v1202
        %v1213 = vadd.f32 %v1189, %v1207
        %v1214 = vadd.f32 %v1190, %v1208
        %1215 = vset.pattern.permute.xlu0 19
        %1216 = vperm.xlu0 %1215, %v632
        %v1217 = vpop.permute.xlu0 %1216
        %v1219 = vmul.f32 %v699, %v1217
        %v1220 = vmul.f32 %v700, %v1217
        %v1221 = vmul.f32 %v701, %v1217
        %1225 = vrot.lane.b32.xlu0 %v1219, 80
        %v1226 = vpop.permute.xlu0 %1225
        %1227 = vrot.lane.b32.xlu0 %v1220, 80
        %v1228 = vpop.permute.xlu0 %1227
        %1229 = vrot.lane.b32.xlu0 %v1221, 80
        %v1230 = vpop.permute.xlu0 %1229
        %v1231 = vsel %vm718, %v1226, %v1228
        %v1232 = vsel %vm718, %v1228, %v1230
        %v1236 = vadd.f32 %v1212, %v1226
        %v1237 = vadd.f32 %v1213, %v1231
        %v1238 = vadd.f32 %v1214, %v1232
        %1239 = vset.pattern.permute.xlu0 24
        %1240 = vperm.xlu0 %1239, %v632
        %v1241 = vpop.permute.xlu0 %1240
        %v1243 = vmul.f32 %v699, %v1241
        %v1244 = vmul.f32 %v700, %v1241
        %v1245 = vmul.f32 %v701, %v1241
        %1249 = vrot.lane.b32.xlu0 %v1243, 64
        %v1250 = vpop.permute.xlu0 %1249
        %1251 = vrot.lane.b32.xlu0 %v1244, 64
        %v1252 = vpop.permute.xlu0 %1251
        %1253 = vrot.lane.b32.xlu0 %v1245, 64
        %v1254 = vpop.permute.xlu0 %1253
        %v1255 = vsel %vm743, %v1250, %v1252
        %v1256 = vsel %vm743, %v1252, %v1254
        %v1260 = vadd.f32 %v1236, %v1250
        %v1261 = vadd.f32 %v1237, %v1255
        %v1262 = vadd.f32 %v1238, %v1256
        %v1263 = vadd.s32 %v627, 2
        %v1264 = vadd.s32 %v628, 2
        %vm1265 = vcmp.ge.s32.totalorder %v1263, 0
        %vm1266 = vcmp.ge.s32.totalorder %v1264, 0
        %vm1267 = vcmp.lt.s32.totalorder %v1263, 16
        %vm1268 = vcmp.lt.s32.totalorder %v1264, 16
        %vm1269 = vmand %vm1265, %vm1267
        %vm1270 = vmand %vm1266, %vm1268
        %v1271 = vsel %vm1269, 1, 0
        %v1272 = vsel %vm1270, 1, 0
        %vm1273 = vcmp.eq.s32.totalorder %v1271, 1
        %vm1274 = vcmp.eq.s32.totalorder %v1272, 1
        %1278 = vrot.lane.b32.xlu0 %v1260, 30
        %v1279 = vpop.permute.xlu0 %1278
        %1280 = vrot.lane.b32.xlu0 %v1261, 30
        %v1281 = vpop.permute.xlu0 %1280
        %1282 = vrot.lane.b32.xlu0 %v1262, 30
        %v1283 = vpop.permute.xlu0 %1282
        %vm1284 = vcmask 244736
        %v1285 = vsel %vm1284, %v1279, %v1281
        %v1286 = vsel %vm1284, %v1281, %v1283
        %v1289 = vsel %vm1273, %v1285, 0.0
        %v1290 = vsel %vm1274, %v1286, 0.0
        %v1291 = vadd.f32 %v1158, %v1289
        %v1292 = vadd.f32 %v1159, %v1290
        %1294 = vset.pattern.permute.xlu0 0
        %1295 = vperm.xlu0 %1294, %v633
        %v1296 = vpop.permute.xlu0 %1295
        %v1298 = vadd.f32 %v1291, %v1296
        %v1299 = vadd.f32 %v1292, %v1296
        %v1300 = vld [vmem:[#allocation10] sm:$0xff]
        %v1301 = vld [vmem:[%s7] sm:$0xff]
        %1302 = vst [vmem:[#allocation3] sm:$0xff] 0.0
        %1303 = vst [vmem:[#allocation3 + $0x8] sm:$0xff] 0.0
        %1304 = vst [vmem:[#allocation3 + $0x20] sm:$0xff] 0.0
        %1305 = vst [vmem:[#allocation3 + $0x28] sm:$0xff] 0.0
        %1306 = vst [vmem:[#allocation3 + $0x10] sm:$0xff] %v1298
        %1307 = vst [vmem:[#allocation3 + $0x18] sm:$0xff] %v1299
        %v1308 = vld [vmem:[#allocation3] sm:$0xff]
        %v1309 = vld [vmem:[#allocation3 + $0x8] sm:$0xff]
        %v1310 = vld [vmem:[#allocation3 + $0x10] sm:$0xff]
        %1312 = vset.pattern.permute.xlu0 0
        %1313 = vperm.xlu0 %1312, %v1300
        %v1314 = vpop.permute.xlu0 %1313
        %v1316 = vmul.f32 %v1308, %v1314
        %v1317 = vmul.f32 %v1309, %v1314
        %v1318 = vmul.f32 %v1310, %v1314
        %v1319 = vld [vmem:[#allocation3 + $0x8] sm:$0xff]
        %v1320 = vld [vmem:[#allocation3 + $0x10] sm:$0xff]
        %v1321 = vld [vmem:[#allocation3 + $0x18] sm:$0xff]
        %1322 = vset.pattern.permute.xlu0 7
        %1323 = vperm.xlu0 %1322, %v1300
        %v1324 = vpop.permute.xlu0 %1323
        %v1326 = vmul.f32 %v1319, %v1324
        %v1327 = vmul.f32 %v1320, %v1324
        %v1328 = vmul.f32 %v1321, %v1324
        %1332 = vrot.lane.b32.xlu0 %v1326, 80
        %v1333 = vpop.permute.xlu0 %1332
        %1334 = vrot.lane.b32.xlu0 %v1327, 80
        %v1335 = vpop.permute.xlu0 %1334
        %1336 = vrot.lane.b32.xlu0 %v1328, 80
        %v1337 = vpop.permute.xlu0 %1336
        %v1338 = vsel %vm718, %v1333, %v1335
        %v1339 = vsel %vm718, %v1335, %v1337
        %v1343 = vadd.f32 %v1316, %v1333
        %v1344 = vadd.f32 %v1317, %v1338
        %v1345 = vadd.f32 %v1318, %v1339
        %1346 = vset.pattern.permute.xlu0 14
        %1347 = vperm.xlu0 %1346, %v1300
        %v1348 = vpop.permute.xlu0 %1347
        %v1350 = vmul.f32 %v1319, %v1348
        %v1351 = vmul.f32 %v1320, %v1348
        %v1352 = vmul.f32 %v1321, %v1348
        %1356 = vrot.lane.b32.xlu0 %v1350, 32
        %v1357 = vpop.permute.xlu0 %1356
        %1358 = vrot.lane.b32.xlu0 %v1351, 32
        %v1359 = vpop.permute.xlu0 %1358
        %1360 = vrot.lane.b32.xlu0 %v1352, 32
        %v1361 = vpop.permute.xlu0 %1360
        %v1362 = vsel %vm1020, %v1357, %v1359
        %v1363 = vsel %vm1020, %v1359, %v1361
        %v1367 = vadd.f32 %v1343, %v1357
        %v1368 = vadd.f32 %v1344, %v1362
        %v1369 = vadd.f32 %v1345, %v1363
        %1370 = vset.pattern.permute.xlu0 21
        %1371 = vperm.xlu0 %1370, %v1300
        %v1372 = vpop.permute.xlu0 %1371
        %v1374 = vmul.f32 %v1319, %v1372
        %v1375 = vmul.f32 %v1320, %v1372
        %v1376 = vmul.f32 %v1321, %v1372
        %1380 = vrot.lane.b32.xlu0 %v1374, 112
        %v1381 = vpop.permute.xlu0 %1380
        %1382 = vrot.lane.b32.xlu0 %v1375, 112
        %v1383 = vpop.permute.xlu0 %1382
        %1384 = vrot.lane.b32.xlu0 %v1376, 112
        %v1385 = vpop.permute.xlu0 %1384
        %v1386 = vsel %vm665, %v1381, %v1383
        %v1387 = vsel %vm665, %v1383, %v1385
        %v1391 = vadd.f32 %v1367, %v1386
        %v1392 = vadd.f32 %v1368, %v1387
        %v1393 = vadd.f32 %v1369, %v1385
        %v1394 = vld [vmem:[#allocation3 + $0x10] sm:$0xff]
        %v1395 = vld [vmem:[#allocation3 + $0x18] sm:$0xff]
        %v1396 = vld [vmem:[#allocation3 + $0x20] sm:$0xff]
        %1397 = vset.pattern.permute.xlu0 28
        %1398 = vperm.xlu0 %1397, %v1300
        %v1399 = vpop.permute.xlu0 %1398
        %v1401 = vmul.f32 %v1394, %v1399
        %v1402 = vmul.f32 %v1395, %v1399
        %v1403 = vmul.f32 %v1396, %v1399
        %1407 = vrot.lane.b32.xlu0 %v1401, 64
        %v1408 = vpop.permute.xlu0 %1407
        %1409 = vrot.lane.b32.xlu0 %v1402, 64
        %v1410 = vpop.permute.xlu0 %1409
        %1411 = vrot.lane.b32.xlu0 %v1403, 64
        %v1412 = vpop.permute.xlu0 %1411
        %v1413 = vsel %vm743, %v1408, %v1410
        %v1414 = vsel %vm743, %v1410, %v1412
        %v1418 = vadd.f32 %v1391, %v1408
        %v1419 = vadd.f32 %v1392, %v1413
        %v1420 = vadd.f32 %v1393, %v1414
        %1421 = vset.pattern.permute.xlu0 35
        %1422 = vperm.xlu0 %1421, %v1300
        %v1423 = vpop.permute.xlu0 %1422
        %v1425 = vmul.f32 %v1394, %v1423
        %v1426 = vmul.f32 %v1395, %v1423
        %v1427 = vmul.f32 %v1396, %v1423
        %1431 = vrot.lane.b32.xlu0 %v1425, 16
        %v1432 = vpop.permute.xlu0 %1431
        %1433 = vrot.lane.b32.xlu0 %v1426, 16
        %v1434 = vpop.permute.xlu0 %1433
        %1435 = vrot.lane.b32.xlu0 %v1427, 16
        %v1436 = vpop.permute.xlu0 %1435
        %vm1437 = vcmask 130048
        %v1438 = vsel %vm1437, %v1432, %v1434
        %v1439 = vsel %vm1437, %v1434, %v1436
        %v1443 = vadd.f32 %v1418, %v1432
        %v1444 = vadd.f32 %v1419, %v1438
        %v1445 = vadd.f32 %v1420, %v1439
        %v1446 = vld [vmem:[#allocation3 + $0x18] sm:$0xff]
        %v1447 = vld [vmem:[#allocation3 + $0x20] sm:$0xff]
        %v1448 = vld [vmem:[#allocation3 + $0x28] sm:$0xff]
        %1449 = vset.pattern.permute.xlu0 42
        %1450 = vperm.xlu0 %1449, %v1300
        %v1451 = vpop.permute.xlu0 %1450
        %v1453 = vmul.f32 %v1446, %v1451
        %v1454 = vmul.f32 %v1447, %v1451
        %v1455 = vmul.f32 %v1448, %v1451
        %1459 = vrot.lane.b32.xlu0 %v1453, 96
        %v1460 = vpop.permute.xlu0 %1459
        %1461 = vrot.lane.b32.xlu0 %v1454, 96
        %v1462 = vpop.permute.xlu0 %1461
        %1463 = vrot.lane.b32.xlu0 %v1455, 96
        %v1464 = vpop.permute.xlu0 %1463
        %v1465 = vsel %vm690, %v1460, %v1462
        %v1466 = vsel %vm690, %v1462, %v1464
        %v1470 = vadd.f32 %v1443, %v1460
        %v1471 = vadd.f32 %v1444, %v1465
        %v1472 = vadd.f32 %v1445, %v1466
        %v1473 = vadd.s32 %v627, 4294967287
        %v1474 = vadd.s32 %v628, 4294967287
        %vm1475 = vcmp.ge.s32.totalorder %v1473, 0
        %vm1476 = vcmp.ge.s32.totalorder %v1474, 0
        %vm1477 = vcmp.lt.s32.totalorder %v1473, 16
        %vm1478 = vcmp.lt.s32.totalorder %v1474, 16
        %vm1479 = vmand %vm1475, %vm1477
        %vm1480 = vmand %vm1476, %vm1478
        %v1481 = vsel %vm1479, 1, 0
        %v1482 = vsel %vm1480, 1, 0
        %vm1483 = vcmp.eq.s32.totalorder %v1481, 1
        %vm1484 = vcmp.eq.s32.totalorder %v1482, 1
        %1488 = vrot.lane.b32.xlu0 %v1470, 25
        %v1489 = vpop.permute.xlu0 %1488
        %1490 = vrot.lane.b32.xlu0 %v1471, 25
        %v1491 = vpop.permute.xlu0 %1490
        %1492 = vrot.lane.b32.xlu0 %v1472, 25
        %v1493 = vpop.permute.xlu0 %1492
        %vm1494 = vcmask 203776
        %v1495 = vsel %vm1494, %v1489, %v1491
        %v1496 = vsel %vm1494, %v1491, %v1493
        %v1499 = vsel %vm1483, %v1495, 0.0
        %v1500 = vsel %vm1484, %v1496, 0.0
        %1501 = vset.pattern.permute.xlu0 1
        %1502 = vperm.xlu0 %1501, %v1300
        %v1503 = vpop.permute.xlu0 %1502
        %v1505 = vmul.f32 %v1308, %v1503
        %v1506 = vmul.f32 %v1309, %v1503
        %v1507 = vmul.f32 %v1310, %v1503
        %1508 = vset.pattern.permute.xlu0 8
        %1509 = vperm.xlu0 %1508, %v1300
        %v1510 = vpop.permute.xlu0 %1509
        %v1512 = vmul.f32 %v1319, %v1510
        %v1513 = vmul.f32 %v1320, %v1510
        %v1514 = vmul.f32 %v1321, %v1510
        %1518 = vrot.lane.b32.xlu0 %v1512, 80
        %v1519 = vpop.permute.xlu0 %1518
        %1520 = vrot.lane.b32.xlu0 %v1513, 80
        %v1521 = vpop.permute.xlu0 %1520
        %1522 = vrot.lane.b32.xlu0 %v1514, 80
        %v1523 = vpop.permute.xlu0 %1522
        %v1524 = vsel %vm718, %v1519, %v1521
        %v1525 = vsel %vm718, %v1521, %v1523
        %v1529 = vadd.f32 %v1505, %v1519
        %v1530 = vadd.f32 %v1506, %v1524
        %v1531 = vadd.f32 %v1507, %v1525
        %1532 = vset.pattern.permute.xlu0 15
        %1533 = vperm.xlu0 %1532, %v1300
        %v1534 = vpop.permute.xlu0 %1533
        %v1536 = vmul.f32 %v1319, %v1534
        %v1537 = vmul.f32 %v1320, %v1534
        %v1538 = vmul.f32 %v1321, %v1534
        %1542 = vrot.lane.b32.xlu0 %v1536, 32
        %v1543 = vpop.permute.xlu0 %1542
        %1544 = vrot.lane.b32.xlu0 %v1537, 32
        %v1545 = vpop.permute.xlu0 %1544
        %1546 = vrot.lane.b32.xlu0 %v1538, 32
        %v1547 = vpop.permute.xlu0 %1546
        %v1548 = vsel %vm1020, %v1543, %v1545
        %v1549 = vsel %vm1020, %v1545, %v1547
        %v1553 = vadd.f32 %v1529, %v1543
        %v1554 = vadd.f32 %v1530, %v1548
        %v1555 = vadd.f32 %v1531, %v1549
        %1556 = vset.pattern.permute.xlu0 22
        %1557 = vperm.xlu0 %1556, %v1300
        %v1558 = vpop.permute.xlu0 %1557
        %v1560 = vmul.f32 %v1319, %v1558
        %v1561 = vmul.f32 %v1320, %v1558
        %v1562 = vmul.f32 %v1321, %v1558
        %1566 = vrot.lane.b32.xlu0 %v1560, 112
        %v1567 = vpop.permute.xlu0 %1566
        %1568 = vrot.lane.b32.xlu0 %v1561, 112
        %v1569 = vpop.permute.xlu0 %1568
        %1570 = vrot.lane.b32.xlu0 %v1562, 112
        %v1571 = vpop.permute.xlu0 %1570
        %v1572 = vsel %vm665, %v1567, %v1569
        %v1573 = vsel %vm665, %v1569, %v1571
        %v1577 = vadd.f32 %v1553, %v1572
        %v1578 = vadd.f32 %v1554, %v1573
        %v1579 = vadd.f32 %v1555, %v1571
        %1580 = vset.pattern.permute.xlu0 29
        %1581 = vperm.xlu0 %1580, %v1300
        %v1582 = vpop.permute.xlu0 %1581
        %v1584 = vmul.f32 %v1394, %v1582
        %v1585 = vmul.f32 %v1395, %v1582
        %v1586 = vmul.f32 %v1396, %v1582
        %1590 = vrot.lane.b32.xlu0 %v1584, 64
        %v1591 = vpop.permute.xlu0 %1590
        %1592 = vrot.lane.b32.xlu0 %v1585, 64
        %v1593 = vpop.permute.xlu0 %1592
        %1594 = vrot.lane.b32.xlu0 %v1586, 64
        %v1595 = vpop.permute.xlu0 %1594
        %v1596 = vsel %vm743, %v1591, %v1593
        %v1597 = vsel %vm743, %v1593, %v1595
        %v1601 = vadd.f32 %v1577, %v1591
        %v1602 = vadd.f32 %v1578, %v1596
        %v1603 = vadd.f32 %v1579, %v1597
        %1604 = vset.pattern.permute.xlu0 36
        %1605 = vperm.xlu0 %1604, %v1300
        %v1606 = vpop.permute.xlu0 %1605
        %v1608 = vmul.f32 %v1394, %v1606
        %v1609 = vmul.f32 %v1395, %v1606
        %v1610 = vmul.f32 %v1396, %v1606
        %1614 = vrot.lane.b32.xlu0 %v1608, 16
        %v1615 = vpop.permute.xlu0 %1614
        %1616 = vrot.lane.b32.xlu0 %v1609, 16
        %v1617 = vpop.permute.xlu0 %1616
        %1618 = vrot.lane.b32.xlu0 %v1610, 16
        %v1619 = vpop.permute.xlu0 %1618
        %v1620 = vsel %vm1437, %v1615, %v1617
        %v1621 = vsel %vm1437, %v1617, %v1619
        %v1625 = vadd.f32 %v1601, %v1615
        %v1626 = vadd.f32 %v1602, %v1620
        %v1627 = vadd.f32 %v1603, %v1621
        %1628 = vset.pattern.permute.xlu0 43
        %1629 = vperm.xlu0 %1628, %v1300
        %v1630 = vpop.permute.xlu0 %1629
        %v1632 = vmul.f32 %v1446, %v1630
        %v1633 = vmul.f32 %v1447, %v1630
        %v1634 = vmul.f32 %v1448, %v1630
        %1638 = vrot.lane.b32.xlu0 %v1632, 96
        %v1639 = vpop.permute.xlu0 %1638
        %1640 = vrot.lane.b32.xlu0 %v1633, 96
        %v1641 = vpop.permute.xlu0 %1640
        %1642 = vrot.lane.b32.xlu0 %v1634, 96
        %v1643 = vpop.permute.xlu0 %1642
        %v1644 = vsel %vm690, %v1639, %v1641
        %v1645 = vsel %vm690, %v1641, %v1643
        %v1649 = vadd.f32 %v1625, %v1639
        %v1650 = vadd.f32 %v1626, %v1644
        %v1651 = vadd.f32 %v1627, %v1645
        %v1652 = vadd.s32 %v627, 4294967290
        %v1653 = vadd.s32 %v628, 4294967290
        %vm1654 = vcmp.ge.s32.totalorder %v1652, 0
        %vm1655 = vcmp.ge.s32.totalorder %v1653, 0
        %vm1656 = vcmp.lt.s32.totalorder %v1652, 16
        %vm1657 = vcmp.lt.s32.totalorder %v1653, 16
        %vm1658 = vmand %vm1654, %vm1656
        %vm1659 = vmand %vm1655, %vm1657
        %v1660 = vsel %vm1658, 1, 0
        %v1661 = vsel %vm1659, 1, 0
        %vm1662 = vcmp.eq.s32.totalorder %v1660, 1
        %vm1663 = vcmp.eq.s32.totalorder %v1661, 1
        %1667 = vrot.lane.b32.xlu0 %v1649, 22
        %v1668 = vpop.permute.xlu0 %1667
        %1669 = vrot.lane.b32.xlu0 %v1650, 22
        %v1670 = vpop.permute.xlu0 %1669
        %1671 = vrot.lane.b32.xlu0 %v1651, 22
        %v1672 = vpop.permute.xlu0 %1671
        %vm1673 = vcmask 179200
        %v1674 = vsel %vm1673, %v1668, %v1670
        %v1675 = vsel %vm1673, %v1670, %v1672
        %v1678 = vsel %vm1662, %v1674, 0.0
        %v1679 = vsel %vm1663, %v1675, 0.0
        %v1680 = vadd.f32 %v1499, %v1678
        %v1681 = vadd.f32 %v1500, %v1679
        %1682 = vset.pattern.permute.xlu0 2
        %1683 = vperm.xlu0 %1682, %v1300
        %v1684 = vpop.permute.xlu0 %1683
        %v1686 = vmul.f32 %v1308, %v1684
        %v1687 = vmul.f32 %v1309, %v1684
        %v1688 = vmul.f32 %v1310, %v1684
        %1689 = vset.pattern.permute.xlu0 9
        %1690 = vperm.xlu0 %1689, %v1300
        %v1691 = vpop.permute.xlu0 %1690
        %v1693 = vmul.f32 %v1319, %v1691
        %v1694 = vmul.f32 %v1320, %v1691
        %v1695 = vmul.f32 %v1321, %v1691
        %1699 = vrot.lane.b32.xlu0 %v1693, 80
        %v1700 = vpop.permute.xlu0 %1699
        %1701 = vrot.lane.b32.xlu0 %v1694, 80
        %v1702 = vpop.permute.xlu0 %1701
        %1703 = vrot.lane.b32.xlu0 %v1695, 80
        %v1704 = vpop.permute.xlu0 %1703
        %v1705 = vsel %vm718, %v1700, %v1702
        %v1706 = vsel %vm718, %v1702, %v1704
        %v1710 = vadd.f32 %v1686, %v1700
        %v1711 = vadd.f32 %v1687, %v1705
        %v1712 = vadd.f32 %v1688, %v1706
        %1713 = vset.pattern.permute.xlu0 16
        %1714 = vperm.xlu0 %1713, %v1300
        %v1715 = vpop.permute.xlu0 %1714
        %v1717 = vmul.f32 %v1319, %v1715
        %v1718 = vmul.f32 %v1320, %v1715
        %v1719 = vmul.f32 %v1321, %v1715
        %1723 = vrot.lane.b32.xlu0 %v1717, 32
        %v1724 = vpop.permute.xlu0 %1723
        %1725 = vrot.lane.b32.xlu0 %v1718, 32
        %v1726 = vpop.permute.xlu0 %1725
        %1727 = vrot.lane.b32.xlu0 %v1719, 32
        %v1728 = vpop.permute.xlu0 %1727
        %v1729 = vsel %vm1020, %v1724, %v1726
        %v1730 = vsel %vm1020, %v1726, %v1728
        %v1734 = vadd.f32 %v1710, %v1724
        %v1735 = vadd.f32 %v1711, %v1729
        %v1736 = vadd.f32 %v1712, %v1730
        %1737 = vset.pattern.permute.xlu0 23
        %1738 = vperm.xlu0 %1737, %v1300
        %v1739 = vpop.permute.xlu0 %1738
        %v1741 = vmul.f32 %v1319, %v1739
        %v1742 = vmul.f32 %v1320, %v1739
        %v1743 = vmul.f32 %v1321, %v1739
        %1747 = vrot.lane.b32.xlu0 %v1741, 112
        %v1748 = vpop.permute.xlu0 %1747
        %1749 = vrot.lane.b32.xlu0 %v1742, 112
        %v1750 = vpop.permute.xlu0 %1749
        %1751 = vrot.lane.b32.xlu0 %v1743, 112
        %v1752 = vpop.permute.xlu0 %1751
        %v1753 = vsel %vm665, %v1748, %v1750
        %v1754 = vsel %vm665, %v1750, %v1752
        %v1758 = vadd.f32 %v1734, %v1753
        %v1759 = vadd.f32 %v1735, %v1754
        %v1760 = vadd.f32 %v1736, %v1752
        %1761 = vset.pattern.permute.xlu0 30
        %1762 = vperm.xlu0 %1761, %v1300
        %v1763 = vpop.permute.xlu0 %1762
        %v1765 = vmul.f32 %v1394, %v1763
        %v1766 = vmul.f32 %v1395, %v1763
        %v1767 = vmul.f32 %v1396, %v1763
        %1771 = vrot.lane.b32.xlu0 %v1765, 64
        %v1772 = vpop.permute.xlu0 %1771
        %1773 = vrot.lane.b32.xlu0 %v1766, 64
        %v1774 = vpop.permute.xlu0 %1773
        %1775 = vrot.lane.b32.xlu0 %v1767, 64
        %v1776 = vpop.permute.xlu0 %1775
        %v1777 = vsel %vm743, %v1772, %v1774
        %v1778 = vsel %vm743, %v1774, %v1776
        %v1782 = vadd.f32 %v1758, %v1772
        %v1783 = vadd.f32 %v1759, %v1777
        %v1784 = vadd.f32 %v1760, %v1778
        %1785 = vset.pattern.permute.xlu0 37
        %1786 = vperm.xlu0 %1785, %v1300
        %v1787 = vpop.permute.xlu0 %1786
        %v1789 = vmul.f32 %v1394, %v1787
        %v1790 = vmul.f32 %v1395, %v1787
        %v1791 = vmul.f32 %v1396, %v1787
        %1795 = vrot.lane.b32.xlu0 %v1789, 16
        %v1796 = vpop.permute.xlu0 %1795
        %1797 = vrot.lane.b32.xlu0 %v1790, 16
        %v1798 = vpop.permute.xlu0 %1797
        %1799 = vrot.lane.b32.xlu0 %v1791, 16
        %v1800 = vpop.permute.xlu0 %1799
        %v1801 = vsel %vm1437, %v1796, %v1798
        %v1802 = vsel %vm1437, %v1798, %v1800
        %v1806 = vadd.f32 %v1782, %v1796
        %v1807 = vadd.f32 %v1783, %v1801
        %v1808 = vadd.f32 %v1784, %v1802
        %1809 = vset.pattern.permute.xlu0 44
        %1810 = vperm.xlu0 %1809, %v1300
        %v1811 = vpop.permute.xlu0 %1810
        %v1813 = vmul.f32 %v1446, %v1811
        %v1814 = vmul.f32 %v1447, %v1811
        %v1815 = vmul.f32 %v1448, %v1811
        %1819 = vrot.lane.b32.xlu0 %v1813, 96
        %v1820 = vpop.permute.xlu0 %1819
        %1821 = vrot.lane.b32.xlu0 %v1814, 96
        %v1822 = vpop.permute.xlu0 %1821
        %1823 = vrot.lane.b32.xlu0 %v1815, 96
        %v1824 = vpop.permute.xlu0 %1823
        %v1825 = vsel %vm690, %v1820, %v1822
        %v1826 = vsel %vm690, %v1822, %v1824
        %v1830 = vadd.f32 %v1806, %v1820
        %v1831 = vadd.f32 %v1807, %v1825
        %v1832 = vadd.f32 %v1808, %v1826
        %v1833 = vadd.s32 %v627, 4294967293
        %v1834 = vadd.s32 %v628, 4294967293
        %vm1835 = vcmp.ge.s32.totalorder %v1833, 0
        %vm1836 = vcmp.ge.s32.totalorder %v1834, 0
        %vm1837 = vcmp.lt.s32.totalorder %v1833, 16
        %vm1838 = vcmp.lt.s32.totalorder %v1834, 16
        %vm1839 = vmand %vm1835, %vm1837
        %vm1840 = vmand %vm1836, %vm1838
        %v1841 = vsel %vm1839, 1, 0
        %v1842 = vsel %vm1840, 1, 0
        %vm1843 = vcmp.eq.s32.totalorder %v1841, 1
        %vm1844 = vcmp.eq.s32.totalorder %v1842, 1
        %1848 = vrot.lane.b32.xlu0 %v1830, 19
        %v1849 = vpop.permute.xlu0 %1848
        %1850 = vrot.lane.b32.xlu0 %v1831, 19
        %v1851 = vpop.permute.xlu0 %1850
        %1852 = vrot.lane.b32.xlu0 %v1832, 19
        %v1853 = vpop.permute.xlu0 %1852
        %vm1854 = vcmask 154624
        %v1855 = vsel %vm1854, %v1849, %v1851
        %v1856 = vsel %vm1854, %v1851, %v1853
        %v1859 = vsel %vm1843, %v1855, 0.0
        %v1860 = vsel %vm1844, %v1856, 0.0
        %v1861 = vadd.f32 %v1680, %v1859
        %v1862 = vadd.f32 %v1681, %v1860
        %1863 = vset.pattern.permute.xlu0 3
        %1864 = vperm.xlu0 %1863, %v1300
        %v1865 = vpop.permute.xlu0 %1864
        %v1867 = vmul.f32 %v1308, %v1865
        %v1868 = vmul.f32 %v1309, %v1865
        %v1869 = vmul.f32 %v1310, %v1865
        %1870 = vset.pattern.permute.xlu0 10
        %1871 = vperm.xlu0 %1870, %v1300
        %v1872 = vpop.permute.xlu0 %1871
        %v1874 = vmul.f32 %v1319, %v1872
        %v1875 = vmul.f32 %v1320, %v1872
        %v1876 = vmul.f32 %v1321, %v1872
        %1880 = vrot.lane.b32.xlu0 %v1874, 80
        %v1881 = vpop.permute.xlu0 %1880
        %1882 = vrot.lane.b32.xlu0 %v1875, 80
        %v1883 = vpop.permute.xlu0 %1882
        %1884 = vrot.lane.b32.xlu0 %v1876, 80
        %v1885 = vpop.permute.xlu0 %1884
        %v1886 = vsel %vm718, %v1881, %v1883
        %v1887 = vsel %vm718, %v1883, %v1885
        %v1891 = vadd.f32 %v1867, %v1881
        %v1892 = vadd.f32 %v1868, %v1886
        %v1893 = vadd.f32 %v1869, %v1887
        %1894 = vset.pattern.permute.xlu0 17
        %1895 = vperm.xlu0 %1894, %v1300
        %v1896 = vpop.permute.xlu0 %1895
        %v1898 = vmul.f32 %v1319, %v1896
        %v1899 = vmul.f32 %v1320, %v1896
        %v1900 = vmul.f32 %v1321, %v1896
        %1904 = vrot.lane.b32.xlu0 %v1898, 32
        %v1905 = vpop.permute.xlu0 %1904
        %1906 = vrot.lane.b32.xlu0 %v1899, 32
        %v1907 = vpop.permute.xlu0 %1906
        %1908 = vrot.lane.b32.xlu0 %v1900, 32
        %v1909 = vpop.permute.xlu0 %1908
        %v1910 = vsel %vm1020, %v1905, %v1907
        %v1911 = vsel %vm1020, %v1907, %v1909
        %v1915 = vadd.f32 %v1891, %v1905
        %v1916 = vadd.f32 %v1892, %v1910
        %v1917 = vadd.f32 %v1893, %v1911
        %1918 = vset.pattern.permute.xlu0 24
        %1919 = vperm.xlu0 %1918, %v1300
        %v1920 = vpop.permute.xlu0 %1919
        %v1922 = vmul.f32 %v1320, %v1920
        %v1923 = vmul.f32 %v1321, %v1920
        %1926 = vrot.lane.b32.xlu0 %v1922, 112
        %v1927 = vpop.permute.xlu0 %1926
        %1928 = vrot.lane.b32.xlu0 %v1923, 112
        %v1929 = vpop.permute.xlu0 %1928
        %v1930 = vsel %vm665, %v1927, %v1929
        %v1934 = vadd.f32 %v1915, %v1927
        %v1935 = vadd.f32 %v1916, %v1930
        %v1936 = vadd.f32 %v1917, %v1929
        %1937 = vset.pattern.permute.xlu0 31
        %1938 = vperm.xlu0 %1937, %v1300
        %v1939 = vpop.permute.xlu0 %1938
        %v1941 = vmul.f32 %v1394, %v1939
        %v1942 = vmul.f32 %v1395, %v1939
        %v1943 = vmul.f32 %v1396, %v1939
        %1947 = vrot.lane.b32.xlu0 %v1941, 64
        %v1948 = vpop.permute.xlu0 %1947
        %1949 = vrot.lane.b32.xlu0 %v1942, 64
        %v1950 = vpop.permute.xlu0 %1949
        %1951 = vrot.lane.b32.xlu0 %v1943, 64
        %v1952 = vpop.permute.xlu0 %1951
        %v1953 = vsel %vm743, %v1948, %v1950
        %v1954 = vsel %vm743, %v1950, %v1952
        %v1958 = vadd.f32 %v1934, %v1948
        %v1959 = vadd.f32 %v1935, %v1953
        %v1960 = vadd.f32 %v1936, %v1954
        %1961 = vset.pattern.permute.xlu0 38
        %1962 = vperm.xlu0 %1961, %v1300
        %v1963 = vpop.permute.xlu0 %1962
        %v1965 = vmul.f32 %v1394, %v1963
        %v1966 = vmul.f32 %v1395, %v1963
        %v1967 = vmul.f32 %v1396, %v1963
        %1971 = vrot.lane.b32.xlu0 %v1965, 16
        %v1972 = vpop.permute.xlu0 %1971
        %1973 = vrot.lane.b32.xlu0 %v1966, 16
        %v1974 = vpop.permute.xlu0 %1973
        %1975 = vrot.lane.b32.xlu0 %v1967, 16
        %v1976 = vpop.permute.xlu0 %1975
        %v1977 = vsel %vm1437, %v1972, %v1974
        %v1978 = vsel %vm1437, %v1974, %v1976
        %v1982 = vadd.f32 %v1958, %v1972
        %v1983 = vadd.f32 %v1959, %v1977
        %v1984 = vadd.f32 %v1960, %v1978
        %1985 = vset.pattern.permute.xlu0 45
        %1986 = vperm.xlu0 %1985, %v1300
        %v1987 = vpop.permute.xlu0 %1986
        %v1989 = vmul.f32 %v1446, %v1987
        %v1990 = vmul.f32 %v1447, %v1987
        %v1991 = vmul.f32 %v1448, %v1987
        %1995 = vrot.lane.b32.xlu0 %v1989, 96
        %v1996 = vpop.permute.xlu0 %1995
        %1997 = vrot.lane.b32.xlu0 %v1990, 96
        %v1998 = vpop.permute.xlu0 %1997
        %1999 = vrot.lane.b32.xlu0 %v1991, 96
        %v2000 = vpop.permute.xlu0 %1999
        %v2001 = vsel %vm690, %v1996, %v1998
        %v2002 = vsel %vm690, %v1998, %v2000
        %v2006 = vadd.f32 %v1982, %v1996
        %v2007 = vadd.f32 %v1983, %v2001
        %v2008 = vadd.f32 %v1984, %v2002
        %2012 = vrot.lane.b32.xlu0 %v2006, 16
        %v2013 = vpop.permute.xlu0 %2012
        %2014 = vrot.lane.b32.xlu0 %v2007, 16
        %v2015 = vpop.permute.xlu0 %2014
        %2016 = vrot.lane.b32.xlu0 %v2008, 16
        %v2017 = vpop.permute.xlu0 %2016
        %v2018 = vsel %vm1437, %v2013, %v2015
        %v2019 = vsel %vm1437, %v2015, %v2017
        %v2022 = vadd.f32 %v1861, %v2018
        %v2023 = vadd.f32 %v1862, %v2019
        %2024 = vset.pattern.permute.xlu0 4
        %2025 = vperm.xlu0 %2024, %v1300
        %v2026 = vpop.permute.xlu0 %2025
        %v2028 = vmul.f32 %v1308, %v2026
        %v2029 = vmul.f32 %v1309, %v2026
        %v2030 = vmul.f32 %v1310, %v2026
        %2031 = vset.pattern.permute.xlu0 11
        %2032 = vperm.xlu0 %2031, %v1300
        %v2033 = vpop.permute.xlu0 %2032
        %v2035 = vmul.f32 %v1319, %v2033
        %v2036 = vmul.f32 %v1320, %v2033
        %v2037 = vmul.f32 %v1321, %v2033
        %2041 = vrot.lane.b32.xlu0 %v2035, 80
        %v2042 = vpop.permute.xlu0 %2041
        %2043 = vrot.lane.b32.xlu0 %v2036, 80
        %v2044 = vpop.permute.xlu0 %2043
        %2045 = vrot.lane.b32.xlu0 %v2037, 80
        %v2046 = vpop.permute.xlu0 %2045
        %v2047 = vsel %vm718, %v2042, %v2044
        %v2048 = vsel %vm718, %v2044, %v2046
        %v2052 = vadd.f32 %v2028, %v2042
        %v2053 = vadd.f32 %v2029, %v2047
        %v2054 = vadd.f32 %v2030, %v2048
        %2055 = vset.pattern.permute.xlu0 18
        %2056 = vperm.xlu0 %2055, %v1300
        %v2057 = vpop.permute.xlu0 %2056
        %v2059 = vmul.f32 %v1319, %v2057
        %v2060 = vmul.f32 %v1320, %v2057
        %v2061 = vmul.f32 %v1321, %v2057
        %2065 = vrot.lane.b32.xlu0 %v2059, 32
        %v2066 = vpop.permute.xlu0 %2065
        %2067 = vrot.lane.b32.xlu0 %v2060, 32
        %v2068 = vpop.permute.xlu0 %2067
        %2069 = vrot.lane.b32.xlu0 %v2061, 32
        %v2070 = vpop.permute.xlu0 %2069
        %v2071 = vsel %vm1020, %v2066, %v2068
        %v2072 = vsel %vm1020, %v2068, %v2070
        %v2076 = vadd.f32 %v2052, %v2066
        %v2077 = vadd.f32 %v2053, %v2071
        %v2078 = vadd.f32 %v2054, %v2072
        %2079 = vset.pattern.permute.xlu0 25
        %2080 = vperm.xlu0 %2079, %v1300
        %v2081 = vpop.permute.xlu0 %2080
        %v2083 = vmul.f32 %v1394, %v2081
        %v2084 = vmul.f32 %v1395, %v2081
        %v2085 = vmul.f32 %v1396, %v2081
        %2089 = vrot.lane.b32.xlu0 %v2083, 112
        %v2090 = vpop.permute.xlu0 %2089
        %2091 = vrot.lane.b32.xlu0 %v2084, 112
        %v2092 = vpop.permute.xlu0 %2091
        %2093 = vrot.lane.b32.xlu0 %v2085, 112
        %v2094 = vpop.permute.xlu0 %2093
        %v2095 = vsel %vm665, %v2090, %v2092
        %v2096 = vsel %vm665, %v2092, %v2094
        %v2100 = vadd.f32 %v2076, %v2090
        %v2101 = vadd.f32 %v2077, %v2095
        %v2102 = vadd.f32 %v2078, %v2096
        %2103 = vset.pattern.permute.xlu0 32
        %2104 = vperm.xlu0 %2103, %v1300
        %v2105 = vpop.permute.xlu0 %2104
        %v2107 = vmul.f32 %v1394, %v2105
        %v2108 = vmul.f32 %v1395, %v2105
        %v2109 = vmul.f32 %v1396, %v2105
        %2113 = vrot.lane.b32.xlu0 %v2107, 64
        %v2114 = vpop.permute.xlu0 %2113
        %2115 = vrot.lane.b32.xlu0 %v2108, 64
        %v2116 = vpop.permute.xlu0 %2115
        %2117 = vrot.lane.b32.xlu0 %v2109, 64
        %v2118 = vpop.permute.xlu0 %2117
        %v2119 = vsel %vm743, %v2114, %v2116
        %v2120 = vsel %vm743, %v2116, %v2118
        %v2124 = vadd.f32 %v2100, %v2114
        %v2125 = vadd.f32 %v2101, %v2119
        %v2126 = vadd.f32 %v2102, %v2120
        %2127 = vset.pattern.permute.xlu0 39
        %2128 = vperm.xlu0 %2127, %v1300
        %v2129 = vpop.permute.xlu0 %2128
        %v2131 = vmul.f32 %v1394, %v2129
        %v2132 = vmul.f32 %v1395, %v2129
        %v2133 = vmul.f32 %v1396, %v2129
        %2137 = vrot.lane.b32.xlu0 %v2131, 16
        %v2138 = vpop.permute.xlu0 %2137
        %2139 = vrot.lane.b32.xlu0 %v2132, 16
        %v2140 = vpop.permute.xlu0 %2139
        %2141 = vrot.lane.b32.xlu0 %v2133, 16
        %v2142 = vpop.permute.xlu0 %2141
        %v2143 = vsel %vm1437, %v2138, %v2140
        %v2144 = vsel %vm1437, %v2140, %v2142
        %v2148 = vadd.f32 %v2124, %v2138
        %v2149 = vadd.f32 %v2125, %v2143
        %v2150 = vadd.f32 %v2126, %v2144
        %2151 = vset.pattern.permute.xlu0 46
        %2152 = vperm.xlu0 %2151, %v1300
        %v2153 = vpop.permute.xlu0 %2152
        %v2155 = vmul.f32 %v1446, %v2153
        %v2156 = vmul.f32 %v1447, %v2153
        %v2157 = vmul.f32 %v1448, %v2153
        %2161 = vrot.lane.b32.xlu0 %v2155, 96
        %v2162 = vpop.permute.xlu0 %2161
        %2163 = vrot.lane.b32.xlu0 %v2156, 96
        %v2164 = vpop.permute.xlu0 %2163
        %2165 = vrot.lane.b32.xlu0 %v2157, 96
        %v2166 = vpop.permute.xlu0 %2165
        %v2167 = vsel %vm690, %v2162, %v2164
        %v2168 = vsel %vm690, %v2164, %v2166
        %v2172 = vadd.f32 %v2148, %v2162
        %v2173 = vadd.f32 %v2149, %v2167
        %v2174 = vadd.f32 %v2150, %v2168
        %v2175 = vadd.s32 %v627, 3
        %v2176 = vadd.s32 %v628, 3
        %vm2177 = vcmp.ge.s32.totalorder %v2175, 0
        %vm2178 = vcmp.ge.s32.totalorder %v2176, 0
        %vm2179 = vcmp.lt.s32.totalorder %v2175, 16
        %vm2180 = vcmp.lt.s32.totalorder %v2176, 16
        %vm2181 = vmand %vm2177, %vm2179
        %vm2182 = vmand %vm2178, %vm2180
        %v2183 = vsel %vm2181, 1, 0
        %v2184 = vsel %vm2182, 1, 0
        %vm2185 = vcmp.eq.s32.totalorder %v2183, 1
        %vm2186 = vcmp.eq.s32.totalorder %v2184, 1
        %2190 = vrot.lane.b32.xlu0 %v2172, 13
        %v2191 = vpop.permute.xlu0 %2190
        %2192 = vrot.lane.b32.xlu0 %v2173, 13
        %v2193 = vpop.permute.xlu0 %2192
        %2194 = vrot.lane.b32.xlu0 %v2174, 13
        %v2195 = vpop.permute.xlu0 %2194
        %vm2196 = vcmask 105472
        %v2197 = vsel %vm2196, %v2191, %v2193
        %v2198 = vsel %vm2196, %v2193, %v2195
        %v2201 = vsel %vm2185, %v2197, 0.0
        %v2202 = vsel %vm2186, %v2198, 0.0
        %v2203 = vadd.f32 %v2022, %v2201
        %v2204 = vadd.f32 %v2023, %v2202
        %2205 = vset.pattern.permute.xlu0 5
        %2206 = vperm.xlu0 %2205, %v1300
        %v2207 = vpop.permute.xlu0 %2206
        %v2209 = vmul.f32 %v1308, %v2207
        %v2210 = vmul.f32 %v1309, %v2207
        %v2211 = vmul.f32 %v1310, %v2207
        %2212 = vset.pattern.permute.xlu0 12
        %2213 = vperm.xlu0 %2212, %v1300
        %v2214 = vpop.permute.xlu0 %2213
        %v2216 = vmul.f32 %v1319, %v2214
        %v2217 = vmul.f32 %v1320, %v2214
        %v2218 = vmul.f32 %v1321, %v2214
        %2222 = vrot.lane.b32.xlu0 %v2216, 80
        %v2223 = vpop.permute.xlu0 %2222
        %2224 = vrot.lane.b32.xlu0 %v2217, 80
        %v2225 = vpop.permute.xlu0 %2224
        %2226 = vrot.lane.b32.xlu0 %v2218, 80
        %v2227 = vpop.permute.xlu0 %2226
        %v2228 = vsel %vm718, %v2223, %v2225
        %v2229 = vsel %vm718, %v2225, %v2227
        %v2233 = vadd.f32 %v2209, %v2223
        %v2234 = vadd.f32 %v2210, %v2228
        %v2235 = vadd.f32 %v2211, %v2229
        %2236 = vset.pattern.permute.xlu0 19
        %2237 = vperm.xlu0 %2236, %v1300
        %v2238 = vpop.permute.xlu0 %2237
        %v2240 = vmul.f32 %v1319, %v2238
        %v2241 = vmul.f32 %v1320, %v2238
        %v2242 = vmul.f32 %v1321, %v2238
        %2246 = vrot.lane.b32.xlu0 %v2240, 32
        %v2247 = vpop.permute.xlu0 %2246
        %2248 = vrot.lane.b32.xlu0 %v2241, 32
        %v2249 = vpop.permute.xlu0 %2248
        %2250 = vrot.lane.b32.xlu0 %v2242, 32
        %v2251 = vpop.permute.xlu0 %2250
        %v2252 = vsel %vm1020, %v2247, %v2249
        %v2253 = vsel %vm1020, %v2249, %v2251
        %v2257 = vadd.f32 %v2233, %v2247
        %v2258 = vadd.f32 %v2234, %v2252
        %v2259 = vadd.f32 %v2235, %v2253
        %2260 = vset.pattern.permute.xlu0 26
        %2261 = vperm.xlu0 %2260, %v1300
        %v2262 = vpop.permute.xlu0 %2261
        %v2264 = vmul.f32 %v1394, %v2262
        %v2265 = vmul.f32 %v1395, %v2262
        %v2266 = vmul.f32 %v1396, %v2262
        %2270 = vrot.lane.b32.xlu0 %v2264, 112
        %v2271 = vpop.permute.xlu0 %2270
        %2272 = vrot.lane.b32.xlu0 %v2265, 112
        %v2273 = vpop.permute.xlu0 %2272
        %2274 = vrot.lane.b32.xlu0 %v2266, 112
        %v2275 = vpop.permute.xlu0 %2274
        %v2276 = vsel %vm665, %v2271, %v2273
        %v2277 = vsel %vm665, %v2273, %v2275
        %v2281 = vadd.f32 %v2257, %v2271
        %v2282 = vadd.f32 %v2258, %v2276
        %v2283 = vadd.f32 %v2259, %v2277
        %2284 = vset.pattern.permute.xlu0 33
        %2285 = vperm.xlu0 %2284, %v1300
        %v2286 = vpop.permute.xlu0 %2285
        %v2288 = vmul.f32 %v1394, %v2286
        %v2289 = vmul.f32 %v1395, %v2286
        %v2290 = vmul.f32 %v1396, %v2286
        %2294 = vrot.lane.b32.xlu0 %v2288, 64
        %v2295 = vpop.permute.xlu0 %2294
        %2296 = vrot.lane.b32.xlu0 %v2289, 64
        %v2297 = vpop.permute.xlu0 %2296
        %2298 = vrot.lane.b32.xlu0 %v2290, 64
        %v2299 = vpop.permute.xlu0 %2298
        %v2300 = vsel %vm743, %v2295, %v2297
        %v2301 = vsel %vm743, %v2297, %v2299
        %v2305 = vadd.f32 %v2281, %v2295
        %v2306 = vadd.f32 %v2282, %v2300
        %v2307 = vadd.f32 %v2283, %v2301
        %2308 = vset.pattern.permute.xlu0 40
        %2309 = vperm.xlu0 %2308, %v1300
        %v2310 = vpop.permute.xlu0 %2309
        %v2312 = vmul.f32 %v1394, %v2310
        %v2313 = vmul.f32 %v1395, %v2310
        %v2314 = vmul.f32 %v1396, %v2310
        %2318 = vrot.lane.b32.xlu0 %v2312, 16
        %v2319 = vpop.permute.xlu0 %2318
        %2320 = vrot.lane.b32.xlu0 %v2313, 16
        %v2321 = vpop.permute.xlu0 %2320
        %2322 = vrot.lane.b32.xlu0 %v2314, 16
        %v2323 = vpop.permute.xlu0 %2322
        %v2324 = vsel %vm1437, %v2319, %v2321
        %v2325 = vsel %vm1437, %v2321, %v2323
        %v2329 = vadd.f32 %v2305, %v2319
        %v2330 = vadd.f32 %v2306, %v2324
        %v2331 = vadd.f32 %v2307, %v2325
        %2332 = vset.pattern.permute.xlu0 47
        %2333 = vperm.xlu0 %2332, %v1300
        %v2334 = vpop.permute.xlu0 %2333
        %v2336 = vmul.f32 %v1446, %v2334
        %v2337 = vmul.f32 %v1447, %v2334
        %v2338 = vmul.f32 %v1448, %v2334
        %2342 = vrot.lane.b32.xlu0 %v2336, 96
        %v2343 = vpop.permute.xlu0 %2342
        %2344 = vrot.lane.b32.xlu0 %v2337, 96
        %v2345 = vpop.permute.xlu0 %2344
        %2346 = vrot.lane.b32.xlu0 %v2338, 96
        %v2347 = vpop.permute.xlu0 %2346
        %v2348 = vsel %vm690, %v2343, %v2345
        %v2349 = vsel %vm690, %v2345, %v2347
        %v2353 = vadd.f32 %v2329, %v2343
        %v2354 = vadd.f32 %v2330, %v2348
        %v2355 = vadd.f32 %v2331, %v2349
        %v2356 = vadd.s32 %v627, 6
        %v2357 = vadd.s32 %v628, 6
        %vm2358 = vcmp.ge.s32.totalorder %v2356, 0
        %vm2359 = vcmp.ge.s32.totalorder %v2357, 0
        %vm2360 = vcmp.lt.s32.totalorder %v2356, 16
        %vm2361 = vcmp.lt.s32.totalorder %v2357, 16
        %vm2362 = vmand %vm2358, %vm2360
        %vm2363 = vmand %vm2359, %vm2361
        %v2364 = vsel %vm2362, 1, 0
        %v2365 = vsel %vm2363, 1, 0
        %vm2366 = vcmp.eq.s32.totalorder %v2364, 1
        %vm2367 = vcmp.eq.s32.totalorder %v2365, 1
        %2371 = vrot.lane.b32.xlu0 %v2353, 10
        %v2372 = vpop.permute.xlu0 %2371
        %2373 = vrot.lane.b32.xlu0 %v2354, 10
        %v2374 = vpop.permute.xlu0 %2373
        %2375 = vrot.lane.b32.xlu0 %v2355, 10
        %v2376 = vpop.permute.xlu0 %2375
        %vm2377 = vcmask 80896
        %v2378 = vsel %vm2377, %v2372, %v2374
        %v2379 = vsel %vm2377, %v2374, %v2376
        %v2382 = vsel %vm2366, %v2378, 0.0
        %v2383 = vsel %vm2367, %v2379, 0.0
        %v2384 = vadd.f32 %v2203, %v2382
        %v2385 = vadd.f32 %v2204, %v2383
        %2386 = vset.pattern.permute.xlu0 6
        %2387 = vperm.xlu0 %2386, %v1300
        %v2388 = vpop.permute.xlu0 %2387
        %v2390 = vmul.f32 %v1308, %v2388
        %v2391 = vmul.f32 %v1309, %v2388
        %v2392 = vmul.f32 %v1310, %v2388
        %2393 = vset.pattern.permute.xlu0 13
        %2394 = vperm.xlu0 %2393, %v1300
        %v2395 = vpop.permute.xlu0 %2394
        %v2397 = vmul.f32 %v1319, %v2395
        %v2398 = vmul.f32 %v1320, %v2395
        %v2399 = vmul.f32 %v1321, %v2395
        %2403 = vrot.lane.b32.xlu0 %v2397, 80
        %v2404 = vpop.permute.xlu0 %2403
        %2405 = vrot.lane.b32.xlu0 %v2398, 80
        %v2406 = vpop.permute.xlu0 %2405
        %2407 = vrot.lane.b32.xlu0 %v2399, 80
        %v2408 = vpop.permute.xlu0 %2407
        %v2409 = vsel %vm718, %v2404, %v2406
        %v2410 = vsel %vm718, %v2406, %v2408
        %v2414 = vadd.f32 %v2390, %v2404
        %v2415 = vadd.f32 %v2391, %v2409
        %v2416 = vadd.f32 %v2392, %v2410
        %2417 = vset.pattern.permute.xlu0 20
        %2418 = vperm.xlu0 %2417, %v1300
        %v2419 = vpop.permute.xlu0 %2418
        %v2421 = vmul.f32 %v1319, %v2419
        %v2422 = vmul.f32 %v1320, %v2419
        %v2423 = vmul.f32 %v1321, %v2419
        %2427 = vrot.lane.b32.xlu0 %v2421, 32
        %v2428 = vpop.permute.xlu0 %2427
        %2429 = vrot.lane.b32.xlu0 %v2422, 32
        %v2430 = vpop.permute.xlu0 %2429
        %2431 = vrot.lane.b32.xlu0 %v2423, 32
        %v2432 = vpop.permute.xlu0 %2431
        %v2433 = vsel %vm1020, %v2428, %v2430
        %v2434 = vsel %vm1020, %v2430, %v2432
        %v2438 = vadd.f32 %v2414, %v2428
        %v2439 = vadd.f32 %v2415, %v2433
        %v2440 = vadd.f32 %v2416, %v2434
        %2441 = vset.pattern.permute.xlu0 27
        %2442 = vperm.xlu0 %2441, %v1300
        %v2443 = vpop.permute.xlu0 %2442
        %v2445 = vmul.f32 %v1394, %v2443
        %v2446 = vmul.f32 %v1395, %v2443
        %v2447 = vmul.f32 %v1396, %v2443
        %2451 = vrot.lane.b32.xlu0 %v2445, 112
        %v2452 = vpop.permute.xlu0 %2451
        %2453 = vrot.lane.b32.xlu0 %v2446, 112
        %v2454 = vpop.permute.xlu0 %2453
        %2455 = vrot.lane.b32.xlu0 %v2447, 112
        %v2456 = vpop.permute.xlu0 %2455
        %v2457 = vsel %vm665, %v2452, %v2454
        %v2458 = vsel %vm665, %v2454, %v2456
        %v2462 = vadd.f32 %v2438, %v2452
        %v2463 = vadd.f32 %v2439, %v2457
        %v2464 = vadd.f32 %v2440, %v2458
        %2465 = vset.pattern.permute.xlu0 34
        %2466 = vperm.xlu0 %2465, %v1300
        %v2467 = vpop.permute.xlu0 %2466
        %v2469 = vmul.f32 %v1394, %v2467
        %v2470 = vmul.f32 %v1395, %v2467
        %v2471 = vmul.f32 %v1396, %v2467
        %2475 = vrot.lane.b32.xlu0 %v2469, 64
        %v2476 = vpop.permute.xlu0 %2475
        %2477 = vrot.lane.b32.xlu0 %v2470, 64
        %v2478 = vpop.permute.xlu0 %2477
        %2479 = vrot.lane.b32.xlu0 %v2471, 64
        %v2480 = vpop.permute.xlu0 %2479
        %v2481 = vsel %vm743, %v2476, %v2478
        %v2482 = vsel %vm743, %v2478, %v2480
        %v2486 = vadd.f32 %v2462, %v2476
        %v2487 = vadd.f32 %v2463, %v2481
        %v2488 = vadd.f32 %v2464, %v2482
        %2489 = vset.pattern.permute.xlu0 41
        %2490 = vperm.xlu0 %2489, %v1300
        %v2491 = vpop.permute.xlu0 %2490
        %v2493 = vmul.f32 %v1394, %v2491
        %v2494 = vmul.f32 %v1395, %v2491
        %v2495 = vmul.f32 %v1396, %v2491
        %2499 = vrot.lane.b32.xlu0 %v2493, 16
        %v2500 = vpop.permute.xlu0 %2499
        %2501 = vrot.lane.b32.xlu0 %v2494, 16
        %v2502 = vpop.permute.xlu0 %2501
        %2503 = vrot.lane.b32.xlu0 %v2495, 16
        %v2504 = vpop.permute.xlu0 %2503
        %v2505 = vsel %vm1437, %v2500, %v2502
        %v2506 = vsel %vm1437, %v2502, %v2504
        %v2510 = vadd.f32 %v2486, %v2500
        %v2511 = vadd.f32 %v2487, %v2505
        %v2512 = vadd.f32 %v2488, %v2506
        %2513 = vset.pattern.permute.xlu0 48
        %2514 = vperm.xlu0 %2513, %v1300
        %v2515 = vpop.permute.xlu0 %2514
        %v2517 = vmul.f32 %v1446, %v2515
        %v2518 = vmul.f32 %v1447, %v2515
        %v2519 = vmul.f32 %v1448, %v2515
        %2523 = vrot.lane.b32.xlu0 %v2517, 96
        %v2524 = vpop.permute.xlu0 %2523
        %2525 = vrot.lane.b32.xlu0 %v2518, 96
        %v2526 = vpop.permute.xlu0 %2525
        %2527 = vrot.lane.b32.xlu0 %v2519, 96
        %v2528 = vpop.permute.xlu0 %2527
        %v2529 = vsel %vm690, %v2524, %v2526
        %v2530 = vsel %vm690, %v2526, %v2528
        %v2534 = vadd.f32 %v2510, %v2524
        %v2535 = vadd.f32 %v2511, %v2529
        %v2536 = vadd.f32 %v2512, %v2530
        %v2537 = vadd.s32 %v627, 9
        %v2538 = vadd.s32 %v628, 9
        %vm2539 = vcmp.ge.s32.totalorder %v2537, 0
        %vm2540 = vcmp.ge.s32.totalorder %v2538, 0
        %vm2541 = vcmp.lt.s32.totalorder %v2537, 16
        %vm2542 = vcmp.lt.s32.totalorder %v2538, 16
        %vm2543 = vmand %vm2539, %vm2541
        %vm2544 = vmand %vm2540, %vm2542
        %v2545 = vsel %vm2543, 1, 0
        %v2546 = vsel %vm2544, 1, 0
        %vm2547 = vcmp.eq.s32.totalorder %v2545, 1
        %vm2548 = vcmp.eq.s32.totalorder %v2546, 1
        %2552 = vrot.lane.b32.xlu0 %v2534, 7
        %v2553 = vpop.permute.xlu0 %2552
        %2554 = vrot.lane.b32.xlu0 %v2535, 7
        %v2555 = vpop.permute.xlu0 %2554
        %2556 = vrot.lane.b32.xlu0 %v2536, 7
        %v2557 = vpop.permute.xlu0 %2556
        %vm2558 = vcmask 56320
        %v2559 = vsel %vm2558, %v2553, %v2555
        %v2560 = vsel %vm2558, %v2555, %v2557
        %v2563 = vsel %vm2547, %v2559, 0.0
        %v2564 = vsel %vm2548, %v2560, 0.0
        %v2565 = vadd.f32 %v2384, %v2563
        %v2566 = vadd.f32 %v2385, %v2564
        %2568 = vset.pattern.permute.xlu0 0
        %2569 = vperm.xlu0 %2568, %v1301
        %v2570 = vpop.permute.xlu0 %2569
        %v2572 = vadd.f32 %v2565, %v2570
        %v2573 = vadd.f32 %v2566, %v2570
        %v2574 = vld [vmem:[%s8] sm:$0x3]
        %v2575 = vpack.c.bf16 %v1298, %v1298
        %v2576 = vpack.c.bf16 %v1299, %v1299
        %v2577 = vld [vmem:[%s9] sm:$0xf]
        %2579 = vset.pattern.permute.xlu0 0
        %2580 = vperm.xlu0 %2579, %v2577
        %v2581 = vpop.permute.xlu0 %2580
        %vm2583 = vcmask 64512
        %v2585 = vsel %vm2583, %v2574, 0
        %vm2587 = vcmask 1043456
        %v2589 = vsel %vm2587, %v2575, 0
        %v2592 = vsel %vm2587, %v2576, 0
        %2594 = vmatpush.bf16.msra.mxu0 0
        %2595 = vmatpush.bf16.msra.mxu0 0
        %2596 = vmatpush.bf16.msra.mxu0 0
        %2597 = vmatpush.bf16.msra.mxu0 0
        %2598 = vmatpush.bf16.msra.mxu0 0
        %2599 = vmatpush.bf16.msra.mxu0 0
        %2600 = vmatpush.bf16.msra.mxu0 0
        %2601 = vmatpush.bf16.msra.mxu0 %v2589
        %2602 = vmatmul.bf16.gmra.mxu0 %v2585
        %v2603 = vpop.f32.mrf.mxu0
        %v2604 = vadd.f32 %v2581, %v2603
        %v2605 = vpop.f32.mrf.mxu0
        %2606 = vdwg.mxu0
        %2607 = vmatpush.bf16.msra.mxu0 0
        %2608 = vmatpush.bf16.msra.mxu0 0
        %2609 = vmatpush.bf16.msra.mxu0 0
        %2610 = vmatpush.bf16.msra.mxu0 0
        %2611 = vmatpush.bf16.msra.mxu0 0
        %2612 = vmatpush.bf16.msra.mxu0 0
        %2613 = vmatpush.bf16.msra.mxu0 0
        %2614 = vmatpush.bf16.msra.mxu0 %v2592
        %2615 = vmatmul.bf16.gmra.mxu0 %v2585
        %v2616 = vpop.f32.mrf.mxu0
        %v2617 = vadd.f32 %v2581, %v2616
        %v2618 = vpop.f32.mrf.mxu0
        %2619 = vdwg.mxu0
        %v2620 = vld [vmem:[%s10] sm:$0x3]
        %v2621 = vpack.c.bf16 %v2572, %v2572
        %v2622 = vpack.c.bf16 %v2573, %v2573
        %v2623 = vld [vmem:[%s11] sm:$0xf]
        %2625 = vset.pattern.permute.xlu0 0
        %2626 = vperm.xlu0 %2625, %v2623
        %v2627 = vpop.permute.xlu0 %2626
        %v2630 = vsel %vm2583, %v2620, 0
        %v2633 = vsel %vm2587, %v2621, 0
        %v2636 = vsel %vm2587, %v2622, 0
        %2638 = vmatpush.bf16.msra.mxu0 0
        %2639 = vmatpush.bf16.msra.mxu0 0
        %2640 = vmatpush.bf16.msra.mxu0 0
        %2641 = vmatpush.bf16.msra.mxu0 0
        %2642 = vmatpush.bf16.msra.mxu0 0
        %2643 = vmatpush.bf16.msra.mxu0 0
        %2644 = vmatpush.bf16.msra.mxu0 0
        %2645 = vmatpush.bf16.msra.mxu0 %v2633
        %2646 = vmatmul.bf16.gmra.mxu0 %v2630
        %v2647 = vpop.f32.mrf.mxu0
        %v2648 = vadd.f32 %v2627, %v2647
        %v2649 = vpop.f32.mrf.mxu0
        %2650 = vdwg.mxu0
        %2651 = vmatpush.bf16.msra.mxu0 0
        %2652 = vmatpush.bf16.msra.mxu0 0
        %2653 = vmatpush.bf16.msra.mxu0 0
        %2654 = vmatpush.bf16.msra.mxu0 0
        %2655 = vmatpush.bf16.msra.mxu0 0
        %2656 = vmatpush.bf16.msra.mxu0 0
        %2657 = vmatpush.bf16.msra.mxu0 0
        %2658 = vmatpush.bf16.msra.mxu0 %v2636
        %2659 = vmatmul.bf16.gmra.mxu0 %v2630
        %v2660 = vpop.f32.mrf.mxu0
        %v2661 = vadd.f32 %v2627, %v2660
        %v2662 = vpop.f32.mrf.mxu0
        %2663 = vdwg.mxu0
        %2665 = vst [vmem:[#allocation1] ss:$2 sm:$0xff] %v629
        %v2666 = vld.sshfl [vmem:[#allocation1] sm:$0xff pattern:$0x75316420]
        %v2667 = vld.sshfl [vmem:[#allocation1 + $0x8] sm:$0xff pattern:$0x75316420]
        %v2672 = vrot.slane %v2604, 4
        %v2673 = vrot.slane %v2617, 4
        %v2676 = vsel %vm2587, %v2666, %v2672
        %v2677 = vsel %vm2587, %v2667, %v2673
        %v2682 = vrot.slane %v2677, 6
        %v2683 = vrot.slane %v2661, 6
        %vm2684 = vcmask 1041408
        %v2685 = vsel %vm2684, %v2676, %v2682
        %vm2686 = vcmask 1043458
        %v2687 = vsel %vm2686, %v2676, %v2682
        %v2688 = vrot.slane %v2687, 2
        %vm2689 = vcmask 1045508
        %v2690 = vsel %vm2689, %v2676, %v2682
        %v2691 = vrot.slane %v2690, 4
        %vm2692 = vcmask 1045504
        %v2693 = vsel %vm2692, %v2682, %v2676
        %v2694 = vrot.slane %v2693, 6
        %v2695 = vsel %vm2684, %v2648, %v2683
        %v2696 = vsel %vm2686, %v2648, %v2683
        %v2697 = vrot.slane %v2696, 2
        %v2704 = vrot.slane %v2694, 4
        %vm2705 = vcmask 1047556
        %v2706 = vsel %vm2705, %v2704, %v2685
        %v2708 = vunpack.c.l.s4 1934713408
        %v2709 = vunpack.c.0.s8 %v2708
        %v2710 = vperm.slane %v2706, %v2709
        %v2711 = vrot.slane %v2710, 4
        %v2712 = vsel %vm2705, 0.0, %v2711
        %v2713 = vrot.slane %v2695, 4
        %v2714 = vsel %vm2705, %v2713, %v2688
        %v2716 = vunpack.c.l.s4 1934713408
        %v2717 = vunpack.c.0.s8 %v2716
        %v2718 = vperm.slane %v2714, %v2717
        %v2719 = vrot.slane %v2718, 4
        %v2720 = vsel %vm2705, 0.0, %v2719
        %v2721 = vrot.slane %v2697, 4
        %v2722 = vsel %vm2705, %v2721, %v2691
        %v2724 = vunpack.c.l.s4 1934713408
        %v2725 = vunpack.c.0.s8 %v2724
        %v2726 = vperm.slane %v2722, %v2725
        %v2727 = vrot.slane %v2726, 4
        %v2728 = vsel %vm2705, 0.0, %v2727
        %v2729 = vld [vmem:[%s513] sm:$0xff]
        %v2730 = vld [vmem:[%s513 + $0x8] sm:$0xff]
        %v2731 = vld [vmem:[%s513 + $0x10] sm:$0xff]
        %v2732 = vld [vmem:[%s513 + $0x18] sm:$0xff]
        %v2733 = vld [vmem:[%s513 + $0x20] sm:$0xff]
        %v2734 = vld [vmem:[%s513 + $0x28] sm:$0xff]
        %v2735 = vld [vmem:[%s513 + $0x30] sm:$0xff]
        %v2736 = vld [vmem:[%s513 + $0x38] sm:$0xff]
        %v2737 = vld [vmem:[#allocation7] sm:$0xff]
        %v2739 = vsel %vm2583, %v2729, 0
        %v2742 = vsel %vm2583, %v2730, 0
        %v2745 = vsel %vm2583, %v2731, 0
        %v2748 = vsel %vm2583, %v2732, 0
        %v2751 = vsel %vm2583, %v2733, 0
        %v2754 = vsel %vm2583, %v2734, 0
        %v2757 = vsel %vm2583, %v2735, 0
        %v2760 = vsel %vm2583, %v2736, 0
        %2762 = vmatpush.msra.mxu0 0.0
        %2763 = vmatpush.msra.mxu0 0.0
        %2764 = vmatpush.msra.mxu0 0.0
        %2765 = vmatpush.msra.mxu0 0.0
        %2766 = vmatpush.msra.mxu0 0.0
        %2767 = vmatpush.msra.mxu0 0.0
        %2768 = vmatpush.msra.mxu0 0.0
        %2769 = vmatpush.msra.mxu0 0.0
        %2770 = vmatpush.msra.mxu0 0.0
        %2771 = vmatpush.msra.mxu0 0.0
        %2772 = vmatpush.msra.mxu0 0.0
        %2773 = vmatpush.msra.mxu0 0.0
        %2774 = vmatpush.msra.mxu0 0.0
        %2775 = vmatpush.msra.mxu0 0.0
        %2776 = vmatpush.msra.mxu0 0.0
        %2777 = vmatpush.msra.mxu0 %v2737
        %2778 = vmatmul.f32.gmra.mxu0 %v2739
        %v2779 = vpop.f32.mrf.mxu0
        %v2780 = vadd.f32 0.0, %v2779
        %2781 = vmatmul.f32.gmra.mxu0 %v2742
        %v2782 = vpop.f32.mrf.mxu0
        %v2783 = vadd.f32 0.0, %v2782
        %2784 = vmatmul.f32.gmra.mxu0 %v2745
        %v2785 = vpop.f32.mrf.mxu0
        %v2786 = vadd.f32 0.0, %v2785
        %2787 = vmatmul.f32.gmra.mxu0 %v2748
        %v2788 = vpop.f32.mrf.mxu0
        %v2789 = vadd.f32 0.0, %v2788
        %2790 = vmatmul.f32.gmra.mxu0 %v2751
        %v2791 = vpop.f32.mrf.mxu0
        %v2792 = vadd.f32 0.0, %v2791
        %2793 = vmatmul.f32.gmra.mxu0 %v2754
        %v2794 = vpop.f32.mrf.mxu0
        %v2795 = vadd.f32 0.0, %v2794
        %2796 = vmatmul.f32.gmra.mxu0 %v2757
        %v2797 = vpop.f32.mrf.mxu0
        %v2798 = vadd.f32 0.0, %v2797
        %2799 = vmatmul.f32.gmra.mxu0 %v2760
        %v2800 = vpop.f32.mrf.mxu0
        %v2801 = vadd.f32 0.0, %v2800
        %2802 = vdwg.mxu0
        %v2803 = vmul.f32 %v2780, 0.53333336
        %v2804 = vmul.f32 %v2783, 0.46666667
        %v2805 = vadd.f32 %v2803, %v2804
        %v2806 = vmul.f32 %v2780, 0.06666667
        %v2807 = vmul.f32 %v2783, 0.93333334
        %v2808 = vadd.f32 %v2806, %v2807
        %v2809 = vmul.f32 %v2783, 0.6
        %v2810 = vmul.f32 %v2786, 0.4
        %v2811 = vadd.f32 %v2809, %v2810
        %v2812 = vmul.f32 %v2783, 0.13333334
        %v2813 = vmul.f32 %v2786, 0.8666667
        %v2814 = vadd.f32 %v2812, %v2813
        %v2815 = vmul.f32 %v2786, 0.6666667
        %v2816 = vmul.f32 %v2789, 0.33333334
        %v2817 = vadd.f32 %v2815, %v2816
        %v2818 = vmul.f32 %v2786, 0.2
        %v2819 = vmul.f32 %v2789, 0.8
        %v2820 = vadd.f32 %v2818, %v2819
        %v2821 = vmul.f32 %v2789, 0.73333335
        %v2822 = vmul.f32 %v2792, 0.26666668
        %v2823 = vadd.f32 %v2821, %v2822
        %v2824 = vmul.f32 %v2789, 0.26666668
        %v2825 = vmul.f32 %v2792, 0.73333335
        %v2826 = vadd.f32 %v2824, %v2825
        %v2827 = vmul.f32 %v2792, 0.8
        %v2828 = vmul.f32 %v2795, 0.2
        %v2829 = vadd.f32 %v2827, %v2828
        %v2830 = vmul.f32 %v2792, 0.33333334
        %v2831 = vmul.f32 %v2795, 0.6666667
        %v2832 = vadd.f32 %v2830, %v2831
        %v2833 = vmul.f32 %v2795, 0.8666667
        %v2834 = vmul.f32 %v2798, 0.13333334
        %v2835 = vadd.f32 %v2833, %v2834
        %v2836 = vmul.f32 %v2795, 0.4
        %v2837 = vmul.f32 %v2798, 0.6
        %v2838 = vadd.f32 %v2836, %v2837
        %v2839 = vmul.f32 %v2798, 0.93333334
        %v2840 = vmul.f32 %v2801, 0.06666667
        %v2841 = vadd.f32 %v2839, %v2840
        %v2842 = vmul.f32 %v2798, 0.46666667
        %v2843 = vmul.f32 %v2801, 0.53333336
        %v2844 = vadd.f32 %v2842, %v2843
        %2846 = vrot.lane.b32.xlu0 %v2805, 16
        %v2847 = vpop.permute.xlu0 %2846
        %2850 = vrot.lane.b32.xlu0 %v2808, 32
        %v2851 = vpop.permute.xlu0 %2850
        %2854 = vrot.lane.b32.xlu0 %v2811, 48
        %v2855 = vpop.permute.xlu0 %2854
        %2858 = vrot.lane.b32.xlu0 %v2814, 64
        %v2859 = vpop.permute.xlu0 %2858
        %2862 = vrot.lane.b32.xlu0 %v2817, 80
        %v2863 = vpop.permute.xlu0 %2862
        %2866 = vrot.lane.b32.xlu0 %v2820, 96
        %v2867 = vpop.permute.xlu0 %2866
        %2870 = vrot.lane.b32.xlu0 %v2823, 112
        %v2871 = vpop.permute.xlu0 %2870
        %2874 = vrot.lane.b32.xlu0 %v2829, 16
        %v2875 = vpop.permute.xlu0 %2874
        %2878 = vrot.lane.b32.xlu0 %v2832, 32
        %v2879 = vpop.permute.xlu0 %2878
        %2882 = vrot.lane.b32.xlu0 %v2835, 48
        %v2883 = vpop.permute.xlu0 %2882
        %2886 = vrot.lane.b32.xlu0 %v2838, 64
        %v2887 = vpop.permute.xlu0 %2886
        %2890 = vrot.lane.b32.xlu0 %v2841, 80
        %v2891 = vpop.permute.xlu0 %2890
        %2894 = vrot.lane.b32.xlu0 %v2844, 96
        %v2895 = vpop.permute.xlu0 %2894
        %2898 = vrot.lane.b32.xlu0 %v2801, 112
        %v2899 = vpop.permute.xlu0 %2898
        %v2901 = vsel %vm1437, %v2780, %v2847
        %v2902 = vsel %vm1020, %v2901, %v2851
        %vm2903 = vcmask 392192
        %v2904 = vsel %vm2903, %v2902, %v2855
        %v2905 = vsel %vm743, %v2904, %v2859
        %v2906 = vsel %vm718, %v2905, %v2863
        %v2907 = vsel %vm690, %v2906, %v2867
        %v2908 = vsel %vm665, %v2907, %v2871
        %v2909 = vsel %vm1437, %v2826, %v2875
        %v2910 = vsel %vm1020, %v2909, %v2879
        %v2911 = vsel %vm2903, %v2910, %v2883
        %v2912 = vsel %vm743, %v2911, %v2887
        %v2913 = vsel %vm718, %v2912, %v2891
        %v2914 = vsel %vm690, %v2913, %v2895
        %v2915 = vsel %vm665, %v2914, %v2899
        %2916 = vst [vmem:[#allocation4] sm:$0xff] 0.0
        %2917 = vst [vmem:[#allocation4 + $0x18] sm:$0xff] 0.0
        %2918 = vst [vmem:[#allocation4 + $0x8] sm:$0xff] %v2908
        %2919 = vst [vmem:[#allocation4 + $0x10] sm:$0xff] %v2915
        %v2920 = vld [vmem:[#allocation4] sm:$0xff]
        %v2921 = vld [vmem:[#allocation4 + $0x8] sm:$0xff]
        %v2922 = vld [vmem:[#allocation4 + $0x10] sm:$0xff]
        %2926 = vrot.lane.b32.xlu0 %v2920, 17
        %v2927 = vpop.permute.xlu0 %2926
        %2928 = vrot.lane.b32.xlu0 %v2921, 17
        %v2929 = vpop.permute.xlu0 %2928
        %2930 = vrot.lane.b32.xlu0 %v2922, 17
        %v2931 = vpop.permute.xlu0 %2930
        %vm2932 = vcmask 138240
        %v2933 = vsel %vm2932, %v2927, %v2929
        %v2934 = vsel %vm2932, %v2929, %v2931
        %v2937 = vsel %vm893, %v2933, 0.0
        %v2938 = vsel %vm894, %v2934, 0.0
        %2939 = vrot.lane.b32.xlu0 %v2920, 15
        %v2940 = vpop.permute.xlu0 %2939
        %2941 = vrot.lane.b32.xlu0 %v2921, 15
        %v2942 = vpop.permute.xlu0 %2941
        %2943 = vrot.lane.b32.xlu0 %v2922, 15
        %v2944 = vpop.permute.xlu0 %2943
        %vm2945 = vcmask 121856
        %v2946 = vsel %vm2945, %v2940, %v2942
        %v2947 = vsel %vm2945, %v2942, %v2944
        %v2950 = vsel %vm1140, %v2946, 0.0
        %v2951 = vsel %vm1141, %v2947, 0.0
        %2952 = vrot.lane.b32.xlu0 %v2920, 1
        %v2953 = vpop.permute.xlu0 %2952
        %2954 = vrot.lane.b32.xlu0 %v2921, 1
        %v2955 = vpop.permute.xlu0 %2954
        %2956 = vrot.lane.b32.xlu0 %v2922, 1
        %v2957 = vpop.permute.xlu0 %2956
        %vm2958 = vcmask 7168
        %v2959 = vsel %vm2958, %v2953, %v2955
        %v2960 = vsel %vm2958, %v2955, %v2957
        %v2963 = vsel %vm893, %v2959, 0.0
        %v2964 = vsel %vm894, %v2960, 0.0
        %v2965 = vld [vmem:[#allocation4 + $0x8] sm:$0xff]
        %v2966 = vld [vmem:[#allocation4 + $0x10] sm:$0xff]
        %v2967 = vld [vmem:[#allocation4 + $0x18] sm:$0xff]
        %2971 = vrot.lane.b32.xlu0 %v2965, 127
        %v2972 = vpop.permute.xlu0 %2971
        %2973 = vrot.lane.b32.xlu0 %v2966, 127
        %v2974 = vpop.permute.xlu0 %2973
        %2975 = vrot.lane.b32.xlu0 %v2967, 127
        %v2976 = vpop.permute.xlu0 %2975
        %vm2977 = vcmask 1039360
        %v2978 = vsel %vm2977, %v2972, %v2974
        %v2979 = vsel %vm2977, %v2974, %v2976
        %v2982 = vsel %vm1140, %v2978, 0.0
        %v2983 = vsel %vm1141, %v2979, 0.0
        %2984 = vrot.lane.b32.xlu0 %v2965, 113
        %v2985 = vpop.permute.xlu0 %2984
        %2986 = vrot.lane.b32.xlu0 %v2966, 113
        %v2987 = vpop.permute.xlu0 %2986
        %2988 = vrot.lane.b32.xlu0 %v2967, 113
        %v2989 = vpop.permute.xlu0 %2988
        %vm2990 = vcmask 924672
        %v2991 = vsel %vm2990, %v2985, %v2987
        %v2992 = vsel %vm2990, %v2987, %v2989
        %v2995 = vsel %vm893, %v2991, 0.0
        %v2996 = vsel %vm894, %v2992, 0.0
        %2997 = vrot.lane.b32.xlu0 %v2965, 111
        %v2998 = vpop.permute.xlu0 %2997
        %2999 = vrot.lane.b32.xlu0 %v2966, 111
        %v3000 = vpop.permute.xlu0 %2999
        %3001 = vrot.lane.b32.xlu0 %v2967, 111
        %v3002 = vpop.permute.xlu0 %3001
        %vm3003 = vcmask 908288
        %v3004 = vsel %vm3003, %v2998, %v3000
        %v3005 = vsel %vm3003, %v3000, %v3002
        %v3008 = vsel %vm1140, %v3004, 0.0
        %v3009 = vsel %vm1141, %v3005, 0.0
        %3010 = vrot.lane.b32.xlu0 %v2920, 16
        %v3011 = vpop.permute.xlu0 %3010
        %3012 = vrot.lane.b32.xlu0 %v2921, 16
        %v3013 = vpop.permute.xlu0 %3012
        %3014 = vrot.lane.b32.xlu0 %v2922, 16
        %v3015 = vpop.permute.xlu0 %3014
        %v3016 = vsel %vm1437, %v3011, %v3013
        %v3017 = vsel %vm1437, %v3013, %v3015
        %3020 = vrot.lane.b32.xlu0 %v2965, 112
        %v3021 = vpop.permute.xlu0 %3020
        %3022 = vrot.lane.b32.xlu0 %v2966, 112
        %v3023 = vpop.permute.xlu0 %3022
        %3024 = vrot.lane.b32.xlu0 %v2967, 112
        %v3025 = vpop.permute.xlu0 %3024
        %v3026 = vsel %vm665, %v3021, %v3023
        %v3027 = vsel %vm665, %v3023, %v3025
        %v3030 = vpack.c.bf16 %v3016, %v2937
        %v3031 = vpack.c.bf16 %v3017, %v2938
        %v3032 = vpack.c.bf16 %v2963, %v2950
        %v3033 = vpack.c.bf16 %v2964, %v2951
        %v3034 = vpack.c.bf16 %v2982, %v2921
        %v3035 = vpack.c.bf16 %v2983, %v2922
        %v3036 = vpack.c.bf16 %v3026, %v2995
        %v3037 = vpack.c.bf16 %v3027, %v2996
        %v3038 = vpack.c.bf16 %v3008, %v3008
        %v3039 = vpack.c.bf16 %v3009, %v3009
        %v3040 = vld [vmem:[%s12] sm:$0xf]
        %v3041 = vld [vmem:[%s12 + $0x4] sm:$0x3]
        %v3044 = vunpack.c.l.b16 %v3040
        %v3045 = vunpack.c.l.b16 %v3041
        %v3046 = vpack.c.b16 %v3045, %v3044
        %vm3047 = vcmask 588800
        %v3049 = vsel %vm3047, %v3046, 0
        %v3052 = vsel %vm2587, %v3038, 0
        %v3055 = vsel %vm2587, %v3039, 0
        %3057 = vmatpush.bf16.msra.mxu0 0
        %3058 = vmatpush.bf16.msra.mxu0 0
        %3059 = vmatpush.bf16.msra.mxu0 0
        %3060 = vmatpush.bf16.msra.mxu0 %v3052
        %3061 = vmatpush.bf16.msra.mxu0 %v3036
        %3062 = vmatpush.bf16.msra.mxu0 %v3034
        %3063 = vmatpush.bf16.msra.mxu0 %v3032
        %3064 = vmatpush.bf16.msra.mxu0 %v3030
        %3065 = vmatmul.bf16.gmra.mxu0 %v3049
        %v3066 = vpop.f32.mrf.mxu0
        %v3067 = vadd.f32 0.0, %v3066
        %v3068 = vpop.f32.mrf.mxu0
        %v3069 = vadd.f32 0.0, %v3068
        %3070 = vdwg.mxu0
        %3071 = vmatpush.bf16.msra.mxu0 0
        %3072 = vmatpush.bf16.msra.mxu0 0
        %3073 = vmatpush.bf16.msra.mxu0 0
        %3074 = vmatpush.bf16.msra.mxu0 %v3055
        %3075 = vmatpush.bf16.msra.mxu0 %v3037
        %3076 = vmatpush.bf16.msra.mxu0 %v3035
        %3077 = vmatpush.bf16.msra.mxu0 %v3033
        %3078 = vmatpush.bf16.msra.mxu0 %v3031
        %3079 = vmatmul.bf16.gmra.mxu0 %v3049
        %v3080 = vpop.f32.mrf.mxu0
        %v3081 = vadd.f32 0.0, %v3080
        %v3082 = vpop.f32.mrf.mxu0
        %v3083 = vadd.f32 0.0, %v3082
        %3084 = vdwg.mxu0
        %v3085 = vld [vmem:[%s13] sm:$0xff]
        %v3086 = vld [vmem:[%s13 + $0x8] sm:$0xf]
        %3088 = vset.pattern.permute.xlu0 0
        %3089 = vperm.xlu0 %3088, %v3085
        %v3090 = vpop.permute.xlu0 %3089
        %3093 = vset.pattern.permute.xlu0 0
        %3094 = vperm.xlu0 %3093, %v3086
        %v3095 = vpop.permute.xlu0 %3094
        %v3097 = vmul.f32 %v3067, %v3090
        %v3098 = vmul.f32 %v3081, %v3090
        %v3099 = vmul.f32 %v3069, %v3095
        %v3100 = vmul.f32 %v3083, %v3095
        %v3101 = vld [vmem:[%s14] sm:$0xff]
        %v3102 = vld [vmem:[%s14 + $0x8] sm:$0xf]
        %3104 = vset.pattern.permute.xlu0 0
        %3105 = vperm.xlu0 %3104, %v3101
        %v3106 = vpop.permute.xlu0 %3105
        %3109 = vset.pattern.permute.xlu0 0
        %3110 = vperm.xlu0 %3109, %v3102
        %v3111 = vpop.permute.xlu0 %3110
        %v3113 = vadd.f32 %v3097, %v3106
        %v3114 = vadd.f32 %v3098, %v3106
        %v3115 = vadd.f32 %v3099, %v3111
        %v3116 = vadd.f32 %v3100, %v3111
        %v3117 = vadd.f32 %v3113, %v3114
        %3118 = vadd.xlane.f32.xlu0 %v3117
        %v3119 = vpop.xlane.xlu0 %3118
        %v3120 = vsel %vm2587, %v3115, 0.0
        %v3121 = vsel %vm2587, %v3116, 0.0
        %v3122 = vadd.f32 %v3120, %v3121
        %3123 = vadd.xlane.f32.xlu0 %v3122
        %v3124 = vpop.xlane.xlu0 %3123
        %v3125 = vrcp.pop 256.0
        %v3126 = vmul.f32 256.0, %v3125
        %v3127 = vsub.f32 1.0, %v3126
        %v3128 = vmul.f32 %v3125, %v3127
        %v3129 = vadd.f32 %v3125, %v3128
        %vm3130 = vweird.f32 %v3125
        %v3131 = vsel %vm3130, %v3125, %v3129
        %v3132 = vmul.f32 %v3119, %v3131
        %v3133 = vmul.f32 %v3124, %v3131
        %v3137 = vunpack.c.l.s4 269488144
        %v3138 = vunpack.c.0.s8 %v3137
        %v3139 = vperm.slane %v3132, %v3138
        %v3141 = vunpack.c.l.s4 842150450
        %v3142 = vunpack.c.0.s8 %v3141
        %v3143 = vperm.slane %v3132, %v3142
        %v3145 = vunpack.c.l.s4 1414812756
        %v3146 = vunpack.c.0.s8 %v3145
        %v3147 = vperm.slane %v3132, %v3146
        %v3149 = vunpack.c.l.s4 1987475062
        %v3150 = vunpack.c.0.s8 %v3149
        %v3151 = vperm.slane %v3132, %v3150
        %v3153 = vunpack.c.l.s4 269488144
        %v3154 = vunpack.c.0.s8 %v3153
        %v3155 = vperm.slane %v3133, %v3154
        %v3157 = vunpack.c.l.s4 842150450
        %v3158 = vunpack.c.0.s8 %v3157
        %v3159 = vperm.slane %v3133, %v3158
        %v3166 = vmul.f32 %v2710, %v3139
        %v3167 = vmul.f32 %v2712, %v3143
        %v3168 = vmul.f32 %v2718, %v3147
        %v3169 = vmul.f32 %v2720, %v3151
        %v3170 = vmul.f32 %v2726, %v3155
        %v3171 = vmul.f32 %v2728, %v3159
        %v3176 = vrot.slane %v3114, 6
        %v3177 = vrot.slane %v3116, 6
        %v3178 = vsel %vm2684, %v3113, %v3176
        %v3179 = vsel %vm2686, %v3113, %v3176
        %v3180 = vrot.slane %v3179, 2
        %v3181 = vsel %vm2689, %v3113, %v3176
        %v3182 = vrot.slane %v3181, 4
        %v3183 = vsel %vm2692, %v3176, %v3113
        %v3184 = vrot.slane %v3183, 6
        %v3185 = vsel %vm2684, %v3115, %v3177
        %v3186 = vsel %vm2686, %v3115, %v3177
        %v3187 = vrot.slane %v3186, 2
        %v3194 = vadd.f32 %v3166, %v3178
        %v3195 = vadd.f32 %v3167, %v3180
        %v3196 = vadd.f32 %v3168, %v3182
        %v3197 = vadd.f32 %v3169, %v3184
        %v3198 = vadd.f32 %v3170, %v3185
        %v3199 = vadd.f32 %v3171, %v3187
        %3206 = vst [vmem:[#allocation1] ss:$4 sm:$0xff] %v3194
        %s3207 = scalar_lea.vmem [#allocation1], 1
        %3208 = vst [vmem:[%s3207] ss:$4 sm:$0xff] %v3195
        %s3209 = scalar_lea.vmem [#allocation1], 2
        %3210 = vst [vmem:[%s3209] ss:$4 sm:$0xff] %v3196
        %s3211 = scalar_lea.vmem [#allocation1], 3
        %3212 = vst [vmem:[%s3211] ss:$4 sm:$0xff] %v3197
        %s3213 = scalar_lea.vmem [#allocation1], 32
        %3214 = vst [vmem:[%s3213] ss:$4 sm:$0xff] %v3198
        %s3215 = scalar_lea.vmem [#allocation1], 33
        %3216 = vst [vmem:[%s3215] ss:$4 sm:$0xff] %v3199
        %v3217 = vld.sshfl [vmem:[#allocation1] sm:$0xff pattern:$0x73625140]
        %v3218 = vld.sshfl [vmem:[#allocation1 + $0x8] sm:$0xff pattern:$0x73625140]
        %v3219 = vld.sshfl [vmem:[#allocation1 + $0x20] sm:$0xff pattern:$0x73625140]
        %v3220 = vld.sshfl [vmem:[#allocation1 + $0x28] sm:$0xff pattern:$0x73625140]
        %3225 = vst [vmem:[%s600] sm:$0xff] %v3217
        %3226 = vst [vmem:[%s600 + $0x8] sm:$0xff] %v3218
        %3227 = vst [vmem:[%s600 + $0x10] sm:$0xf] %v3219
        %3228 = vst [vmem:[%s600 + $0x18] sm:$0xf] %v3220
        %p3229 = scmp.lt.s32.totalorder %s31, 1
        %s3230 = scalar_select %p3229, %s31, 1
        %s3231 = smul.addr %s3230, 4
        %s3232 = smul.addr %s3231, 8
        %s3233 = scalar_lea.vmem %s15, %s3232
        // Predicated region
        $region97: #{tpu_custom_call.1} parent=79 // pred_check
          %p3234 = pneg %p379
        $region98: #{tpu_custom_call.1} parent=79 // pred_check_branch
          %3236 = sbr.rel (%p3234) target = $region100
        $region99: #{tpu_custom_call.1} parent=79 // pred_region
          _
        $region100: #{tpu_custom_call.1} parent=79 // pred_fallthru
          _
      $region80: #{tpu_custom_call.1} parent=5 // pred_fallthru
        _
      %p3237 = scmp.le.s32.totalorder 2, %s26
      // Predicated region
      $region101: #{tpu_custom_call.1} parent=5 // pred_check
        %p3238 = pneg %p3237
      $region102: #{tpu_custom_call.1} parent=5 // pred_check_branch
        %3240 = sbr.rel (%p3238) target = $region104
      $region103: #{tpu_custom_call.1} parent=5 // pred_region
        %s3241 = ssub.s32 %s26, 2
        // Predicated region
        $region105: #{tpu_custom_call.1} parent=103 // pred_check
          %p3242 = pneg %p385
        $region106: #{tpu_custom_call.1} parent=103 // pred_check_branch
          %3244 = sbr.rel (%p3242) target = $region108
        $region107: #{tpu_custom_call.1} parent=103 // pred_region
          %p3245 = scmp.lt.s32.totalorder %s32, 1
          %s3246 = scalar_select %p3245, %s32, 1
          %s3247 = smul.addr %s3246, 4
          %s3248 = smul.addr %s3247, 8
          %s3249 = scalar_lea.vmem %s15, %s3248
        $region108: #{tpu_custom_call.1} parent=103 // pred_fallthru
          _
      $region104: #{tpu_custom_call.1} parent=5 // pred_fallthru
        _
    $region6: #{tpu_custom_call.1} parent=1 // loop_footer
      %s30 = sadd.s32 1, %s26
    $region7: #{tpu_custom_call.1} parent=1 // loop_footer_branch
      %25 = sbr.rel target = $region3
    $region8: #{tpu_custom_call.1} parent=1 // loop_exit
      _
    %3250 = vsyncpa [#allocation6], 1
    %s3251 = scalar_lea.sflag [#allocation6], 1
    %3252 = vsyncpa %s3251, 1
    %3253 = vsyncpa [#allocation8], 1
    %3254 = vsyncpa [#allocation11], 1

</llo_original>
